<compile_context>
chip_gen: v7x
topology: tpu7x:2x2x1
jax: 0.10.0
libtpu: 0.0.40
codegen_flags: <defaults>
</compile_context>

<pallas_src>
import functools

import numpy as np

import jax
import jax.numpy as jnp
from jax import lax
from jax.experimental import pallas as pl
from jax.experimental.pallas import tpu as pltpu


def _round_up(v, m):
    return ((v + m - 1) // m) * m


def _vmem_bytes_estimate(Bp, chunk, D, H, weight_buffers=2):
    """Rough physical VMEM footprint (lane/sublane padding included)."""
    lane = 128
    G = _round_up(4 * H, lane)
    Dp = _round_up(D, lane)
    Hp = _round_up(H, lane)
    x_blk = 2 * chunk * _round_up(Bp, 16) * Dp * 2               # bf16 x, 2 bufs
    gates = chunk * _round_up(Bp, 8) * G * 4                      # f32 scratch
    weights = weight_buffers * 2 * (
        _round_up(D, 16) * G + 3 * _round_up(H, 16) * G)          # bf16 weights
    biases = weight_buffers * 4 * (2 * 8 * G + 8 * Hp + 8 * lane)  # f32 rows
    state = 4 * _round_up(Bp, 8) * Hp * 4                         # h/c scratch
    out = 2 * _round_up(Bp, 8) * lane * 4
    return x_blk + gates + weights + biases + state + out


def _pick_chunk(T, Bp, D, H, budget_bytes=24 << 20):
    """Largest time chunk (multiple of 8, divides T) within the VMEM budget."""
    for cand in (128, 64, 32, 16, 8):
        if T % cand == 0 and _vmem_bytes_estimate(Bp, cand, D, H) <= budget_bytes:
            return cand
    return T


def _lstm_kernel(x_ref,        # (Tc, Bp, D)  bf16 time-major input chunk
                 wih0_ref,     # (D, 4H)      bf16 layer-0 input weights [i,f,o,g]
                 whh0_ref,     # (H, 4H)      bf16 layer-0 recurrent weights
                 b0_ref,       # (1, 4H)      f32  b_ih0 + b_hh0
                 w1i_ref,      # (H, 4H)      bf16 layer-1 input weights
                 w1h_ref,      # (H, 4H)      bf16 layer-1 recurrent weights
                 b1_ref,       # (1, 4H)      f32  b_ih1 + b_hh1
                 wlin_ref,     # (1, H)       f32  final linear weight (row)
                 blin_ref,     # (1, 1)       f32  final linear bias
                 y_ref,        # (Bp, 1)      f32  output
                 h0_s, c0_s, h1_s, c1_s,      # persistent (Bp, H) f32 state
                 gates0_s,                    # (Tc, Bp, 4H) f32 scratch
                 *, hidden_dim):
    Tc, Bp, D = x_ref.shape
    H = hidden_dim

    # Zero-init recurrent state on the first time-chunk only.
    @pl.when(pl.program_id(0) == 0)
    def _init():
        h0_s[...] = jnp.zeros_like(h0_s)
        c0_s[...] = jnp.zeros_like(c0_s)
        h1_s[...] = jnp.zeros_like(h1_s)
        c1_s[...] = jnp.zeros_like(c1_s)

    # --- Hoisted layer-0 input projection: ONE (Tc*Bp, D) @ (D, 4H) bf16
    # MXU matmul per chunk, staged in VMEM scratch (bounds vreg pressure). ---
    x_flat = x_ref[...].reshape(Tc * Bp, D)            # layout no-op (Bp % 16 == 0)
    proj0 = jnp.dot(x_flat, wih0_ref[...], preferred_element_type=jnp.float32)
    gates0_s[...] = proj0.reshape(Tc, Bp, 4 * H) + b0_ref[...]   # bias added once

    whh0 = whh0_ref[...]
    w1i = w1i_ref[...]
    w1h = w1h_ref[...]
    # Hoisted broadcasts (JAX does not CSE broadcast_in_dim inside loops).
    b1_b = jnp.broadcast_to(b1_ref[...], (Bp, 4 * H))
    # Column scale so ONE tanh push covers all 4 gates:
    #   sigmoid(z) = 0.5*tanh(0.5*z) + 0.5  for [i, f, o];   tanh(z)  for [g].
    gate_scale = jnp.broadcast_to(
        jnp.concatenate([jnp.full((1, 3 * H), 0.5, jnp.float32),
                         jnp.ones((1, H), jnp.float32)], axis=1),
        (Bp, 4 * H))

    def apply_gates(gates, c):
        t4 = jnp.tanh(gates * gate_scale)          # single EUP push over 4H lanes
        sig = 0.5 * t4[:, :3 * H] + 0.5            # sigmoid(i, f, o)
        i_g = sig[:, 0 * H:1 * H]
        f_g = sig[:, 1 * H:2 * H]
        o_g = sig[:, 2 * H:3 * H]
        g_g = t4[:, 3 * H:]
        c_new = f_g * c + i_g * g_g
        h_new = o_g * jnp.tanh(c_new)
        return h_new, c_new

    def step(t, carry):
        h0, c0, h1, c1 = carry
        # Layer-1 recurrent half: independent of this step's layer-0, so its
        # MXU push overlaps the layer-0 recurrent dot (no per-step concat).
        g1_rec = jnp.dot(h1.astype(jnp.bfloat16), w1h,
                         preferred_element_type=jnp.float32)
        # Layer 0: only the recurrent matmul sits on the serial chain.
        g0 = gates0_s[t] + jnp.dot(h0.astype(jnp.bfloat16), whh0,
                                   preferred_element_type=jnp.float32)
        h0, c0 = apply_gates(g0, c0)
        # Dropout (p=0.3) between layers is inactive at inference time.
        g1 = g1_rec + jnp.dot(h0.astype(jnp.bfloat16), w1i,
                              preferred_element_type=jnp.float32) + b1_b
        h1, c1 = apply_gates(g1, c1)
        return h0, c0, h1, c1

    h0, c0, h1, c1 = lax.fori_loop(
        0, Tc, step,
        (h0_s[...], c0_s[...], h1_s[...], c1_s[...]),
        unroll=min(8, Tc))

    h0_s[...] = h0
    c0_s[...] = c0
    h1_s[...] = h1
    c1_s[...] = c1

    # Linear(H, 1) + Sigmoid on the last timestep of the top layer, done as a
    # VPU multiply + lane reduction instead of an N=1 MXU matmul.
    @pl.when(pl.program_id(0) == pl.num_programs(0) - 1)
    def _finalize():
        logits = jnp.sum(h1 * wlin_ref[...], axis=-1, keepdims=True) \
            + blin_ref[...]
        y_ref[...] = jax.nn.sigmoid(logits).astype(y_ref.dtype)


def lstm_model_forward(x, params, hidden_dim, *, chunk=None):
    """x: (B, T, D) float32, batch-first like PyTorch. Returns (B, 1)."""
    B, T, D = x.shape
    H = hidden_dim

    # Pad batch to a multiple of 16 (bf16 sublane pack) -> in-kernel reshape of
    # the bf16 input chunk is a pure layout no-op; extra rows are dropped.
    Bp = max(16, _round_up(B, 16))
    if Bp != B:
        x = jnp.pad(x, ((0, Bp - B), (0, 0), (0, 0)))

    # Time-major, bf16 streamed input (layout plumbing; halves DMA bytes).
    x_tm = jnp.transpose(x, (1, 0, 2)).astype(jnp.bfloat16)   # (T, Bp, D)

    if chunk is None:
        chunk = _pick_chunk(T, Bp, D, H)
    assert T % chunk == 0, "sequence length must be divisible by the chunk"
    n_chunks = T // chunk

    vmem_limit = int(min(64 << 20,
                         max(32 << 20, 2 * _vmem_bytes_estimate(Bp, chunk, D, H))))

    kernel = functools.partial(_lstm_kernel, hidden_dim=H)

    def _build(use_buffered):
        def const_spec(shape):
            # Constant-index-map operands never change across the time grid:
            # request single buffering to recover the second pipeline buffer.
            if use_buffered:
                return pl.BlockSpec(shape, lambda t: (0, 0),
                                    pipeline_mode=pl.Buffered(1))
            return pl.BlockSpec(shape, lambda t: (0, 0))

        in_specs = [
            pl.BlockSpec((chunk, Bp, D), lambda t: (t, 0, 0)),   # x: stream over T
            const_spec((D, 4 * H)),      # wih0 (resident)
            const_spec((H, 4 * H)),      # whh0
            const_spec((1, 4 * H)),      # b0
            const_spec((H, 4 * H)),      # w1_ih
            const_spec((H, 4 * H)),      # w1_hh
            const_spec((1, 4 * H)),      # b1
            const_spec((1, H)),          # linear weight row
            const_spec((1, 1)),          # linear bias
        ]
        return pl.pallas_call(
            kernel,
            out_shape=jax.ShapeDtypeStruct((Bp, 1), jnp.float32),
            grid=(n_chunks,),
            in_specs=in_specs,
            out_specs=pl.BlockSpec((Bp, 1), lambda t: (0, 0)),
            scratch_shapes=[pltpu.VMEM((Bp, H), jnp.float32)] * 4
                         + [pltpu.VMEM((chunk, Bp, 4 * H), jnp.float32)],
            compiler_params=pltpu.CompilerParams(
                dimension_semantics=("arbitrary",),   # recurrence -> sequential
                vmem_limit_bytes=vmem_limit),
        )

    args = (x_tm,
            params["wih0_t"], params["whh0_t"], params["b0"],
            params["w1_ih"], params["w1_hh"], params["b1"],
            params["wlin_row"], params["blin"])
    try:
        out = jax.block_until_ready(_build(use_buffered=True)(*args))
    except Exception:
        # pl.Buffered(1) unsupported in this build -> default double-buffering.
        out = jax.block_until_ready(_build(use_buffered=False)(*args))
    return out[:B]


# ----------------------------------------------------------------------------
# Parameter construction (PyTorch layout) and packing for the kernel.
# ----------------------------------------------------------------------------

def init_raw_params(key, input_dim, hidden_dim):
    """PyTorch-layout params with uniform(-1/sqrt(H), 1/sqrt(H)) init."""
    H = hidden_dim
    bound = 1.0 / float(np.sqrt(H))
    keys = jax.random.split(key, 10)

    def u(k, shape):
        return jax.random.uniform(k, shape, jnp.float32, -bound, bound)

    return {
        # Layer 0 (gate order i, f, g, o as in PyTorch)
        "w_ih0": u(keys[0], (4 * H, input_dim)),
        "w_hh0": u(keys[1], (4 * H, H)),
        "b_ih0": u(keys[2], (4 * H,)),
        "b_hh0": u(keys[3], (4 * H,)),
        # Layer 1
        "w_ih1": u(keys[4], (4 * H, H)),
        "w_hh1": u(keys[5], (4 * H, H)),
        "b_ih1": u(keys[6], (4 * H,)),
        "b_hh1": u(keys[7], (4 * H,)),
        # Linear(H, 1)
        "w_lin": jax.random.uniform(keys[8], (1, H), jnp.float32, -bound, bound),
        "b_lin": jax.random.uniform(keys[9], (1,), jnp.float32, -bound, bound),
    }


def pack_params(raw):
    """Permute gates [i,f,g,o]->[i,f,o,g], transpose, cast matmul weights bf16."""
    def reorder(w):
        H = w.shape[0] // 4
        return jnp.concatenate([w[:2 * H], w[3 * H:], w[2 * H:3 * H]], axis=0)

    return {
        "wih0_t": reorder(raw["w_ih0"]).T.astype(jnp.bfloat16),        # (D, 4H)
        "whh0_t": reorder(raw["w_hh0"]).T.astype(jnp.bfloat16),        # (H, 4H)
        "b0": reorder(raw["b_ih0"] + raw["b_hh0"])[None, :].astype(jnp.float32),
        "w1_ih": reorder(raw["w_ih1"]).T.astype(jnp.bfloat16),         # (H, 4H)
        "w1_hh": reorder(raw["w_hh1"]).T.astype(jnp.bfloat16),         # (H, 4H)
        "b1": reorder(raw["b_ih1"] + raw["b_hh1"])[None, :].astype(jnp.float32),
        "wlin_row": raw["w_lin"].astype(jnp.float32),                  # (1, H)
        "blin": raw["b_lin"][None, :].astype(jnp.float32),             # (1, 1)
    }


def _reference_forward(x, raw, H):
    """Pure-numpy reference matching PyTorch LSTM semantics (eval mode)."""
    x = np.asarray(x, np.float32)

    def sigmoid(z):
        return 1.0 / (1.0 + np.exp(-z))

    def run_layer(inp, w_ih, w_hh, b_ih, b_hh):
        w_ih = np.asarray(w_ih); w_hh = np.asarray(w_hh)
        b_ih = np.asarray(b_ih); b_hh = np.asarray(b_hh)
        Bn, Tn, _ = inp.shape
        h = np.zeros((Bn, H), np.float32)
        c = np.zeros((Bn, H), np.float32)
        outs = []
        for t in range(Tn):
            g = inp[:, t, :] @ w_ih.T + h @ w_hh.T + b_ih + b_hh
            i = sigmoid(g[:, :H]); f = sigmoid(g[:, H:2 * H])
            gg = np.tanh(g[:, 2 * H:3 * H]); o = sigmoid(g[:, 3 * H:])
            c = f * c + i * gg
            h = o * np.tanh(c)
            outs.append(h)
        return np.stack(outs, axis=1)

    h0_seq = run_layer(x, raw["w_ih0"], raw["w_hh0"], raw["b_ih0"], raw["b_hh0"])
    h1_seq = run_layer(h0_seq, raw["w_ih1"], raw["w_hh1"],
                       raw["b_ih1"], raw["b_hh1"])
    last = h1_seq[:, -1, :]
    logits = last @ np.asarray(raw["w_lin"]).T + np.asarray(raw["b_lin"])
    return sigmoid(logits)


if __name__ == "__main__":
    B, T, D, H = 2, 8, 16, 32

    key = jax.random.PRNGKey(0)
    k_x, k_p = jax.random.split(key)
    x = jax.random.normal(k_x, (B, T, D), jnp.float32)
    raw = init_raw_params(k_p, D, H)
    params = pack_params(raw)

    y = lstm_model_forward(x, params, H)
    y = jax.block_until_ready(y)
    assert y.shape == (B, 1)
    assert bool(jnp.all(jnp.isfinite(y)))

    # Validate the bf16 / gate-fused kernel against a PyTorch-semantics f32 ref.
    y_ref = _reference_forward(x, raw, H)
    err = float(np.max(np.abs(np.asarray(y, np.float32) - y_ref)))
    assert err < 2e-2, err

    print("KERNEL_OK")
</pallas_src>

<mosaic_0001>
module attributes {stable_mosaic.version = 11 : i64} {
  func.func @_lstm_kernel(%arg0: i32, %arg1: memref<8x16x16xbf16, #tpu.memory_space<vmem>>, %arg2: memref<16x128xbf16, #tpu.memory_space<vmem>>, %arg3: memref<32x128xbf16, #tpu.memory_space<vmem>>, %arg4: memref<1x128xf32, #tpu.memory_space<vmem>>, %arg5: memref<32x128xbf16, #tpu.memory_space<vmem>>, %arg6: memref<32x128xbf16, #tpu.memory_space<vmem>>, %arg7: memref<1x128xf32, #tpu.memory_space<vmem>>, %arg8: memref<1x32xf32, #tpu.memory_space<vmem>>, %arg9: memref<1x1xf32, #tpu.memory_space<vmem>>, %arg10: memref<16x1xf32, #tpu.memory_space<vmem>>, %arg11: memref<16x32xf32, #tpu.memory_space<vmem>>, %arg12: memref<16x32xf32, #tpu.memory_space<vmem>>, %arg13: memref<16x32xf32, #tpu.memory_space<vmem>>, %arg14: memref<16x32xf32, #tpu.memory_space<vmem>>, %arg15: memref<8x16x128xf32, #tpu.memory_space<vmem>>) attributes {dimension_semantics = [#tpu.dimension_semantics<arbitrary>], iteration_bounds = array<i64: 1>, scalar_prefetch = 0 : i64, scratch_operands = 5 : i64, tpu.core_type = #tpu.core_type<tc>, window_params = [{transform_indices = @transform_0, window_bounds = array<i64: 8, 16, 16>}, {pipeline_mode = #tpu.pipeline_mode<synchronous>, transform_indices = @transform_1, window_bounds = array<i64: 16, 128>}, {pipeline_mode = #tpu.pipeline_mode<synchronous>, transform_indices = @transform_2, window_bounds = array<i64: 32, 128>}, {pipeline_mode = #tpu.pipeline_mode<synchronous>, transform_indices = @transform_3, window_bounds = array<i64: 1, 128>}, {pipeline_mode = #tpu.pipeline_mode<synchronous>, transform_indices = @transform_4, window_bounds = array<i64: 32, 128>}, {pipeline_mode = #tpu.pipeline_mode<synchronous>, transform_indices = @transform_5, window_bounds = array<i64: 32, 128>}, {pipeline_mode = #tpu.pipeline_mode<synchronous>, transform_indices = @transform_6, window_bounds = array<i64: 1, 128>}, {pipeline_mode = #tpu.pipeline_mode<synchronous>, transform_indices = @transform_7, window_bounds = array<i64: 1, 32>}, {pipeline_mode = #tpu.pipeline_mode<synchronous>, transform_indices = @transform_8, window_bounds = array<i64: 1, 1>}, {pipeline_mode = #tpu.pipeline_mode<synchronous>, transform_indices = @transform_9, window_bounds = array<i64: 16, 1>}]} {
    %c0_i32 = arith.constant 0 : i32
    %0 = arith.cmpi eq, %arg0, %c0_i32 : i32
    %1 = arith.extui %0 : i1 to i32
    %c0_i32_0 = arith.constant 0 : i32
    %2 = arith.cmpi ne, %1, %c0_i32_0 : i32
    scf.if %2 {
      %cst_111 = arith.constant 0.000000e+00 : f32
      %387 = vector.broadcast %cst_111 : f32 to vector<16x32xf32>
      %c0_112 = arith.constant 0 : index
      %c0_113 = arith.constant 0 : index
      %388 = vector.load %arg11[%c0_112, %c0_113] : memref<16x32xf32, #tpu.memory_space<vmem>>, vector<16x32xf32>
      tpu.vector_store %arg11[%c0_112, %c0_113], %387 {strides = array<i32>} : memref<16x32xf32, #tpu.memory_space<vmem>>, vector<16x32xf32>,
      %cst_114 = arith.constant 0.000000e+00 : f32
      %389 = vector.broadcast %cst_114 : f32 to vector<16x32xf32>
      %c0_115 = arith.constant 0 : index
      %c0_116 = arith.constant 0 : index
      %390 = vector.load %arg12[%c0_115, %c0_116] : memref<16x32xf32, #tpu.memory_space<vmem>>, vector<16x32xf32>
      tpu.vector_store %arg12[%c0_115, %c0_116], %389 {strides = array<i32>} : memref<16x32xf32, #tpu.memory_space<vmem>>, vector<16x32xf32>,
      %cst_117 = arith.constant 0.000000e+00 : f32
      %391 = vector.broadcast %cst_117 : f32 to vector<16x32xf32>
      %c0_118 = arith.constant 0 : index
      %c0_119 = arith.constant 0 : index
      %392 = vector.load %arg13[%c0_118, %c0_119] : memref<16x32xf32, #tpu.memory_space<vmem>>, vector<16x32xf32>
      tpu.vector_store %arg13[%c0_118, %c0_119], %391 {strides = array<i32>} : memref<16x32xf32, #tpu.memory_space<vmem>>, vector<16x32xf32>,
      %cst_120 = arith.constant 0.000000e+00 : f32
      %393 = vector.broadcast %cst_120 : f32 to vector<16x32xf32>
      %c0_121 = arith.constant 0 : index
      %c0_122 = arith.constant 0 : index
      %394 = vector.load %arg14[%c0_121, %c0_122] : memref<16x32xf32, #tpu.memory_space<vmem>>, vector<16x32xf32>
      tpu.vector_store %arg14[%c0_121, %c0_122], %393 {strides = array<i32>} : memref<16x32xf32, #tpu.memory_space<vmem>>, vector<16x32xf32>,
    } else {
    }
    %c0 = arith.constant 0 : index
    %c0_1 = arith.constant 0 : index
    %c0_2 = arith.constant 0 : index
    %3 = vector.load %arg1[%c0, %c0_1, %c0_2] : memref<8x16x16xbf16, #tpu.memory_space<vmem>>, vector<8x16x16xbf16>
    %4 = vector.shape_cast %3 : vector<8x16x16xbf16> to vector<128x16xbf16>
    %c0_3 = arith.constant 0 : index
    %c0_4 = arith.constant 0 : index
    %5 = vector.load %arg2[%c0_3, %c0_4] : memref<16x128xbf16, #tpu.memory_space<vmem>>, vector<16x128xbf16>
    %cst = arith.constant dense<0.000000e+00> : vector<128x128xf32>
    %6 = tpu.matmul %4, %5, %cst {dimension_numbers = #tpu.dot_dimension_numbers<[1], [0], [0], [1], [0, 0, 1, 1], [], []>} : vector<128x16xbf16>, vector<16x128xbf16>, vector<128x128xf32> -> vector<128x128xf32>
    %7 = vector.shape_cast %6 : vector<128x128xf32> to vector<8x16x128xf32>
    %c0_5 = arith.constant 0 : index
    %c0_6 = arith.constant 0 : index
    %8 = vector.load %arg4[%c0_5, %c0_6] : memref<1x128xf32, #tpu.memory_space<vmem>>, vector<1x128xf32>
    %9 = vector.shape_cast %8 : vector<1x128xf32> to vector<1x1x128xf32>
    %10 = vector.broadcast %9 : vector<1x1x128xf32> to vector<8x16x128xf32>
    %11 = arith.addf %7, %10 : vector<8x16x128xf32>
    %c0_7 = arith.constant 0 : index
    %c0_8 = arith.constant 0 : index
    %c0_9 = arith.constant 0 : index
    %12 = vector.load %arg15[%c0_7, %c0_8, %c0_9] : memref<8x16x128xf32, #tpu.memory_space<vmem>>, vector<8x16x128xf32>
    tpu.vector_store %arg15[%c0_7, %c0_8, %c0_9], %11 {strides = array<i32>} : memref<8x16x128xf32, #tpu.memory_space<vmem>>, vector<8x16x128xf32>,
    %c0_10 = arith.constant 0 : index
    %c0_11 = arith.constant 0 : index
    %13 = vector.load %arg3[%c0_10, %c0_11] : memref<32x128xbf16, #tpu.memory_space<vmem>>, vector<32x128xbf16>
    %c0_12 = arith.constant 0 : index
    %c0_13 = arith.constant 0 : index
    %14 = vector.load %arg5[%c0_12, %c0_13] : memref<32x128xbf16, #tpu.memory_space<vmem>>, vector<32x128xbf16>
    %c0_14 = arith.constant 0 : index
    %c0_15 = arith.constant 0 : index
    %15 = vector.load %arg6[%c0_14, %c0_15] : memref<32x128xbf16, #tpu.memory_space<vmem>>, vector<32x128xbf16>
    %c0_16 = arith.constant 0 : index
    %c0_17 = arith.constant 0 : index
    %16 = vector.load %arg7[%c0_16, %c0_17] : memref<1x128xf32, #tpu.memory_space<vmem>>, vector<1x128xf32>
    %17 = vector.shape_cast %16 : vector<1x128xf32> to vector<1x128xf32>
    %18 = vector.broadcast %17 : vector<1x128xf32> to vector<16x128xf32>
    %cst_18 = arith.constant 5.000000e-01 : f32
    %19 = vector.broadcast %cst_18 : f32 to vector<1x96xf32>
    %cst_19 = arith.constant 1.000000e+00 : f32
    %20 = vector.broadcast %cst_19 : f32 to vector<1x32xf32>
    %21 = tpu.concatenate %19, %20 in 1 : vector<1x96xf32>, vector<1x32xf32> -> vector<1x128xf32>
    %22 = vector.shape_cast %21 : vector<1x128xf32> to vector<1x128xf32>
    %23 = vector.broadcast %22 : vector<1x128xf32> to vector<16x128xf32>
    %c0_20 = arith.constant 0 : index
    %c0_21 = arith.constant 0 : index
    %24 = vector.load %arg11[%c0_20, %c0_21] : memref<16x32xf32, #tpu.memory_space<vmem>>, vector<16x32xf32>
    %c0_22 = arith.constant 0 : index
    %c0_23 = arith.constant 0 : index
    %25 = vector.load %arg12[%c0_22, %c0_23] : memref<16x32xf32, #tpu.memory_space<vmem>>, vector<16x32xf32>
    %c0_24 = arith.constant 0 : index
    %c0_25 = arith.constant 0 : index
    %26 = vector.load %arg13[%c0_24, %c0_25] : memref<16x32xf32, #tpu.memory_space<vmem>>, vector<16x32xf32>
    %c0_26 = arith.constant 0 : index
    %c0_27 = arith.constant 0 : index
    %27 = vector.load %arg14[%c0_26, %c0_27] : memref<16x32xf32, #tpu.memory_space<vmem>>, vector<16x32xf32>
    %c0_i32_28 = arith.constant 0 : i32
    %28 = arith.truncf %26 : vector<16x32xf32> to vector<16x32xbf16>
    %cst_29 = arith.constant dense<0.000000e+00> : vector<16x128xf32>
    %29 = tpu.matmul %28, %15, %cst_29 {dimension_numbers = #tpu.dot_dimension_numbers<[1], [0], [0], [1], [0, 0, 1, 1], [], []>} : vector<16x32xbf16>, vector<32x128xbf16>, vector<16x128xf32> -> vector<16x128xf32>
    %30 = arith.index_cast %c0_i32_28 : i32 to index
    %c0_30 = arith.constant 0 : index
    %c0_31 = arith.constant 0 : index
    %31 = vector.load %arg15[%30, %c0_30, %c0_31] : memref<8x16x128xf32, #tpu.memory_space<vmem>>, vector<1x16x128xf32>
    %32 = vector.shape_cast %31 : vector<1x16x128xf32> to vector<16x128xf32>
    %33 = arith.truncf %24 : vector<16x32xf32> to vector<16x32xbf16>
    %cst_32 = arith.constant dense<0.000000e+00> : vector<16x128xf32>
    %34 = tpu.matmul %33, %13, %cst_32 {dimension_numbers = #tpu.dot_dimension_numbers<[1], [0], [0], [1], [0, 0, 1, 1], [], []>} : vector<16x32xbf16>, vector<32x128xbf16>, vector<16x128xf32> -> vector<16x128xf32>
    %35 = arith.addf %32, %34 : vector<16x128xf32>
    %36 = arith.mulf %35, %23 : vector<16x128xf32>
    %37 = math.tanh %36 : vector<16x128xf32>
    %38 = vector.extract_strided_slice %37 {offsets = [0, 0], sizes = [16, 96], strides = [1, 1]} : vector<16x128xf32> to vector<16x96xf32>
    %cst_33 = arith.constant 5.000000e-01 : f32
    %39 = vector.broadcast %cst_33 : f32 to vector<16x96xf32>
    %40 = arith.mulf %39, %38 : vector<16x96xf32>
    %cst_34 = arith.constant 5.000000e-01 : f32
    %41 = vector.broadcast %cst_34 : f32 to vector<16x96xf32>
    %42 = arith.addf %40, %41 : vector<16x96xf32>
    %43 = vector.extract_strided_slice %42 {offsets = [0, 0], sizes = [16, 32], strides = [1, 1]} : vector<16x96xf32> to vector<16x32xf32>
    %44 = vector.extract_strided_slice %42 {offsets = [0, 32], sizes = [16, 32], strides = [1, 1]} : vector<16x96xf32> to vector<16x32xf32>
    %45 = vector.extract_strided_slice %42 {offsets = [0, 64], sizes = [16, 32], strides = [1, 1]} : vector<16x96xf32> to vector<16x32xf32>
    %46 = vector.extract_strided_slice %37 {offsets = [0, 96], sizes = [16, 32], strides = [1, 1]} : vector<16x128xf32> to vector<16x32xf32>
    %47 = arith.mulf %44, %25 : vector<16x32xf32>
    %48 = arith.mulf %43, %46 : vector<16x32xf32>
    %49 = arith.addf %47, %48 : vector<16x32xf32>
    %50 = math.tanh %49 : vector<16x32xf32>
    %51 = arith.mulf %45, %50 : vector<16x32xf32>
    %52 = arith.truncf %51 : vector<16x32xf32> to vector<16x32xbf16>
    %cst_35 = arith.constant dense<0.000000e+00> : vector<16x128xf32>
    %53 = tpu.matmul %52, %14, %cst_35 {dimension_numbers = #tpu.dot_dimension_numbers<[1], [0], [0], [1], [0, 0, 1, 1], [], []>} : vector<16x32xbf16>, vector<32x128xbf16>, vector<16x128xf32> -> vector<16x128xf32>
    %54 = arith.addf %29, %53 : vector<16x128xf32>
    %55 = arith.addf %54, %18 : vector<16x128xf32>
    %56 = arith.mulf %55, %23 : vector<16x128xf32>
    %57 = math.tanh %56 : vector<16x128xf32>
    %58 = vector.extract_strided_slice %57 {offsets = [0, 0], sizes = [16, 96], strides = [1, 1]} : vector<16x128xf32> to vector<16x96xf32>
    %cst_36 = arith.constant 5.000000e-01 : f32
    %59 = vector.broadcast %cst_36 : f32 to vector<16x96xf32>
    %60 = arith.mulf %59, %58 : vector<16x96xf32>
    %cst_37 = arith.constant 5.000000e-01 : f32
    %61 = vector.broadcast %cst_37 : f32 to vector<16x96xf32>
    %62 = arith.addf %60, %61 : vector<16x96xf32>
    %63 = vector.extract_strided_slice %62 {offsets = [0, 0], sizes = [16, 32], strides = [1, 1]} : vector<16x96xf32> to vector<16x32xf32>
    %64 = vector.extract_strided_slice %62 {offsets = [0, 32], sizes = [16, 32], strides = [1, 1]} : vector<16x96xf32> to vector<16x32xf32>
    %65 = vector.extract_strided_slice %62 {offsets = [0, 64], sizes = [16, 32], strides = [1, 1]} : vector<16x96xf32> to vector<16x32xf32>
    %66 = vector.extract_strided_slice %57 {offsets = [0, 96], sizes = [16, 32], strides = [1, 1]} : vector<16x128xf32> to vector<16x32xf32>
    %67 = arith.mulf %64, %27 : vector<16x32xf32>
    %68 = arith.mulf %63, %66 : vector<16x32xf32>
    %69 = arith.addf %67, %68 : vector<16x32xf32>
    %70 = math.tanh %69 : vector<16x32xf32>
    %71 = arith.mulf %65, %70 : vector<16x32xf32>
    %c1_i32 = arith.constant 1 : i32
    %72 = arith.truncf %71 : vector<16x32xf32> to vector<16x32xbf16>
    %cst_38 = arith.constant dense<0.000000e+00> : vector<16x128xf32>
    %73 = tpu.matmul %72, %15, %cst_38 {dimension_numbers = #tpu.dot_dimension_numbers<[1], [0], [0], [1], [0, 0, 1, 1], [], []>} : vector<16x32xbf16>, vector<32x128xbf16>, vector<16x128xf32> -> vector<16x128xf32>
    %74 = arith.index_cast %c1_i32 : i32 to index
    %c0_39 = arith.constant 0 : index
    %c0_40 = arith.constant 0 : index
    %75 = vector.load %arg15[%74, %c0_39, %c0_40] : memref<8x16x128xf32, #tpu.memory_space<vmem>>, vector<1x16x128xf32>
    %76 = vector.shape_cast %75 : vector<1x16x128xf32> to vector<16x128xf32>
    %77 = arith.truncf %51 : vector<16x32xf32> to vector<16x32xbf16>
    %cst_41 = arith.constant dense<0.000000e+00> : vector<16x128xf32>
    %78 = tpu.matmul %77, %13, %cst_41 {dimension_numbers = #tpu.dot_dimension_numbers<[1], [0], [0], [1], [0, 0, 1, 1], [], []>} : vector<16x32xbf16>, vector<32x128xbf16>, vector<16x128xf32> -> vector<16x128xf32>
    %79 = arith.addf %76, %78 : vector<16x128xf32>
    %80 = arith.mulf %79, %23 : vector<16x128xf32>
    %81 = math.tanh %80 : vector<16x128xf32>
    %82 = vector.extract_strided_slice %81 {offsets = [0, 0], sizes = [16, 96], strides = [1, 1]} : vector<16x128xf32> to vector<16x96xf32>
    %cst_42 = arith.constant 5.000000e-01 : f32
    %83 = vector.broadcast %cst_42 : f32 to vector<16x96xf32>
    %84 = arith.mulf %83, %82 : vector<16x96xf32>
    %cst_43 = arith.constant 5.000000e-01 : f32
    %85 = vector.broadcast %cst_43 : f32 to vector<16x96xf32>
    %86 = arith.addf %84, %85 : vector<16x96xf32>
    %87 = vector.extract_strided_slice %86 {offsets = [0, 0], sizes = [16, 32], strides = [1, 1]} : vector<16x96xf32> to vector<16x32xf32>
    %88 = vector.extract_strided_slice %86 {offsets = [0, 32], sizes = [16, 32], strides = [1, 1]} : vector<16x96xf32> to vector<16x32xf32>
    %89 = vector.extract_strided_slice %86 {offsets = [0, 64], sizes = [16, 32], strides = [1, 1]} : vector<16x96xf32> to vector<16x32xf32>
    %90 = vector.extract_strided_slice %81 {offsets = [0, 96], sizes = [16, 32], strides = [1, 1]} : vector<16x128xf32> to vector<16x32xf32>
    %91 = arith.mulf %88, %49 : vector<16x32xf32>
    %92 = arith.mulf %87, %90 : vector<16x32xf32>
    %93 = arith.addf %91, %92 : vector<16x32xf32>
    %94 = math.tanh %93 : vector<16x32xf32>
    %95 = arith.mulf %89, %94 : vector<16x32xf32>
    %96 = arith.truncf %95 : vector<16x32xf32> to vector<16x32xbf16>
    %cst_44 = arith.constant dense<0.000000e+00> : vector<16x128xf32>
    %97 = tpu.matmul %96, %14, %cst_44 {dimension_numbers = #tpu.dot_dimension_numbers<[1], [0], [0], [1], [0, 0, 1, 1], [], []>} : vector<16x32xbf16>, vector<32x128xbf16>, vector<16x128xf32> -> vector<16x128xf32>
    %98 = arith.addf %73, %97 : vector<16x128xf32>
    %99 = arith.addf %98, %18 : vector<16x128xf32>
    %100 = arith.mulf %99, %23 : vector<16x128xf32>
    %101 = math.tanh %100 : vector<16x128xf32>
    %102 = vector.extract_strided_slice %101 {offsets = [0, 0], sizes = [16, 96], strides = [1, 1]} : vector<16x128xf32> to vector<16x96xf32>
    %cst_45 = arith.constant 5.000000e-01 : f32
    %103 = vector.broadcast %cst_45 : f32 to vector<16x96xf32>
    %104 = arith.mulf %103, %102 : vector<16x96xf32>
    %cst_46 = arith.constant 5.000000e-01 : f32
    %105 = vector.broadcast %cst_46 : f32 to vector<16x96xf32>
    %106 = arith.addf %104, %105 : vector<16x96xf32>
    %107 = vector.extract_strided_slice %106 {offsets = [0, 0], sizes = [16, 32], strides = [1, 1]} : vector<16x96xf32> to vector<16x32xf32>
    %108 = vector.extract_strided_slice %106 {offsets = [0, 32], sizes = [16, 32], strides = [1, 1]} : vector<16x96xf32> to vector<16x32xf32>
    %109 = vector.extract_strided_slice %106 {offsets = [0, 64], sizes = [16, 32], strides = [1, 1]} : vector<16x96xf32> to vector<16x32xf32>
    %110 = vector.extract_strided_slice %101 {offsets = [0, 96], sizes = [16, 32], strides = [1, 1]} : vector<16x128xf32> to vector<16x32xf32>
    %111 = arith.mulf %108, %69 : vector<16x32xf32>
    %112 = arith.mulf %107, %110 : vector<16x32xf32>
    %113 = arith.addf %111, %112 : vector<16x32xf32>
    %114 = math.tanh %113 : vector<16x32xf32>
    %115 = arith.mulf %109, %114 : vector<16x32xf32>
    %c2_i32 = arith.constant 2 : i32
    %116 = arith.truncf %115 : vector<16x32xf32> to vector<16x32xbf16>
    %cst_47 = arith.constant dense<0.000000e+00> : vector<16x128xf32>
    %117 = tpu.matmul %116, %15, %cst_47 {dimension_numbers = #tpu.dot_dimension_numbers<[1], [0], [0], [1], [0, 0, 1, 1], [], []>} : vector<16x32xbf16>, vector<32x128xbf16>, vector<16x128xf32> -> vector<16x128xf32>
    %118 = arith.index_cast %c2_i32 : i32 to index
    %c0_48 = arith.constant 0 : index
    %c0_49 = arith.constant 0 : index
    %119 = vector.load %arg15[%118, %c0_48, %c0_49] : memref<8x16x128xf32, #tpu.memory_space<vmem>>, vector<1x16x128xf32>
    %120 = vector.shape_cast %119 : vector<1x16x128xf32> to vector<16x128xf32>
    %121 = arith.truncf %95 : vector<16x32xf32> to vector<16x32xbf16>
    %cst_50 = arith.constant dense<0.000000e+00> : vector<16x128xf32>
    %122 = tpu.matmul %121, %13, %cst_50 {dimension_numbers = #tpu.dot_dimension_numbers<[1], [0], [0], [1], [0, 0, 1, 1], [], []>} : vector<16x32xbf16>, vector<32x128xbf16>, vector<16x128xf32> -> vector<16x128xf32>
    %123 = arith.addf %120, %122 : vector<16x128xf32>
    %124 = arith.mulf %123, %23 : vector<16x128xf32>
    %125 = math.tanh %124 : vector<16x128xf32>
    %126 = vector.extract_strided_slice %125 {offsets = [0, 0], sizes = [16, 96], strides = [1, 1]} : vector<16x128xf32> to vector<16x96xf32>
    %cst_51 = arith.constant 5.000000e-01 : f32
    %127 = vector.broadcast %cst_51 : f32 to vector<16x96xf32>
    %128 = arith.mulf %127, %126 : vector<16x96xf32>
    %cst_52 = arith.constant 5.000000e-01 : f32
    %129 = vector.broadcast %cst_52 : f32 to vector<16x96xf32>
    %130 = arith.addf %128, %129 : vector<16x96xf32>
    %131 = vector.extract_strided_slice %130 {offsets = [0, 0], sizes = [16, 32], strides = [1, 1]} : vector<16x96xf32> to vector<16x32xf32>
    %132 = vector.extract_strided_slice %130 {offsets = [0, 32], sizes = [16, 32], strides = [1, 1]} : vector<16x96xf32> to vector<16x32xf32>
    %133 = vector.extract_strided_slice %130 {offsets = [0, 64], sizes = [16, 32], strides = [1, 1]} : vector<16x96xf32> to vector<16x32xf32>
    %134 = vector.extract_strided_slice %125 {offsets = [0, 96], sizes = [16, 32], strides = [1, 1]} : vector<16x128xf32> to vector<16x32xf32>
    %135 = arith.mulf %132, %93 : vector<16x32xf32>
    %136 = arith.mulf %131, %134 : vector<16x32xf32>
    %137 = arith.addf %135, %136 : vector<16x32xf32>
    %138 = math.tanh %137 : vector<16x32xf32>
    %139 = arith.mulf %133, %138 : vector<16x32xf32>
    %140 = arith.truncf %139 : vector<16x32xf32> to vector<16x32xbf16>
    %cst_53 = arith.constant dense<0.000000e+00> : vector<16x128xf32>
    %141 = tpu.matmul %140, %14, %cst_53 {dimension_numbers = #tpu.dot_dimension_numbers<[1], [0], [0], [1], [0, 0, 1, 1], [], []>} : vector<16x32xbf16>, vector<32x128xbf16>, vector<16x128xf32> -> vector<16x128xf32>
    %142 = arith.addf %117, %141 : vector<16x128xf32>
    %143 = arith.addf %142, %18 : vector<16x128xf32>
    %144 = arith.mulf %143, %23 : vector<16x128xf32>
    %145 = math.tanh %144 : vector<16x128xf32>
    %146 = vector.extract_strided_slice %145 {offsets = [0, 0], sizes = [16, 96], strides = [1, 1]} : vector<16x128xf32> to vector<16x96xf32>
    %cst_54 = arith.constant 5.000000e-01 : f32
    %147 = vector.broadcast %cst_54 : f32 to vector<16x96xf32>
    %148 = arith.mulf %147, %146 : vector<16x96xf32>
    %cst_55 = arith.constant 5.000000e-01 : f32
    %149 = vector.broadcast %cst_55 : f32 to vector<16x96xf32>
    %150 = arith.addf %148, %149 : vector<16x96xf32>
    %151 = vector.extract_strided_slice %150 {offsets = [0, 0], sizes = [16, 32], strides = [1, 1]} : vector<16x96xf32> to vector<16x32xf32>
    %152 = vector.extract_strided_slice %150 {offsets = [0, 32], sizes = [16, 32], strides = [1, 1]} : vector<16x96xf32> to vector<16x32xf32>
    %153 = vector.extract_strided_slice %150 {offsets = [0, 64], sizes = [16, 32], strides = [1, 1]} : vector<16x96xf32> to vector<16x32xf32>
    %154 = vector.extract_strided_slice %145 {offsets = [0, 96], sizes = [16, 32], strides = [1, 1]} : vector<16x128xf32> to vector<16x32xf32>
    %155 = arith.mulf %152, %113 : vector<16x32xf32>
    %156 = arith.mulf %151, %154 : vector<16x32xf32>
    %157 = arith.addf %155, %156 : vector<16x32xf32>
    %158 = math.tanh %157 : vector<16x32xf32>
    %159 = arith.mulf %153, %158 : vector<16x32xf32>
    %c3_i32 = arith.constant 3 : i32
    %160 = arith.truncf %159 : vector<16x32xf32> to vector<16x32xbf16>
    %cst_56 = arith.constant dense<0.000000e+00> : vector<16x128xf32>
    %161 = tpu.matmul %160, %15, %cst_56 {dimension_numbers = #tpu.dot_dimension_numbers<[1], [0], [0], [1], [0, 0, 1, 1], [], []>} : vector<16x32xbf16>, vector<32x128xbf16>, vector<16x128xf32> -> vector<16x128xf32>
    %162 = arith.index_cast %c3_i32 : i32 to index
    %c0_57 = arith.constant 0 : index
    %c0_58 = arith.constant 0 : index
    %163 = vector.load %arg15[%162, %c0_57, %c0_58] : memref<8x16x128xf32, #tpu.memory_space<vmem>>, vector<1x16x128xf32>
    %164 = vector.shape_cast %163 : vector<1x16x128xf32> to vector<16x128xf32>
    %165 = arith.truncf %139 : vector<16x32xf32> to vector<16x32xbf16>
    %cst_59 = arith.constant dense<0.000000e+00> : vector<16x128xf32>
    %166 = tpu.matmul %165, %13, %cst_59 {dimension_numbers = #tpu.dot_dimension_numbers<[1], [0], [0], [1], [0, 0, 1, 1], [], []>} : vector<16x32xbf16>, vector<32x128xbf16>, vector<16x128xf32> -> vector<16x128xf32>
    %167 = arith.addf %164, %166 : vector<16x128xf32>
    %168 = arith.mulf %167, %23 : vector<16x128xf32>
    %169 = math.tanh %168 : vector<16x128xf32>
    %170 = vector.extract_strided_slice %169 {offsets = [0, 0], sizes = [16, 96], strides = [1, 1]} : vector<16x128xf32> to vector<16x96xf32>
    %cst_60 = arith.constant 5.000000e-01 : f32
    %171 = vector.broadcast %cst_60 : f32 to vector<16x96xf32>
    %172 = arith.mulf %171, %170 : vector<16x96xf32>
    %cst_61 = arith.constant 5.000000e-01 : f32
    %173 = vector.broadcast %cst_61 : f32 to vector<16x96xf32>
    %174 = arith.addf %172, %173 : vector<16x96xf32>
    %175 = vector.extract_strided_slice %174 {offsets = [0, 0], sizes = [16, 32], strides = [1, 1]} : vector<16x96xf32> to vector<16x32xf32>
    %176 = vector.extract_strided_slice %174 {offsets = [0, 32], sizes = [16, 32], strides = [1, 1]} : vector<16x96xf32> to vector<16x32xf32>
    %177 = vector.extract_strided_slice %174 {offsets = [0, 64], sizes = [16, 32], strides = [1, 1]} : vector<16x96xf32> to vector<16x32xf32>
    %178 = vector.extract_strided_slice %169 {offsets = [0, 96], sizes = [16, 32], strides = [1, 1]} : vector<16x128xf32> to vector<16x32xf32>
    %179 = arith.mulf %176, %137 : vector<16x32xf32>
    %180 = arith.mulf %175, %178 : vector<16x32xf32>
    %181 = arith.addf %179, %180 : vector<16x32xf32>
    %182 = math.tanh %181 : vector<16x32xf32>
    %183 = arith.mulf %177, %182 : vector<16x32xf32>
    %184 = arith.truncf %183 : vector<16x32xf32> to vector<16x32xbf16>
    %cst_62 = arith.constant dense<0.000000e+00> : vector<16x128xf32>
    %185 = tpu.matmul %184, %14, %cst_62 {dimension_numbers = #tpu.dot_dimension_numbers<[1], [0], [0], [1], [0, 0, 1, 1], [], []>} : vector<16x32xbf16>, vector<32x128xbf16>, vector<16x128xf32> -> vector<16x128xf32>
    %186 = arith.addf %161, %185 : vector<16x128xf32>
    %187 = arith.addf %186, %18 : vector<16x128xf32>
    %188 = arith.mulf %187, %23 : vector<16x128xf32>
    %189 = math.tanh %188 : vector<16x128xf32>
    %190 = vector.extract_strided_slice %189 {offsets = [0, 0], sizes = [16, 96], strides = [1, 1]} : vector<16x128xf32> to vector<16x96xf32>
    %cst_63 = arith.constant 5.000000e-01 : f32
    %191 = vector.broadcast %cst_63 : f32 to vector<16x96xf32>
    %192 = arith.mulf %191, %190 : vector<16x96xf32>
    %cst_64 = arith.constant 5.000000e-01 : f32
    %193 = vector.broadcast %cst_64 : f32 to vector<16x96xf32>
    %194 = arith.addf %192, %193 : vector<16x96xf32>
    %195 = vector.extract_strided_slice %194 {offsets = [0, 0], sizes = [16, 32], strides = [1, 1]} : vector<16x96xf32> to vector<16x32xf32>
    %196 = vector.extract_strided_slice %194 {offsets = [0, 32], sizes = [16, 32], strides = [1, 1]} : vector<16x96xf32> to vector<16x32xf32>
    %197 = vector.extract_strided_slice %194 {offsets = [0, 64], sizes = [16, 32], strides = [1, 1]} : vector<16x96xf32> to vector<16x32xf32>
    %198 = vector.extract_strided_slice %189 {offsets = [0, 96], sizes = [16, 32], strides = [1, 1]} : vector<16x128xf32> to vector<16x32xf32>
    %199 = arith.mulf %196, %157 : vector<16x32xf32>
    %200 = arith.mulf %195, %198 : vector<16x32xf32>
    %201 = arith.addf %199, %200 : vector<16x32xf32>
    %202 = math.tanh %201 : vector<16x32xf32>
    %203 = arith.mulf %197, %202 : vector<16x32xf32>
    %c4_i32 = arith.constant 4 : i32
    %204 = arith.truncf %203 : vector<16x32xf32> to vector<16x32xbf16>
    %cst_65 = arith.constant dense<0.000000e+00> : vector<16x128xf32>
    %205 = tpu.matmul %204, %15, %cst_65 {dimension_numbers = #tpu.dot_dimension_numbers<[1], [0], [0], [1], [0, 0, 1, 1], [], []>} : vector<16x32xbf16>, vector<32x128xbf16>, vector<16x128xf32> -> vector<16x128xf32>
    %206 = arith.index_cast %c4_i32 : i32 to index
    %c0_66 = arith.constant 0 : index
    %c0_67 = arith.constant 0 : index
    %207 = vector.load %arg15[%206, %c0_66, %c0_67] : memref<8x16x128xf32, #tpu.memory_space<vmem>>, vector<1x16x128xf32>
    %208 = vector.shape_cast %207 : vector<1x16x128xf32> to vector<16x128xf32>
    %209 = arith.truncf %183 : vector<16x32xf32> to vector<16x32xbf16>
    %cst_68 = arith.constant dense<0.000000e+00> : vector<16x128xf32>
    %210 = tpu.matmul %209, %13, %cst_68 {dimension_numbers = #tpu.dot_dimension_numbers<[1], [0], [0], [1], [0, 0, 1, 1], [], []>} : vector<16x32xbf16>, vector<32x128xbf16>, vector<16x128xf32> -> vector<16x128xf32>
    %211 = arith.addf %208, %210 : vector<16x128xf32>
    %212 = arith.mulf %211, %23 : vector<16x128xf32>
    %213 = math.tanh %212 : vector<16x128xf32>
    %214 = vector.extract_strided_slice %213 {offsets = [0, 0], sizes = [16, 96], strides = [1, 1]} : vector<16x128xf32> to vector<16x96xf32>
    %cst_69 = arith.constant 5.000000e-01 : f32
    %215 = vector.broadcast %cst_69 : f32 to vector<16x96xf32>
    %216 = arith.mulf %215, %214 : vector<16x96xf32>
    %cst_70 = arith.constant 5.000000e-01 : f32
    %217 = vector.broadcast %cst_70 : f32 to vector<16x96xf32>
    %218 = arith.addf %216, %217 : vector<16x96xf32>
    %219 = vector.extract_strided_slice %218 {offsets = [0, 0], sizes = [16, 32], strides = [1, 1]} : vector<16x96xf32> to vector<16x32xf32>
    %220 = vector.extract_strided_slice %218 {offsets = [0, 32], sizes = [16, 32], strides = [1, 1]} : vector<16x96xf32> to vector<16x32xf32>
    %221 = vector.extract_strided_slice %218 {offsets = [0, 64], sizes = [16, 32], strides = [1, 1]} : vector<16x96xf32> to vector<16x32xf32>
    %222 = vector.extract_strided_slice %213 {offsets = [0, 96], sizes = [16, 32], strides = [1, 1]} : vector<16x128xf32> to vector<16x32xf32>
    %223 = arith.mulf %220, %181 : vector<16x32xf32>
    %224 = arith.mulf %219, %222 : vector<16x32xf32>
    %225 = arith.addf %223, %224 : vector<16x32xf32>
    %226 = math.tanh %225 : vector<16x32xf32>
    %227 = arith.mulf %221, %226 : vector<16x32xf32>
    %228 = arith.truncf %227 : vector<16x32xf32> to vector<16x32xbf16>
    %cst_71 = arith.constant dense<0.000000e+00> : vector<16x128xf32>
    %229 = tpu.matmul %228, %14, %cst_71 {dimension_numbers = #tpu.dot_dimension_numbers<[1], [0], [0], [1], [0, 0, 1, 1], [], []>} : vector<16x32xbf16>, vector<32x128xbf16>, vector<16x128xf32> -> vector<16x128xf32>
    %230 = arith.addf %205, %229 : vector<16x128xf32>
    %231 = arith.addf %230, %18 : vector<16x128xf32>
    %232 = arith.mulf %231, %23 : vector<16x128xf32>
    %233 = math.tanh %232 : vector<16x128xf32>
    %234 = vector.extract_strided_slice %233 {offsets = [0, 0], sizes = [16, 96], strides = [1, 1]} : vector<16x128xf32> to vector<16x96xf32>
    %cst_72 = arith.constant 5.000000e-01 : f32
    %235 = vector.broadcast %cst_72 : f32 to vector<16x96xf32>
    %236 = arith.mulf %235, %234 : vector<16x96xf32>
    %cst_73 = arith.constant 5.000000e-01 : f32
    %237 = vector.broadcast %cst_73 : f32 to vector<16x96xf32>
    %238 = arith.addf %236, %237 : vector<16x96xf32>
    %239 = vector.extract_strided_slice %238 {offsets = [0, 0], sizes = [16, 32], strides = [1, 1]} : vector<16x96xf32> to vector<16x32xf32>
    %240 = vector.extract_strided_slice %238 {offsets = [0, 32], sizes = [16, 32], strides = [1, 1]} : vector<16x96xf32> to vector<16x32xf32>
    %241 = vector.extract_strided_slice %238 {offsets = [0, 64], sizes = [16, 32], strides = [1, 1]} : vector<16x96xf32> to vector<16x32xf32>
    %242 = vector.extract_strided_slice %233 {offsets = [0, 96], sizes = [16, 32], strides = [1, 1]} : vector<16x128xf32> to vector<16x32xf32>
    %243 = arith.mulf %240, %201 : vector<16x32xf32>
    %244 = arith.mulf %239, %242 : vector<16x32xf32>
    %245 = arith.addf %243, %244 : vector<16x32xf32>
    %246 = math.tanh %245 : vector<16x32xf32>
    %247 = arith.mulf %241, %246 : vector<16x32xf32>
    %c5_i32 = arith.constant 5 : i32
    %248 = arith.truncf %247 : vector<16x32xf32> to vector<16x32xbf16>
    %cst_74 = arith.constant dense<0.000000e+00> : vector<16x128xf32>
    %249 = tpu.matmul %248, %15, %cst_74 {dimension_numbers = #tpu.dot_dimension_numbers<[1], [0], [0], [1], [0, 0, 1, 1], [], []>} : vector<16x32xbf16>, vector<32x128xbf16>, vector<16x128xf32> -> vector<16x128xf32>
    %250 = arith.index_cast %c5_i32 : i32 to index
    %c0_75 = arith.constant 0 : index
    %c0_76 = arith.constant 0 : index
    %251 = vector.load %arg15[%250, %c0_75, %c0_76] : memref<8x16x128xf32, #tpu.memory_space<vmem>>, vector<1x16x128xf32>
    %252 = vector.shape_cast %251 : vector<1x16x128xf32> to vector<16x128xf32>
    %253 = arith.truncf %227 : vector<16x32xf32> to vector<16x32xbf16>
    %cst_77 = arith.constant dense<0.000000e+00> : vector<16x128xf32>
    %254 = tpu.matmul %253, %13, %cst_77 {dimension_numbers = #tpu.dot_dimension_numbers<[1], [0], [0], [1], [0, 0, 1, 1], [], []>} : vector<16x32xbf16>, vector<32x128xbf16>, vector<16x128xf32> -> vector<16x128xf32>
    %255 = arith.addf %252, %254 : vector<16x128xf32>
    %256 = arith.mulf %255, %23 : vector<16x128xf32>
    %257 = math.tanh %256 : vector<16x128xf32>
    %258 = vector.extract_strided_slice %257 {offsets = [0, 0], sizes = [16, 96], strides = [1, 1]} : vector<16x128xf32> to vector<16x96xf32>
    %cst_78 = arith.constant 5.000000e-01 : f32
    %259 = vector.broadcast %cst_78 : f32 to vector<16x96xf32>
    %260 = arith.mulf %259, %258 : vector<16x96xf32>
    %cst_79 = arith.constant 5.000000e-01 : f32
    %261 = vector.broadcast %cst_79 : f32 to vector<16x96xf32>
    %262 = arith.addf %260, %261 : vector<16x96xf32>
    %263 = vector.extract_strided_slice %262 {offsets = [0, 0], sizes = [16, 32], strides = [1, 1]} : vector<16x96xf32> to vector<16x32xf32>
    %264 = vector.extract_strided_slice %262 {offsets = [0, 32], sizes = [16, 32], strides = [1, 1]} : vector<16x96xf32> to vector<16x32xf32>
    %265 = vector.extract_strided_slice %262 {offsets = [0, 64], sizes = [16, 32], strides = [1, 1]} : vector<16x96xf32> to vector<16x32xf32>
    %266 = vector.extract_strided_slice %257 {offsets = [0, 96], sizes = [16, 32], strides = [1, 1]} : vector<16x128xf32> to vector<16x32xf32>
    %267 = arith.mulf %264, %225 : vector<16x32xf32>
    %268 = arith.mulf %263, %266 : vector<16x32xf32>
    %269 = arith.addf %267, %268 : vector<16x32xf32>
    %270 = math.tanh %269 : vector<16x32xf32>
    %271 = arith.mulf %265, %270 : vector<16x32xf32>
    %272 = arith.truncf %271 : vector<16x32xf32> to vector<16x32xbf16>
    %cst_80 = arith.constant dense<0.000000e+00> : vector<16x128xf32>
    %273 = tpu.matmul %272, %14, %cst_80 {dimension_numbers = #tpu.dot_dimension_numbers<[1], [0], [0], [1], [0, 0, 1, 1], [], []>} : vector<16x32xbf16>, vector<32x128xbf16>, vector<16x128xf32> -> vector<16x128xf32>
    %274 = arith.addf %249, %273 : vector<16x128xf32>
    %275 = arith.addf %274, %18 : vector<16x128xf32>
    %276 = arith.mulf %275, %23 : vector<16x128xf32>
    %277 = math.tanh %276 : vector<16x128xf32>
    %278 = vector.extract_strided_slice %277 {offsets = [0, 0], sizes = [16, 96], strides = [1, 1]} : vector<16x128xf32> to vector<16x96xf32>
    %cst_81 = arith.constant 5.000000e-01 : f32
    %279 = vector.broadcast %cst_81 : f32 to vector<16x96xf32>
    %280 = arith.mulf %279, %278 : vector<16x96xf32>
    %cst_82 = arith.constant 5.000000e-01 : f32
    %281 = vector.broadcast %cst_82 : f32 to vector<16x96xf32>
    %282 = arith.addf %280, %281 : vector<16x96xf32>
    %283 = vector.extract_strided_slice %282 {offsets = [0, 0], sizes = [16, 32], strides = [1, 1]} : vector<16x96xf32> to vector<16x32xf32>
    %284 = vector.extract_strided_slice %282 {offsets = [0, 32], sizes = [16, 32], strides = [1, 1]} : vector<16x96xf32> to vector<16x32xf32>
    %285 = vector.extract_strided_slice %282 {offsets = [0, 64], sizes = [16, 32], strides = [1, 1]} : vector<16x96xf32> to vector<16x32xf32>
    %286 = vector.extract_strided_slice %277 {offsets = [0, 96], sizes = [16, 32], strides = [1, 1]} : vector<16x128xf32> to vector<16x32xf32>
    %287 = arith.mulf %284, %245 : vector<16x32xf32>
    %288 = arith.mulf %283, %286 : vector<16x32xf32>
    %289 = arith.addf %287, %288 : vector<16x32xf32>
    %290 = math.tanh %289 : vector<16x32xf32>
    %291 = arith.mulf %285, %290 : vector<16x32xf32>
    %c6_i32 = arith.constant 6 : i32
    %292 = arith.truncf %291 : vector<16x32xf32> to vector<16x32xbf16>
    %cst_83 = arith.constant dense<0.000000e+00> : vector<16x128xf32>
    %293 = tpu.matmul %292, %15, %cst_83 {dimension_numbers = #tpu.dot_dimension_numbers<[1], [0], [0], [1], [0, 0, 1, 1], [], []>} : vector<16x32xbf16>, vector<32x128xbf16>, vector<16x128xf32> -> vector<16x128xf32>
    %294 = arith.index_cast %c6_i32 : i32 to index
    %c0_84 = arith.constant 0 : index
    %c0_85 = arith.constant 0 : index
    %295 = vector.load %arg15[%294, %c0_84, %c0_85] : memref<8x16x128xf32, #tpu.memory_space<vmem>>, vector<1x16x128xf32>
    %296 = vector.shape_cast %295 : vector<1x16x128xf32> to vector<16x128xf32>
    %297 = arith.truncf %271 : vector<16x32xf32> to vector<16x32xbf16>
    %cst_86 = arith.constant dense<0.000000e+00> : vector<16x128xf32>
    %298 = tpu.matmul %297, %13, %cst_86 {dimension_numbers = #tpu.dot_dimension_numbers<[1], [0], [0], [1], [0, 0, 1, 1], [], []>} : vector<16x32xbf16>, vector<32x128xbf16>, vector<16x128xf32> -> vector<16x128xf32>
    %299 = arith.addf %296, %298 : vector<16x128xf32>
    %300 = arith.mulf %299, %23 : vector<16x128xf32>
    %301 = math.tanh %300 : vector<16x128xf32>
    %302 = vector.extract_strided_slice %301 {offsets = [0, 0], sizes = [16, 96], strides = [1, 1]} : vector<16x128xf32> to vector<16x96xf32>
    %cst_87 = arith.constant 5.000000e-01 : f32
    %303 = vector.broadcast %cst_87 : f32 to vector<16x96xf32>
    %304 = arith.mulf %303, %302 : vector<16x96xf32>
    %cst_88 = arith.constant 5.000000e-01 : f32
    %305 = vector.broadcast %cst_88 : f32 to vector<16x96xf32>
    %306 = arith.addf %304, %305 : vector<16x96xf32>
    %307 = vector.extract_strided_slice %306 {offsets = [0, 0], sizes = [16, 32], strides = [1, 1]} : vector<16x96xf32> to vector<16x32xf32>
    %308 = vector.extract_strided_slice %306 {offsets = [0, 32], sizes = [16, 32], strides = [1, 1]} : vector<16x96xf32> to vector<16x32xf32>
    %309 = vector.extract_strided_slice %306 {offsets = [0, 64], sizes = [16, 32], strides = [1, 1]} : vector<16x96xf32> to vector<16x32xf32>
    %310 = vector.extract_strided_slice %301 {offsets = [0, 96], sizes = [16, 32], strides = [1, 1]} : vector<16x128xf32> to vector<16x32xf32>
    %311 = arith.mulf %308, %269 : vector<16x32xf32>
    %312 = arith.mulf %307, %310 : vector<16x32xf32>
    %313 = arith.addf %311, %312 : vector<16x32xf32>
    %314 = math.tanh %313 : vector<16x32xf32>
    %315 = arith.mulf %309, %314 : vector<16x32xf32>
    %316 = arith.truncf %315 : vector<16x32xf32> to vector<16x32xbf16>
    %cst_89 = arith.constant dense<0.000000e+00> : vector<16x128xf32>
    %317 = tpu.matmul %316, %14, %cst_89 {dimension_numbers = #tpu.dot_dimension_numbers<[1], [0], [0], [1], [0, 0, 1, 1], [], []>} : vector<16x32xbf16>, vector<32x128xbf16>, vector<16x128xf32> -> vector<16x128xf32>
    %318 = arith.addf %293, %317 : vector<16x128xf32>
    %319 = arith.addf %318, %18 : vector<16x128xf32>
    %320 = arith.mulf %319, %23 : vector<16x128xf32>
    %321 = math.tanh %320 : vector<16x128xf32>
    %322 = vector.extract_strided_slice %321 {offsets = [0, 0], sizes = [16, 96], strides = [1, 1]} : vector<16x128xf32> to vector<16x96xf32>
    %cst_90 = arith.constant 5.000000e-01 : f32
    %323 = vector.broadcast %cst_90 : f32 to vector<16x96xf32>
    %324 = arith.mulf %323, %322 : vector<16x96xf32>
    %cst_91 = arith.constant 5.000000e-01 : f32
    %325 = vector.broadcast %cst_91 : f32 to vector<16x96xf32>
    %326 = arith.addf %324, %325 : vector<16x96xf32>
    %327 = vector.extract_strided_slice %326 {offsets = [0, 0], sizes = [16, 32], strides = [1, 1]} : vector<16x96xf32> to vector<16x32xf32>
    %328 = vector.extract_strided_slice %326 {offsets = [0, 32], sizes = [16, 32], strides = [1, 1]} : vector<16x96xf32> to vector<16x32xf32>
    %329 = vector.extract_strided_slice %326 {offsets = [0, 64], sizes = [16, 32], strides = [1, 1]} : vector<16x96xf32> to vector<16x32xf32>
    %330 = vector.extract_strided_slice %321 {offsets = [0, 96], sizes = [16, 32], strides = [1, 1]} : vector<16x128xf32> to vector<16x32xf32>
    %331 = arith.mulf %328, %289 : vector<16x32xf32>
    %332 = arith.mulf %327, %330 : vector<16x32xf32>
    %333 = arith.addf %331, %332 : vector<16x32xf32>
    %334 = math.tanh %333 : vector<16x32xf32>
    %335 = arith.mulf %329, %334 : vector<16x32xf32>
    %c7_i32 = arith.constant 7 : i32
    %336 = arith.truncf %335 : vector<16x32xf32> to vector<16x32xbf16>
    %cst_92 = arith.constant dense<0.000000e+00> : vector<16x128xf32>
    %337 = tpu.matmul %336, %15, %cst_92 {dimension_numbers = #tpu.dot_dimension_numbers<[1], [0], [0], [1], [0, 0, 1, 1], [], []>} : vector<16x32xbf16>, vector<32x128xbf16>, vector<16x128xf32> -> vector<16x128xf32>
    %338 = arith.index_cast %c7_i32 : i32 to index
    %c0_93 = arith.constant 0 : index
    %c0_94 = arith.constant 0 : index
    %339 = vector.load %arg15[%338, %c0_93, %c0_94] : memref<8x16x128xf32, #tpu.memory_space<vmem>>, vector<1x16x128xf32>
    %340 = vector.shape_cast %339 : vector<1x16x128xf32> to vector<16x128xf32>
    %341 = arith.truncf %315 : vector<16x32xf32> to vector<16x32xbf16>
    %cst_95 = arith.constant dense<0.000000e+00> : vector<16x128xf32>
    %342 = tpu.matmul %341, %13, %cst_95 {dimension_numbers = #tpu.dot_dimension_numbers<[1], [0], [0], [1], [0, 0, 1, 1], [], []>} : vector<16x32xbf16>, vector<32x128xbf16>, vector<16x128xf32> -> vector<16x128xf32>
    %343 = arith.addf %340, %342 : vector<16x128xf32>
    %344 = arith.mulf %343, %23 : vector<16x128xf32>
    %345 = math.tanh %344 : vector<16x128xf32>
    %346 = vector.extract_strided_slice %345 {offsets = [0, 0], sizes = [16, 96], strides = [1, 1]} : vector<16x128xf32> to vector<16x96xf32>
    %cst_96 = arith.constant 5.000000e-01 : f32
    %347 = vector.broadcast %cst_96 : f32 to vector<16x96xf32>
    %348 = arith.mulf %347, %346 : vector<16x96xf32>
    %cst_97 = arith.constant 5.000000e-01 : f32
    %349 = vector.broadcast %cst_97 : f32 to vector<16x96xf32>
    %350 = arith.addf %348, %349 : vector<16x96xf32>
    %351 = vector.extract_strided_slice %350 {offsets = [0, 0], sizes = [16, 32], strides = [1, 1]} : vector<16x96xf32> to vector<16x32xf32>
    %352 = vector.extract_strided_slice %350 {offsets = [0, 32], sizes = [16, 32], strides = [1, 1]} : vector<16x96xf32> to vector<16x32xf32>
    %353 = vector.extract_strided_slice %350 {offsets = [0, 64], sizes = [16, 32], strides = [1, 1]} : vector<16x96xf32> to vector<16x32xf32>
    %354 = vector.extract_strided_slice %345 {offsets = [0, 96], sizes = [16, 32], strides = [1, 1]} : vector<16x128xf32> to vector<16x32xf32>
    %355 = arith.mulf %352, %313 : vector<16x32xf32>
    %356 = arith.mulf %351, %354 : vector<16x32xf32>
    %357 = arith.addf %355, %356 : vector<16x32xf32>
    %358 = math.tanh %357 : vector<16x32xf32>
    %359 = arith.mulf %353, %358 : vector<16x32xf32>
    %360 = arith.truncf %359 : vector<16x32xf32> to vector<16x32xbf16>
    %cst_98 = arith.constant dense<0.000000e+00> : vector<16x128xf32>
    %361 = tpu.matmul %360, %14, %cst_98 {dimension_numbers = #tpu.dot_dimension_numbers<[1], [0], [0], [1], [0, 0, 1, 1], [], []>} : vector<16x32xbf16>, vector<32x128xbf16>, vector<16x128xf32> -> vector<16x128xf32>
    %362 = arith.addf %337, %361 : vector<16x128xf32>
    %363 = arith.addf %362, %18 : vector<16x128xf32>
    %364 = arith.mulf %363, %23 : vector<16x128xf32>
    %365 = math.tanh %364 : vector<16x128xf32>
    %366 = vector.extract_strided_slice %365 {offsets = [0, 0], sizes = [16, 96], strides = [1, 1]} : vector<16x128xf32> to vector<16x96xf32>
    %cst_99 = arith.constant 5.000000e-01 : f32
    %367 = vector.broadcast %cst_99 : f32 to vector<16x96xf32>
    %368 = arith.mulf %367, %366 : vector<16x96xf32>
    %cst_100 = arith.constant 5.000000e-01 : f32
    %369 = vector.broadcast %cst_100 : f32 to vector<16x96xf32>
    %370 = arith.addf %368, %369 : vector<16x96xf32>
    %371 = vector.extract_strided_slice %370 {offsets = [0, 0], sizes = [16, 32], strides = [1, 1]} : vector<16x96xf32> to vector<16x32xf32>
    %372 = vector.extract_strided_slice %370 {offsets = [0, 32], sizes = [16, 32], strides = [1, 1]} : vector<16x96xf32> to vector<16x32xf32>
    %373 = vector.extract_strided_slice %370 {offsets = [0, 64], sizes = [16, 32], strides = [1, 1]} : vector<16x96xf32> to vector<16x32xf32>
    %374 = vector.extract_strided_slice %365 {offsets = [0, 96], sizes = [16, 32], strides = [1, 1]} : vector<16x128xf32> to vector<16x32xf32>
    %375 = arith.mulf %372, %333 : vector<16x32xf32>
    %376 = arith.mulf %371, %374 : vector<16x32xf32>
    %377 = arith.addf %375, %376 : vector<16x32xf32>
    %378 = math.tanh %377 : vector<16x32xf32>
    %379 = arith.mulf %373, %378 : vector<16x32xf32>
    %c8_i32 = arith.constant 8 : i32
    %c0_101 = arith.constant 0 : index
    %c0_102 = arith.constant 0 : index
    %380 = vector.load %arg11[%c0_101, %c0_102] : memref<16x32xf32, #tpu.memory_space<vmem>>, vector<16x32xf32>
    tpu.vector_store %arg11[%c0_101, %c0_102], %359 {strides = array<i32>} : memref<16x32xf32, #tpu.memory_space<vmem>>, vector<16x32xf32>,
    %c0_103 = arith.constant 0 : index
    %c0_104 = arith.constant 0 : index
    %381 = vector.load %arg12[%c0_103, %c0_104] : memref<16x32xf32, #tpu.memory_space<vmem>>, vector<16x32xf32>
    tpu.vector_store %arg12[%c0_103, %c0_104], %357 {strides = array<i32>} : memref<16x32xf32, #tpu.memory_space<vmem>>, vector<16x32xf32>,
    %c0_105 = arith.constant 0 : index
    %c0_106 = arith.constant 0 : index
    %382 = vector.load %arg13[%c0_105, %c0_106] : memref<16x32xf32, #tpu.memory_space<vmem>>, vector<16x32xf32>
    tpu.vector_store %arg13[%c0_105, %c0_106], %379 {strides = array<i32>} : memref<16x32xf32, #tpu.memory_space<vmem>>, vector<16x32xf32>,
    %c0_107 = arith.constant 0 : index
    %c0_108 = arith.constant 0 : index
    %383 = vector.load %arg14[%c0_107, %c0_108] : memref<16x32xf32, #tpu.memory_space<vmem>>, vector<16x32xf32>
    tpu.vector_store %arg14[%c0_107, %c0_108], %377 {strides = array<i32>} : memref<16x32xf32, #tpu.memory_space<vmem>>, vector<16x32xf32>,
    %c0_i32_109 = arith.constant 0 : i32
    %384 = arith.cmpi eq, %arg0, %c0_i32_109 : i32
    %385 = arith.extui %384 : i1 to i32
    %c0_i32_110 = arith.constant 0 : i32
    %386 = arith.cmpi ne, %385, %c0_i32_110 : i32
    scf.if %386 {
      %c0_111 = arith.constant 0 : index
      %c0_112 = arith.constant 0 : index
      %387 = vector.load %arg8[%c0_111, %c0_112] : memref<1x32xf32, #tpu.memory_space<vmem>>, vector<1x32xf32>
      %388 = vector.broadcast %387 : vector<1x32xf32> to vector<16x32xf32>
      %389 = arith.mulf %379, %388 : vector<16x32xf32>
      %cst_113 = arith.constant dense<0.000000e+00> : vector<16xf32>
      %390 = vector.multi_reduction <add>, %389, %cst_113 [1] : vector<16x32xf32> to vector<16xf32>
      %391 = vector.shape_cast %390 : vector<16xf32> to vector<16x1xf32>
      %c0_114 = arith.constant 0 : index
      %c0_115 = arith.constant 0 : index
      %392 = vector.load %arg9[%c0_114, %c0_115] : memref<1x1xf32, #tpu.memory_space<vmem>>, vector<1x1xf32>
      %393 = vector.broadcast %392 : vector<1x1xf32> to vector<16x1xf32>
      %394 = arith.addf %391, %393 : vector<16x1xf32>
      %395 = arith.negf %394 : vector<16x1xf32>
      %396 = math.exp %395 : vector<16x1xf32>
      %cst_116 = arith.constant 1.000000e+00 : f32
      %397 = vector.broadcast %cst_116 : f32 to vector<16x1xf32>
      %398 = arith.addf %397, %396 : vector<16x1xf32>
      %399 = arith.divf %397, %398 : vector<16x1xf32>
      %c0_117 = arith.constant 0 : index
      %c0_118 = arith.constant 0 : index
      %400 = vector.load %arg10[%c0_117, %c0_118] : memref<16x1xf32, #tpu.memory_space<vmem>>, vector<16x1xf32>
      tpu.vector_store %arg10[%c0_117, %c0_118], %399 {strides = array<i32>} : memref<16x1xf32, #tpu.memory_space<vmem>>, vector<16x1xf32>,
    } else {
    }
    return
  }
  func.func @transform_0(%arg0: i32) -> (i32, i32, i32) {
    %c0_i32 = arith.constant 0 : i32
    %c0_i32_0 = arith.constant 0 : i32
    %c0_i32_1 = arith.constant 0 : i32
    return %arg0, %c0_i32, %c0_i32_0 : i32, i32, i32
  }
  func.func @transform_1(%arg0: i32) -> (i32, i32) {
    %c0_i32 = arith.constant 0 : i32
    %c0_i32_0 = arith.constant 0 : i32
    %c0_i32_1 = arith.constant 0 : i32
    return %c0_i32, %c0_i32_0 : i32, i32
  }
  func.func @transform_2(%arg0: i32) -> (i32, i32) {
    %c0_i32 = arith.constant 0 : i32
    %c0_i32_0 = arith.constant 0 : i32
    %c0_i32_1 = arith.constant 0 : i32
    return %c0_i32, %c0_i32_0 : i32, i32
  }
  func.func @transform_3(%arg0: i32) -> (i32, i32) {
    %c0_i32 = arith.constant 0 : i32
    %c0_i32_0 = arith.constant 0 : i32
    %c0_i32_1 = arith.constant 0 : i32
    return %c0_i32, %c0_i32_0 : i32, i32
  }
  func.func @transform_4(%arg0: i32) -> (i32, i32) {
    %c0_i32 = arith.constant 0 : i32
    %c0_i32_0 = arith.constant 0 : i32
    %c0_i32_1 = arith.constant 0 : i32
    return %c0_i32, %c0_i32_0 : i32, i32
  }
  func.func @transform_5(%arg0: i32) -> (i32, i32) {
    %c0_i32 = arith.constant 0 : i32
    %c0_i32_0 = arith.constant 0 : i32
    %c0_i32_1 = arith.constant 0 : i32
    return %c0_i32, %c0_i32_0 : i32, i32
  }
  func.func @transform_6(%arg0: i32) -> (i32, i32) {
    %c0_i32 = arith.constant 0 : i32
    %c0_i32_0 = arith.constant 0 : i32
    %c0_i32_1 = arith.constant 0 : i32
    return %c0_i32, %c0_i32_0 : i32, i32
  }
  func.func @transform_7(%arg0: i32) -> (i32, i32) {
    %c0_i32 = arith.constant 0 : i32
    %c0_i32_0 = arith.constant 0 : i32
    %c0_i32_1 = arith.constant 0 : i32
    return %c0_i32, %c0_i32_0 : i32, i32
  }
  func.func @transform_8(%arg0: i32) -> (i32, i32) {
    %c0_i32 = arith.constant 0 : i32
    %c0_i32_0 = arith.constant 0 : i32
    %c0_i32_1 = arith.constant 0 : i32
    return %c0_i32, %c0_i32_0 : i32, i32
  }
  func.func @transform_9(%arg0: i32) -> (i32, i32) {
    %c0_i32 = arith.constant 0 : i32
    %c0_i32_0 = arith.constant 0 : i32
    %c0_i32_1 = arith.constant 0 : i32
    return %c0_i32, %c0_i32_0 : i32, i32
  }
}

module attributes {stable_mosaic.version = 11 : i64} {
  func.func @_lstm_kernel(%arg0: i32, %arg1: memref<8x16x16xbf16, #tpu.memory_space<vmem>>, %arg2: memref<16x128xbf16, #tpu.memory_space<vmem>>, %arg3: memref<32x128xbf16, #tpu.memory_space<vmem>>, %arg4: memref<1x128xf32, #tpu.memory_space<vmem>>, %arg5: memref<32x128xbf16, #tpu.memory_space<vmem>>, %arg6: memref<32x128xbf16, #tpu.memory_space<vmem>>, %arg7: memref<1x128xf32, #tpu.memory_space<vmem>>, %arg8: memref<1x32xf32, #tpu.memory_space<vmem>>, %arg9: memref<1x1xf32, #tpu.memory_space<vmem>>, %arg10: memref<16x1xf32, #tpu.memory_space<vmem>>, %arg11: memref<16x32xf32, #tpu.memory_space<vmem>>, %arg12: memref<16x32xf32, #tpu.memory_space<vmem>>, %arg13: memref<16x32xf32, #tpu.memory_space<vmem>>, %arg14: memref<16x32xf32, #tpu.memory_space<vmem>>, %arg15: memref<8x16x128xf32, #tpu.memory_space<vmem>>) attributes {dimension_semantics = [#tpu.dimension_semantics<arbitrary>], iteration_bounds = array<i64: 1>, scalar_prefetch = 0 : i64, scratch_operands = 5 : i64, tpu.core_type = #tpu.core_type<tc>, window_params = [{transform_indices = @transform_0, window_bounds = array<i64: 8, 16, 16>}, {pipeline_mode = #tpu.pipeline_mode<synchronous>, transform_indices = @transform_1, window_bounds = array<i64: 16, 128>}, {pipeline_mode = #tpu.pipeline_mode<synchronous>, transform_indices = @transform_2, window_bounds = array<i64: 32, 128>}, {pipeline_mode = #tpu.pipeline_mode<synchronous>, transform_indices = @transform_3, window_bounds = array<i64: 1, 128>}, {pipeline_mode = #tpu.pipeline_mode<synchronous>, transform_indices = @transform_4, window_bounds = array<i64: 32, 128>}, {pipeline_mode = #tpu.pipeline_mode<synchronous>, transform_indices = @transform_5, window_bounds = array<i64: 32, 128>}, {pipeline_mode = #tpu.pipeline_mode<synchronous>, transform_indices = @transform_6, window_bounds = array<i64: 1, 128>}, {pipeline_mode = #tpu.pipeline_mode<synchronous>, transform_indices = @transform_7, window_bounds = array<i64: 1, 32>}, {pipeline_mode = #tpu.pipeline_mode<synchronous>, transform_indices = @transform_8, window_bounds = array<i64: 1, 1>}, {pipeline_mode = #tpu.pipeline_mode<synchronous>, transform_indices = @transform_9, window_bounds = array<i64: 16, 1>}]} {
    %c0_i32 = arith.constant 0 : i32
    %0 = arith.cmpi eq, %arg0, %c0_i32 : i32
    %1 = arith.extui %0 : i1 to i32
    %c0_i32_0 = arith.constant 0 : i32
    %2 = arith.cmpi ne, %1, %c0_i32_0 : i32
    scf.if %2 {
      %cst_111 = arith.constant 0.000000e+00 : f32
      %387 = vector.broadcast %cst_111 : f32 to vector<16x32xf32>
      %c0_112 = arith.constant 0 : index
      %c0_113 = arith.constant 0 : index
      %388 = vector.load %arg11[%c0_112, %c0_113] : memref<16x32xf32, #tpu.memory_space<vmem>>, vector<16x32xf32>
      tpu.vector_store %arg11[%c0_112, %c0_113], %387 {strides = array<i32>} : memref<16x32xf32, #tpu.memory_space<vmem>>, vector<16x32xf32>,
      %cst_114 = arith.constant 0.000000e+00 : f32
      %389 = vector.broadcast %cst_114 : f32 to vector<16x32xf32>
      %c0_115 = arith.constant 0 : index
      %c0_116 = arith.constant 0 : index
      %390 = vector.load %arg12[%c0_115, %c0_116] : memref<16x32xf32, #tpu.memory_space<vmem>>, vector<16x32xf32>
      tpu.vector_store %arg12[%c0_115, %c0_116], %389 {strides = array<i32>} : memref<16x32xf32, #tpu.memory_space<vmem>>, vector<16x32xf32>,
      %cst_117 = arith.constant 0.000000e+00 : f32
      %391 = vector.broadcast %cst_117 : f32 to vector<16x32xf32>
      %c0_118 = arith.constant 0 : index
      %c0_119 = arith.constant 0 : index
      %392 = vector.load %arg13[%c0_118, %c0_119] : memref<16x32xf32, #tpu.memory_space<vmem>>, vector<16x32xf32>
      tpu.vector_store %arg13[%c0_118, %c0_119], %391 {strides = array<i32>} : memref<16x32xf32, #tpu.memory_space<vmem>>, vector<16x32xf32>,
      %cst_120 = arith.constant 0.000000e+00 : f32
      %393 = vector.broadcast %cst_120 : f32 to vector<16x32xf32>
      %c0_121 = arith.constant 0 : index
      %c0_122 = arith.constant 0 : index
      %394 = vector.load %arg14[%c0_121, %c0_122] : memref<16x32xf32, #tpu.memory_space<vmem>>, vector<16x32xf32>
      tpu.vector_store %arg14[%c0_121, %c0_122], %393 {strides = array<i32>} : memref<16x32xf32, #tpu.memory_space<vmem>>, vector<16x32xf32>,
    } else {
    }
    %c0 = arith.constant 0 : index
    %c0_1 = arith.constant 0 : index
    %c0_2 = arith.constant 0 : index
    %3 = vector.load %arg1[%c0, %c0_1, %c0_2] : memref<8x16x16xbf16, #tpu.memory_space<vmem>>, vector<8x16x16xbf16>
    %4 = vector.shape_cast %3 : vector<8x16x16xbf16> to vector<128x16xbf16>
    %c0_3 = arith.constant 0 : index
    %c0_4 = arith.constant 0 : index
    %5 = vector.load %arg2[%c0_3, %c0_4] : memref<16x128xbf16, #tpu.memory_space<vmem>>, vector<16x128xbf16>
    %cst = arith.constant dense<0.000000e+00> : vector<128x128xf32>
    %6 = tpu.matmul %4, %5, %cst {dimension_numbers = #tpu.dot_dimension_numbers<[1], [0], [0], [1], [0, 0, 1, 1], [], []>} : vector<128x16xbf16>, vector<16x128xbf16>, vector<128x128xf32> -> vector<128x128xf32>
    %7 = vector.shape_cast %6 : vector<128x128xf32> to vector<8x16x128xf32>
    %c0_5 = arith.constant 0 : index
    %c0_6 = arith.constant 0 : index
    %8 = vector.load %arg4[%c0_5, %c0_6] : memref<1x128xf32, #tpu.memory_space<vmem>>, vector<1x128xf32>
    %9 = vector.shape_cast %8 : vector<1x128xf32> to vector<1x1x128xf32>
    %10 = vector.broadcast %9 : vector<1x1x128xf32> to vector<8x16x128xf32>
    %11 = arith.addf %7, %10 : vector<8x16x128xf32>
    %c0_7 = arith.constant 0 : index
    %c0_8 = arith.constant 0 : index
    %c0_9 = arith.constant 0 : index
    %12 = vector.load %arg15[%c0_7, %c0_8, %c0_9] : memref<8x16x128xf32, #tpu.memory_space<vmem>>, vector<8x16x128xf32>
    tpu.vector_store %arg15[%c0_7, %c0_8, %c0_9], %11 {strides = array<i32>} : memref<8x16x128xf32, #tpu.memory_space<vmem>>, vector<8x16x128xf32>,
    %c0_10 = arith.constant 0 : index
    %c0_11 = arith.constant 0 : index
    %13 = vector.load %arg3[%c0_10, %c0_11] : memref<32x128xbf16, #tpu.memory_space<vmem>>, vector<32x128xbf16>
    %c0_12 = arith.constant 0 : index
    %c0_13 = arith.constant 0 : index
    %14 = vector.load %arg5[%c0_12, %c0_13] : memref<32x128xbf16, #tpu.memory_space<vmem>>, vector<32x128xbf16>
    %c0_14 = arith.constant 0 : index
    %c0_15 = arith.constant 0 : index
    %15 = vector.load %arg6[%c0_14, %c0_15] : memref<32x128xbf16, #tpu.memory_space<vmem>>, vector<32x128xbf16>
    %c0_16 = arith.constant 0 : index
    %c0_17 = arith.constant 0 : index
    %16 = vector.load %arg7[%c0_16, %c0_17] : memref<1x128xf32, #tpu.memory_space<vmem>>, vector<1x128xf32>
    %17 = vector.shape_cast %16 : vector<1x128xf32> to vector<1x128xf32>
    %18 = vector.broadcast %17 : vector<1x128xf32> to vector<16x128xf32>
    %cst_18 = arith.constant 5.000000e-01 : f32
    %19 = vector.broadcast %cst_18 : f32 to vector<1x96xf32>
    %cst_19 = arith.constant 1.000000e+00 : f32
    %20 = vector.broadcast %cst_19 : f32 to vector<1x32xf32>
    %21 = tpu.concatenate %19, %20 in 1 : vector<1x96xf32>, vector<1x32xf32> -> vector<1x128xf32>
    %22 = vector.shape_cast %21 : vector<1x128xf32> to vector<1x128xf32>
    %23 = vector.broadcast %22 : vector<1x128xf32> to vector<16x128xf32>
    %c0_20 = arith.constant 0 : index
    %c0_21 = arith.constant 0 : index
    %24 = vector.load %arg11[%c0_20, %c0_21] : memref<16x32xf32, #tpu.memory_space<vmem>>, vector<16x32xf32>
    %c0_22 = arith.constant 0 : index
    %c0_23 = arith.constant 0 : index
    %25 = vector.load %arg12[%c0_22, %c0_23] : memref<16x32xf32, #tpu.memory_space<vmem>>, vector<16x32xf32>
    %c0_24 = arith.constant 0 : index
    %c0_25 = arith.constant 0 : index
    %26 = vector.load %arg13[%c0_24, %c0_25] : memref<16x32xf32, #tpu.memory_space<vmem>>, vector<16x32xf32>
    %c0_26 = arith.constant 0 : index
    %c0_27 = arith.constant 0 : index
    %27 = vector.load %arg14[%c0_26, %c0_27] : memref<16x32xf32, #tpu.memory_space<vmem>>, vector<16x32xf32>
    %c0_i32_28 = arith.constant 0 : i32
    %28 = arith.truncf %26 : vector<16x32xf32> to vector<16x32xbf16>
    %cst_29 = arith.constant dense<0.000000e+00> : vector<16x128xf32>
    %29 = tpu.matmul %28, %15, %cst_29 {dimension_numbers = #tpu.dot_dimension_numbers<[1], [0], [0], [1], [0, 0, 1, 1], [], []>} : vector<16x32xbf16>, vector<32x128xbf16>, vector<16x128xf32> -> vector<16x128xf32>
    %30 = arith.index_cast %c0_i32_28 : i32 to index
    %c0_30 = arith.constant 0 : index
    %c0_31 = arith.constant 0 : index
    %31 = vector.load %arg15[%30, %c0_30, %c0_31] : memref<8x16x128xf32, #tpu.memory_space<vmem>>, vector<1x16x128xf32>
    %32 = vector.shape_cast %31 : vector<1x16x128xf32> to vector<16x128xf32>
    %33 = arith.truncf %24 : vector<16x32xf32> to vector<16x32xbf16>
    %cst_32 = arith.constant dense<0.000000e+00> : vector<16x128xf32>
    %34 = tpu.matmul %33, %13, %cst_32 {dimension_numbers = #tpu.dot_dimension_numbers<[1], [0], [0], [1], [0, 0, 1, 1], [], []>} : vector<16x32xbf16>, vector<32x128xbf16>, vector<16x128xf32> -> vector<16x128xf32>
    %35 = arith.addf %32, %34 : vector<16x128xf32>
    %36 = arith.mulf %35, %23 : vector<16x128xf32>
    %37 = math.tanh %36 : vector<16x128xf32>
    %38 = vector.extract_strided_slice %37 {offsets = [0, 0], sizes = [16, 96], strides = [1, 1]} : vector<16x128xf32> to vector<16x96xf32>
    %cst_33 = arith.constant 5.000000e-01 : f32
    %39 = vector.broadcast %cst_33 : f32 to vector<16x96xf32>
    %40 = arith.mulf %39, %38 : vector<16x96xf32>
    %cst_34 = arith.constant 5.000000e-01 : f32
    %41 = vector.broadcast %cst_34 : f32 to vector<16x96xf32>
    %42 = arith.addf %40, %41 : vector<16x96xf32>
    %43 = vector.extract_strided_slice %42 {offsets = [0, 0], sizes = [16, 32], strides = [1, 1]} : vector<16x96xf32> to vector<16x32xf32>
    %44 = vector.extract_strided_slice %42 {offsets = [0, 32], sizes = [16, 32], strides = [1, 1]} : vector<16x96xf32> to vector<16x32xf32>
    %45 = vector.extract_strided_slice %42 {offsets = [0, 64], sizes = [16, 32], strides = [1, 1]} : vector<16x96xf32> to vector<16x32xf32>
    %46 = vector.extract_strided_slice %37 {offsets = [0, 96], sizes = [16, 32], strides = [1, 1]} : vector<16x128xf32> to vector<16x32xf32>
    %47 = arith.mulf %44, %25 : vector<16x32xf32>
    %48 = arith.mulf %43, %46 : vector<16x32xf32>
    %49 = arith.addf %47, %48 : vector<16x32xf32>
    %50 = math.tanh %49 : vector<16x32xf32>
    %51 = arith.mulf %45, %50 : vector<16x32xf32>
    %52 = arith.truncf %51 : vector<16x32xf32> to vector<16x32xbf16>
    %cst_35 = arith.constant dense<0.000000e+00> : vector<16x128xf32>
    %53 = tpu.matmul %52, %14, %cst_35 {dimension_numbers = #tpu.dot_dimension_numbers<[1], [0], [0], [1], [0, 0, 1, 1], [], []>} : vector<16x32xbf16>, vector<32x128xbf16>, vector<16x128xf32> -> vector<16x128xf32>
    %54 = arith.addf %29, %53 : vector<16x128xf32>
    %55 = arith.addf %54, %18 : vector<16x128xf32>
    %56 = arith.mulf %55, %23 : vector<16x128xf32>
    %57 = math.tanh %56 : vector<16x128xf32>
    %58 = vector.extract_strided_slice %57 {offsets = [0, 0], sizes = [16, 96], strides = [1, 1]} : vector<16x128xf32> to vector<16x96xf32>
    %cst_36 = arith.constant 5.000000e-01 : f32
    %59 = vector.broadcast %cst_36 : f32 to vector<16x96xf32>
    %60 = arith.mulf %59, %58 : vector<16x96xf32>
    %cst_37 = arith.constant 5.000000e-01 : f32
    %61 = vector.broadcast %cst_37 : f32 to vector<16x96xf32>
    %62 = arith.addf %60, %61 : vector<16x96xf32>
    %63 = vector.extract_strided_slice %62 {offsets = [0, 0], sizes = [16, 32], strides = [1, 1]} : vector<16x96xf32> to vector<16x32xf32>
    %64 = vector.extract_strided_slice %62 {offsets = [0, 32], sizes = [16, 32], strides = [1, 1]} : vector<16x96xf32> to vector<16x32xf32>
    %65 = vector.extract_strided_slice %62 {offsets = [0, 64], sizes = [16, 32], strides = [1, 1]} : vector<16x96xf32> to vector<16x32xf32>
    %66 = vector.extract_strided_slice %57 {offsets = [0, 96], sizes = [16, 32], strides = [1, 1]} : vector<16x128xf32> to vector<16x32xf32>
    %67 = arith.mulf %64, %27 : vector<16x32xf32>
    %68 = arith.mulf %63, %66 : vector<16x32xf32>
    %69 = arith.addf %67, %68 : vector<16x32xf32>
    %70 = math.tanh %69 : vector<16x32xf32>
    %71 = arith.mulf %65, %70 : vector<16x32xf32>
    %c1_i32 = arith.constant 1 : i32
    %72 = arith.truncf %71 : vector<16x32xf32> to vector<16x32xbf16>
    %cst_38 = arith.constant dense<0.000000e+00> : vector<16x128xf32>
    %73 = tpu.matmul %72, %15, %cst_38 {dimension_numbers = #tpu.dot_dimension_numbers<[1], [0], [0], [1], [0, 0, 1, 1], [], []>} : vector<16x32xbf16>, vector<32x128xbf16>, vector<16x128xf32> -> vector<16x128xf32>
    %74 = arith.index_cast %c1_i32 : i32 to index
    %c0_39 = arith.constant 0 : index
    %c0_40 = arith.constant 0 : index
    %75 = vector.load %arg15[%74, %c0_39, %c0_40] : memref<8x16x128xf32, #tpu.memory_space<vmem>>, vector<1x16x128xf32>
    %76 = vector.shape_cast %75 : vector<1x16x128xf32> to vector<16x128xf32>
    %77 = arith.truncf %51 : vector<16x32xf32> to vector<16x32xbf16>
    %cst_41 = arith.constant dense<0.000000e+00> : vector<16x128xf32>
    %78 = tpu.matmul %77, %13, %cst_41 {dimension_numbers = #tpu.dot_dimension_numbers<[1], [0], [0], [1], [0, 0, 1, 1], [], []>} : vector<16x32xbf16>, vector<32x128xbf16>, vector<16x128xf32> -> vector<16x128xf32>
    %79 = arith.addf %76, %78 : vector<16x128xf32>
    %80 = arith.mulf %79, %23 : vector<16x128xf32>
    %81 = math.tanh %80 : vector<16x128xf32>
    %82 = vector.extract_strided_slice %81 {offsets = [0, 0], sizes = [16, 96], strides = [1, 1]} : vector<16x128xf32> to vector<16x96xf32>
    %cst_42 = arith.constant 5.000000e-01 : f32
    %83 = vector.broadcast %cst_42 : f32 to vector<16x96xf32>
    %84 = arith.mulf %83, %82 : vector<16x96xf32>
    %cst_43 = arith.constant 5.000000e-01 : f32
    %85 = vector.broadcast %cst_43 : f32 to vector<16x96xf32>
    %86 = arith.addf %84, %85 : vector<16x96xf32>
    %87 = vector.extract_strided_slice %86 {offsets = [0, 0], sizes = [16, 32], strides = [1, 1]} : vector<16x96xf32> to vector<16x32xf32>
    %88 = vector.extract_strided_slice %86 {offsets = [0, 32], sizes = [16, 32], strides = [1, 1]} : vector<16x96xf32> to vector<16x32xf32>
    %89 = vector.extract_strided_slice %86 {offsets = [0, 64], sizes = [16, 32], strides = [1, 1]} : vector<16x96xf32> to vector<16x32xf32>
    %90 = vector.extract_strided_slice %81 {offsets = [0, 96], sizes = [16, 32], strides = [1, 1]} : vector<16x128xf32> to vector<16x32xf32>
    %91 = arith.mulf %88, %49 : vector<16x32xf32>
    %92 = arith.mulf %87, %90 : vector<16x32xf32>
    %93 = arith.addf %91, %92 : vector<16x32xf32>
    %94 = math.tanh %93 : vector<16x32xf32>
    %95 = arith.mulf %89, %94 : vector<16x32xf32>
    %96 = arith.truncf %95 : vector<16x32xf32> to vector<16x32xbf16>
    %cst_44 = arith.constant dense<0.000000e+00> : vector<16x128xf32>
    %97 = tpu.matmul %96, %14, %cst_44 {dimension_numbers = #tpu.dot_dimension_numbers<[1], [0], [0], [1], [0, 0, 1, 1], [], []>} : vector<16x32xbf16>, vector<32x128xbf16>, vector<16x128xf32> -> vector<16x128xf32>
    %98 = arith.addf %73, %97 : vector<16x128xf32>
    %99 = arith.addf %98, %18 : vector<16x128xf32>
    %100 = arith.mulf %99, %23 : vector<16x128xf32>
    %101 = math.tanh %100 : vector<16x128xf32>
    %102 = vector.extract_strided_slice %101 {offsets = [0, 0], sizes = [16, 96], strides = [1, 1]} : vector<16x128xf32> to vector<16x96xf32>
    %cst_45 = arith.constant 5.000000e-01 : f32
    %103 = vector.broadcast %cst_45 : f32 to vector<16x96xf32>
    %104 = arith.mulf %103, %102 : vector<16x96xf32>
    %cst_46 = arith.constant 5.000000e-01 : f32
    %105 = vector.broadcast %cst_46 : f32 to vector<16x96xf32>
    %106 = arith.addf %104, %105 : vector<16x96xf32>
    %107 = vector.extract_strided_slice %106 {offsets = [0, 0], sizes = [16, 32], strides = [1, 1]} : vector<16x96xf32> to vector<16x32xf32>
    %108 = vector.extract_strided_slice %106 {offsets = [0, 32], sizes = [16, 32], strides = [1, 1]} : vector<16x96xf32> to vector<16x32xf32>
    %109 = vector.extract_strided_slice %106 {offsets = [0, 64], sizes = [16, 32], strides = [1, 1]} : vector<16x96xf32> to vector<16x32xf32>
    %110 = vector.extract_strided_slice %101 {offsets = [0, 96], sizes = [16, 32], strides = [1, 1]} : vector<16x128xf32> to vector<16x32xf32>
    %111 = arith.mulf %108, %69 : vector<16x32xf32>
    %112 = arith.mulf %107, %110 : vector<16x32xf32>
    %113 = arith.addf %111, %112 : vector<16x32xf32>
    %114 = math.tanh %113 : vector<16x32xf32>
    %115 = arith.mulf %109, %114 : vector<16x32xf32>
    %c2_i32 = arith.constant 2 : i32
    %116 = arith.truncf %115 : vector<16x32xf32> to vector<16x32xbf16>
    %cst_47 = arith.constant dense<0.000000e+00> : vector<16x128xf32>
    %117 = tpu.matmul %116, %15, %cst_47 {dimension_numbers = #tpu.dot_dimension_numbers<[1], [0], [0], [1], [0, 0, 1, 1], [], []>} : vector<16x32xbf16>, vector<32x128xbf16>, vector<16x128xf32> -> vector<16x128xf32>
    %118 = arith.index_cast %c2_i32 : i32 to index
    %c0_48 = arith.constant 0 : index
    %c0_49 = arith.constant 0 : index
    %119 = vector.load %arg15[%118, %c0_48, %c0_49] : memref<8x16x128xf32, #tpu.memory_space<vmem>>, vector<1x16x128xf32>
    %120 = vector.shape_cast %119 : vector<1x16x128xf32> to vector<16x128xf32>
    %121 = arith.truncf %95 : vector<16x32xf32> to vector<16x32xbf16>
    %cst_50 = arith.constant dense<0.000000e+00> : vector<16x128xf32>
    %122 = tpu.matmul %121, %13, %cst_50 {dimension_numbers = #tpu.dot_dimension_numbers<[1], [0], [0], [1], [0, 0, 1, 1], [], []>} : vector<16x32xbf16>, vector<32x128xbf16>, vector<16x128xf32> -> vector<16x128xf32>
    %123 = arith.addf %120, %122 : vector<16x128xf32>
    %124 = arith.mulf %123, %23 : vector<16x128xf32>
    %125 = math.tanh %124 : vector<16x128xf32>
    %126 = vector.extract_strided_slice %125 {offsets = [0, 0], sizes = [16, 96], strides = [1, 1]} : vector<16x128xf32> to vector<16x96xf32>
    %cst_51 = arith.constant 5.000000e-01 : f32
    %127 = vector.broadcast %cst_51 : f32 to vector<16x96xf32>
    %128 = arith.mulf %127, %126 : vector<16x96xf32>
    %cst_52 = arith.constant 5.000000e-01 : f32
    %129 = vector.broadcast %cst_52 : f32 to vector<16x96xf32>
    %130 = arith.addf %128, %129 : vector<16x96xf32>
    %131 = vector.extract_strided_slice %130 {offsets = [0, 0], sizes = [16, 32], strides = [1, 1]} : vector<16x96xf32> to vector<16x32xf32>
    %132 = vector.extract_strided_slice %130 {offsets = [0, 32], sizes = [16, 32], strides = [1, 1]} : vector<16x96xf32> to vector<16x32xf32>
    %133 = vector.extract_strided_slice %130 {offsets = [0, 64], sizes = [16, 32], strides = [1, 1]} : vector<16x96xf32> to vector<16x32xf32>
    %134 = vector.extract_strided_slice %125 {offsets = [0, 96], sizes = [16, 32], strides = [1, 1]} : vector<16x128xf32> to vector<16x32xf32>
    %135 = arith.mulf %132, %93 : vector<16x32xf32>
    %136 = arith.mulf %131, %134 : vector<16x32xf32>
    %137 = arith.addf %135, %136 : vector<16x32xf32>
    %138 = math.tanh %137 : vector<16x32xf32>
    %139 = arith.mulf %133, %138 : vector<16x32xf32>
    %140 = arith.truncf %139 : vector<16x32xf32> to vector<16x32xbf16>
    %cst_53 = arith.constant dense<0.000000e+00> : vector<16x128xf32>
    %141 = tpu.matmul %140, %14, %cst_53 {dimension_numbers = #tpu.dot_dimension_numbers<[1], [0], [0], [1], [0, 0, 1, 1], [], []>} : vector<16x32xbf16>, vector<32x128xbf16>, vector<16x128xf32> -> vector<16x128xf32>
    %142 = arith.addf %117, %141 : vector<16x128xf32>
    %143 = arith.addf %142, %18 : vector<16x128xf32>
    %144 = arith.mulf %143, %23 : vector<16x128xf32>
    %145 = math.tanh %144 : vector<16x128xf32>
    %146 = vector.extract_strided_slice %145 {offsets = [0, 0], sizes = [16, 96], strides = [1, 1]} : vector<16x128xf32> to vector<16x96xf32>
    %cst_54 = arith.constant 5.000000e-01 : f32
    %147 = vector.broadcast %cst_54 : f32 to vector<16x96xf32>
    %148 = arith.mulf %147, %146 : vector<16x96xf32>
    %cst_55 = arith.constant 5.000000e-01 : f32
    %149 = vector.broadcast %cst_55 : f32 to vector<16x96xf32>
    %150 = arith.addf %148, %149 : vector<16x96xf32>
    %151 = vector.extract_strided_slice %150 {offsets = [0, 0], sizes = [16, 32], strides = [1, 1]} : vector<16x96xf32> to vector<16x32xf32>
    %152 = vector.extract_strided_slice %150 {offsets = [0, 32], sizes = [16, 32], strides = [1, 1]} : vector<16x96xf32> to vector<16x32xf32>
    %153 = vector.extract_strided_slice %150 {offsets = [0, 64], sizes = [16, 32], strides = [1, 1]} : vector<16x96xf32> to vector<16x32xf32>
    %154 = vector.extract_strided_slice %145 {offsets = [0, 96], sizes = [16, 32], strides = [1, 1]} : vector<16x128xf32> to vector<16x32xf32>
    %155 = arith.mulf %152, %113 : vector<16x32xf32>
    %156 = arith.mulf %151, %154 : vector<16x32xf32>
    %157 = arith.addf %155, %156 : vector<16x32xf32>
    %158 = math.tanh %157 : vector<16x32xf32>
    %159 = arith.mulf %153, %158 : vector<16x32xf32>
    %c3_i32 = arith.constant 3 : i32
    %160 = arith.truncf %159 : vector<16x32xf32> to vector<16x32xbf16>
    %cst_56 = arith.constant dense<0.000000e+00> : vector<16x128xf32>
    %161 = tpu.matmul %160, %15, %cst_56 {dimension_numbers = #tpu.dot_dimension_numbers<[1], [0], [0], [1], [0, 0, 1, 1], [], []>} : vector<16x32xbf16>, vector<32x128xbf16>, vector<16x128xf32> -> vector<16x128xf32>
    %162 = arith.index_cast %c3_i32 : i32 to index
    %c0_57 = arith.constant 0 : index
    %c0_58 = arith.constant 0 : index
    %163 = vector.load %arg15[%162, %c0_57, %c0_58] : memref<8x16x128xf32, #tpu.memory_space<vmem>>, vector<1x16x128xf32>
    %164 = vector.shape_cast %163 : vector<1x16x128xf32> to vector<16x128xf32>
    %165 = arith.truncf %139 : vector<16x32xf32> to vector<16x32xbf16>
    %cst_59 = arith.constant dense<0.000000e+00> : vector<16x128xf32>
    %166 = tpu.matmul %165, %13, %cst_59 {dimension_numbers = #tpu.dot_dimension_numbers<[1], [0], [0], [1], [0, 0, 1, 1], [], []>} : vector<16x32xbf16>, vector<32x128xbf16>, vector<16x128xf32> -> vector<16x128xf32>
    %167 = arith.addf %164, %166 : vector<16x128xf32>
    %168 = arith.mulf %167, %23 : vector<16x128xf32>
    %169 = math.tanh %168 : vector<16x128xf32>
    %170 = vector.extract_strided_slice %169 {offsets = [0, 0], sizes = [16, 96], strides = [1, 1]} : vector<16x128xf32> to vector<16x96xf32>
    %cst_60 = arith.constant 5.000000e-01 : f32
    %171 = vector.broadcast %cst_60 : f32 to vector<16x96xf32>
    %172 = arith.mulf %171, %170 : vector<16x96xf32>
    %cst_61 = arith.constant 5.000000e-01 : f32
    %173 = vector.broadcast %cst_61 : f32 to vector<16x96xf32>
    %174 = arith.addf %172, %173 : vector<16x96xf32>
    %175 = vector.extract_strided_slice %174 {offsets = [0, 0], sizes = [16, 32], strides = [1, 1]} : vector<16x96xf32> to vector<16x32xf32>
    %176 = vector.extract_strided_slice %174 {offsets = [0, 32], sizes = [16, 32], strides = [1, 1]} : vector<16x96xf32> to vector<16x32xf32>
    %177 = vector.extract_strided_slice %174 {offsets = [0, 64], sizes = [16, 32], strides = [1, 1]} : vector<16x96xf32> to vector<16x32xf32>
    %178 = vector.extract_strided_slice %169 {offsets = [0, 96], sizes = [16, 32], strides = [1, 1]} : vector<16x128xf32> to vector<16x32xf32>
    %179 = arith.mulf %176, %137 : vector<16x32xf32>
    %180 = arith.mulf %175, %178 : vector<16x32xf32>
    %181 = arith.addf %179, %180 : vector<16x32xf32>
    %182 = math.tanh %181 : vector<16x32xf32>
    %183 = arith.mulf %177, %182 : vector<16x32xf32>
    %184 = arith.truncf %183 : vector<16x32xf32> to vector<16x32xbf16>
    %cst_62 = arith.constant dense<0.000000e+00> : vector<16x128xf32>
    %185 = tpu.matmul %184, %14, %cst_62 {dimension_numbers = #tpu.dot_dimension_numbers<[1], [0], [0], [1], [0, 0, 1, 1], [], []>} : vector<16x32xbf16>, vector<32x128xbf16>, vector<16x128xf32> -> vector<16x128xf32>
    %186 = arith.addf %161, %185 : vector<16x128xf32>
    %187 = arith.addf %186, %18 : vector<16x128xf32>
    %188 = arith.mulf %187, %23 : vector<16x128xf32>
    %189 = math.tanh %188 : vector<16x128xf32>
    %190 = vector.extract_strided_slice %189 {offsets = [0, 0], sizes = [16, 96], strides = [1, 1]} : vector<16x128xf32> to vector<16x96xf32>
    %cst_63 = arith.constant 5.000000e-01 : f32
    %191 = vector.broadcast %cst_63 : f32 to vector<16x96xf32>
    %192 = arith.mulf %191, %190 : vector<16x96xf32>
    %cst_64 = arith.constant 5.000000e-01 : f32
    %193 = vector.broadcast %cst_64 : f32 to vector<16x96xf32>
    %194 = arith.addf %192, %193 : vector<16x96xf32>
    %195 = vector.extract_strided_slice %194 {offsets = [0, 0], sizes = [16, 32], strides = [1, 1]} : vector<16x96xf32> to vector<16x32xf32>
    %196 = vector.extract_strided_slice %194 {offsets = [0, 32], sizes = [16, 32], strides = [1, 1]} : vector<16x96xf32> to vector<16x32xf32>
    %197 = vector.extract_strided_slice %194 {offsets = [0, 64], sizes = [16, 32], strides = [1, 1]} : vector<16x96xf32> to vector<16x32xf32>
    %198 = vector.extract_strided_slice %189 {offsets = [0, 96], sizes = [16, 32], strides = [1, 1]} : vector<16x128xf32> to vector<16x32xf32>
    %199 = arith.mulf %196, %157 : vector<16x32xf32>
    %200 = arith.mulf %195, %198 : vector<16x32xf32>
    %201 = arith.addf %199, %200 : vector<16x32xf32>
    %202 = math.tanh %201 : vector<16x32xf32>
    %203 = arith.mulf %197, %202 : vector<16x32xf32>
    %c4_i32 = arith.constant 4 : i32
    %204 = arith.truncf %203 : vector<16x32xf32> to vector<16x32xbf16>
    %cst_65 = arith.constant dense<0.000000e+00> : vector<16x128xf32>
    %205 = tpu.matmul %204, %15, %cst_65 {dimension_numbers = #tpu.dot_dimension_numbers<[1], [0], [0], [1], [0, 0, 1, 1], [], []>} : vector<16x32xbf16>, vector<32x128xbf16>, vector<16x128xf32> -> vector<16x128xf32>
    %206 = arith.index_cast %c4_i32 : i32 to index
    %c0_66 = arith.constant 0 : index
    %c0_67 = arith.constant 0 : index
    %207 = vector.load %arg15[%206, %c0_66, %c0_67] : memref<8x16x128xf32, #tpu.memory_space<vmem>>, vector<1x16x128xf32>
    %208 = vector.shape_cast %207 : vector<1x16x128xf32> to vector<16x128xf32>
    %209 = arith.truncf %183 : vector<16x32xf32> to vector<16x32xbf16>
    %cst_68 = arith.constant dense<0.000000e+00> : vector<16x128xf32>
    %210 = tpu.matmul %209, %13, %cst_68 {dimension_numbers = #tpu.dot_dimension_numbers<[1], [0], [0], [1], [0, 0, 1, 1], [], []>} : vector<16x32xbf16>, vector<32x128xbf16>, vector<16x128xf32> -> vector<16x128xf32>
    %211 = arith.addf %208, %210 : vector<16x128xf32>
    %212 = arith.mulf %211, %23 : vector<16x128xf32>
    %213 = math.tanh %212 : vector<16x128xf32>
    %214 = vector.extract_strided_slice %213 {offsets = [0, 0], sizes = [16, 96], strides = [1, 1]} : vector<16x128xf32> to vector<16x96xf32>
    %cst_69 = arith.constant 5.000000e-01 : f32
    %215 = vector.broadcast %cst_69 : f32 to vector<16x96xf32>
    %216 = arith.mulf %215, %214 : vector<16x96xf32>
    %cst_70 = arith.constant 5.000000e-01 : f32
    %217 = vector.broadcast %cst_70 : f32 to vector<16x96xf32>
    %218 = arith.addf %216, %217 : vector<16x96xf32>
    %219 = vector.extract_strided_slice %218 {offsets = [0, 0], sizes = [16, 32], strides = [1, 1]} : vector<16x96xf32> to vector<16x32xf32>
    %220 = vector.extract_strided_slice %218 {offsets = [0, 32], sizes = [16, 32], strides = [1, 1]} : vector<16x96xf32> to vector<16x32xf32>
    %221 = vector.extract_strided_slice %218 {offsets = [0, 64], sizes = [16, 32], strides = [1, 1]} : vector<16x96xf32> to vector<16x32xf32>
    %222 = vector.extract_strided_slice %213 {offsets = [0, 96], sizes = [16, 32], strides = [1, 1]} : vector<16x128xf32> to vector<16x32xf32>
    %223 = arith.mulf %220, %181 : vector<16x32xf32>
    %224 = arith.mulf %219, %222 : vector<16x32xf32>
    %225 = arith.addf %223, %224 : vector<16x32xf32>
    %226 = math.tanh %225 : vector<16x32xf32>
    %227 = arith.mulf %221, %226 : vector<16x32xf32>
    %228 = arith.truncf %227 : vector<16x32xf32> to vector<16x32xbf16>
    %cst_71 = arith.constant dense<0.000000e+00> : vector<16x128xf32>
    %229 = tpu.matmul %228, %14, %cst_71 {dimension_numbers = #tpu.dot_dimension_numbers<[1], [0], [0], [1], [0, 0, 1, 1], [], []>} : vector<16x32xbf16>, vector<32x128xbf16>, vector<16x128xf32> -> vector<16x128xf32>
    %230 = arith.addf %205, %229 : vector<16x128xf32>
    %231 = arith.addf %230, %18 : vector<16x128xf32>
    %232 = arith.mulf %231, %23 : vector<16x128xf32>
    %233 = math.tanh %232 : vector<16x128xf32>
    %234 = vector.extract_strided_slice %233 {offsets = [0, 0], sizes = [16, 96], strides = [1, 1]} : vector<16x128xf32> to vector<16x96xf32>
    %cst_72 = arith.constant 5.000000e-01 : f32
    %235 = vector.broadcast %cst_72 : f32 to vector<16x96xf32>
    %236 = arith.mulf %235, %234 : vector<16x96xf32>
    %cst_73 = arith.constant 5.000000e-01 : f32
    %237 = vector.broadcast %cst_73 : f32 to vector<16x96xf32>
    %238 = arith.addf %236, %237 : vector<16x96xf32>
    %239 = vector.extract_strided_slice %238 {offsets = [0, 0], sizes = [16, 32], strides = [1, 1]} : vector<16x96xf32> to vector<16x32xf32>
    %240 = vector.extract_strided_slice %238 {offsets = [0, 32], sizes = [16, 32], strides = [1, 1]} : vector<16x96xf32> to vector<16x32xf32>
    %241 = vector.extract_strided_slice %238 {offsets = [0, 64], sizes = [16, 32], strides = [1, 1]} : vector<16x96xf32> to vector<16x32xf32>
    %242 = vector.extract_strided_slice %233 {offsets = [0, 96], sizes = [16, 32], strides = [1, 1]} : vector<16x128xf32> to vector<16x32xf32>
    %243 = arith.mulf %240, %201 : vector<16x32xf32>
    %244 = arith.mulf %239, %242 : vector<16x32xf32>
    %245 = arith.addf %243, %244 : vector<16x32xf32>
    %246 = math.tanh %245 : vector<16x32xf32>
    %247 = arith.mulf %241, %246 : vector<16x32xf32>
    %c5_i32 = arith.constant 5 : i32
    %248 = arith.truncf %247 : vector<16x32xf32> to vector<16x32xbf16>
    %cst_74 = arith.constant dense<0.000000e+00> : vector<16x128xf32>
    %249 = tpu.matmul %248, %15, %cst_74 {dimension_numbers = #tpu.dot_dimension_numbers<[1], [0], [0], [1], [0, 0, 1, 1], [], []>} : vector<16x32xbf16>, vector<32x128xbf16>, vector<16x128xf32> -> vector<16x128xf32>
    %250 = arith.index_cast %c5_i32 : i32 to index
    %c0_75 = arith.constant 0 : index
    %c0_76 = arith.constant 0 : index
    %251 = vector.load %arg15[%250, %c0_75, %c0_76] : memref<8x16x128xf32, #tpu.memory_space<vmem>>, vector<1x16x128xf32>
    %252 = vector.shape_cast %251 : vector<1x16x128xf32> to vector<16x128xf32>
    %253 = arith.truncf %227 : vector<16x32xf32> to vector<16x32xbf16>
    %cst_77 = arith.constant dense<0.000000e+00> : vector<16x128xf32>
    %254 = tpu.matmul %253, %13, %cst_77 {dimension_numbers = #tpu.dot_dimension_numbers<[1], [0], [0], [1], [0, 0, 1, 1], [], []>} : vector<16x32xbf16>, vector<32x128xbf16>, vector<16x128xf32> -> vector<16x128xf32>
    %255 = arith.addf %252, %254 : vector<16x128xf32>
    %256 = arith.mulf %255, %23 : vector<16x128xf32>
    %257 = math.tanh %256 : vector<16x128xf32>
    %258 = vector.extract_strided_slice %257 {offsets = [0, 0], sizes = [16, 96], strides = [1, 1]} : vector<16x128xf32> to vector<16x96xf32>
    %cst_78 = arith.constant 5.000000e-01 : f32
    %259 = vector.broadcast %cst_78 : f32 to vector<16x96xf32>
    %260 = arith.mulf %259, %258 : vector<16x96xf32>
    %cst_79 = arith.constant 5.000000e-01 : f32
    %261 = vector.broadcast %cst_79 : f32 to vector<16x96xf32>
    %262 = arith.addf %260, %261 : vector<16x96xf32>
    %263 = vector.extract_strided_slice %262 {offsets = [0, 0], sizes = [16, 32], strides = [1, 1]} : vector<16x96xf32> to vector<16x32xf32>
    %264 = vector.extract_strided_slice %262 {offsets = [0, 32], sizes = [16, 32], strides = [1, 1]} : vector<16x96xf32> to vector<16x32xf32>
    %265 = vector.extract_strided_slice %262 {offsets = [0, 64], sizes = [16, 32], strides = [1, 1]} : vector<16x96xf32> to vector<16x32xf32>
    %266 = vector.extract_strided_slice %257 {offsets = [0, 96], sizes = [16, 32], strides = [1, 1]} : vector<16x128xf32> to vector<16x32xf32>
    %267 = arith.mulf %264, %225 : vector<16x32xf32>
    %268 = arith.mulf %263, %266 : vector<16x32xf32>
    %269 = arith.addf %267, %268 : vector<16x32xf32>
    %270 = math.tanh %269 : vector<16x32xf32>
    %271 = arith.mulf %265, %270 : vector<16x32xf32>
    %272 = arith.truncf %271 : vector<16x32xf32> to vector<16x32xbf16>
    %cst_80 = arith.constant dense<0.000000e+00> : vector<16x128xf32>
    %273 = tpu.matmul %272, %14, %cst_80 {dimension_numbers = #tpu.dot_dimension_numbers<[1], [0], [0], [1], [0, 0, 1, 1], [], []>} : vector<16x32xbf16>, vector<32x128xbf16>, vector<16x128xf32> -> vector<16x128xf32>
    %274 = arith.addf %249, %273 : vector<16x128xf32>
    %275 = arith.addf %274, %18 : vector<16x128xf32>
    %276 = arith.mulf %275, %23 : vector<16x128xf32>
    %277 = math.tanh %276 : vector<16x128xf32>
    %278 = vector.extract_strided_slice %277 {offsets = [0, 0], sizes = [16, 96], strides = [1, 1]} : vector<16x128xf32> to vector<16x96xf32>
    %cst_81 = arith.constant 5.000000e-01 : f32
    %279 = vector.broadcast %cst_81 : f32 to vector<16x96xf32>
    %280 = arith.mulf %279, %278 : vector<16x96xf32>
    %cst_82 = arith.constant 5.000000e-01 : f32
    %281 = vector.broadcast %cst_82 : f32 to vector<16x96xf32>
    %282 = arith.addf %280, %281 : vector<16x96xf32>
    %283 = vector.extract_strided_slice %282 {offsets = [0, 0], sizes = [16, 32], strides = [1, 1]} : vector<16x96xf32> to vector<16x32xf32>
    %284 = vector.extract_strided_slice %282 {offsets = [0, 32], sizes = [16, 32], strides = [1, 1]} : vector<16x96xf32> to vector<16x32xf32>
    %285 = vector.extract_strided_slice %282 {offsets = [0, 64], sizes = [16, 32], strides = [1, 1]} : vector<16x96xf32> to vector<16x32xf32>
    %286 = vector.extract_strided_slice %277 {offsets = [0, 96], sizes = [16, 32], strides = [1, 1]} : vector<16x128xf32> to vector<16x32xf32>
    %287 = arith.mulf %284, %245 : vector<16x32xf32>
    %288 = arith.mulf %283, %286 : vector<16x32xf32>
    %289 = arith.addf %287, %288 : vector<16x32xf32>
    %290 = math.tanh %289 : vector<16x32xf32>
    %291 = arith.mulf %285, %290 : vector<16x32xf32>
    %c6_i32 = arith.constant 6 : i32
    %292 = arith.truncf %291 : vector<16x32xf32> to vector<16x32xbf16>
    %cst_83 = arith.constant dense<0.000000e+00> : vector<16x128xf32>
    %293 = tpu.matmul %292, %15, %cst_83 {dimension_numbers = #tpu.dot_dimension_numbers<[1], [0], [0], [1], [0, 0, 1, 1], [], []>} : vector<16x32xbf16>, vector<32x128xbf16>, vector<16x128xf32> -> vector<16x128xf32>
    %294 = arith.index_cast %c6_i32 : i32 to index
    %c0_84 = arith.constant 0 : index
    %c0_85 = arith.constant 0 : index
    %295 = vector.load %arg15[%294, %c0_84, %c0_85] : memref<8x16x128xf32, #tpu.memory_space<vmem>>, vector<1x16x128xf32>
    %296 = vector.shape_cast %295 : vector<1x16x128xf32> to vector<16x128xf32>
    %297 = arith.truncf %271 : vector<16x32xf32> to vector<16x32xbf16>
    %cst_86 = arith.constant dense<0.000000e+00> : vector<16x128xf32>
    %298 = tpu.matmul %297, %13, %cst_86 {dimension_numbers = #tpu.dot_dimension_numbers<[1], [0], [0], [1], [0, 0, 1, 1], [], []>} : vector<16x32xbf16>, vector<32x128xbf16>, vector<16x128xf32> -> vector<16x128xf32>
    %299 = arith.addf %296, %298 : vector<16x128xf32>
    %300 = arith.mulf %299, %23 : vector<16x128xf32>
    %301 = math.tanh %300 : vector<16x128xf32>
    %302 = vector.extract_strided_slice %301 {offsets = [0, 0], sizes = [16, 96], strides = [1, 1]} : vector<16x128xf32> to vector<16x96xf32>
    %cst_87 = arith.constant 5.000000e-01 : f32
    %303 = vector.broadcast %cst_87 : f32 to vector<16x96xf32>
    %304 = arith.mulf %303, %302 : vector<16x96xf32>
    %cst_88 = arith.constant 5.000000e-01 : f32
    %305 = vector.broadcast %cst_88 : f32 to vector<16x96xf32>
    %306 = arith.addf %304, %305 : vector<16x96xf32>
    %307 = vector.extract_strided_slice %306 {offsets = [0, 0], sizes = [16, 32], strides = [1, 1]} : vector<16x96xf32> to vector<16x32xf32>
    %308 = vector.extract_strided_slice %306 {offsets = [0, 32], sizes = [16, 32], strides = [1, 1]} : vector<16x96xf32> to vector<16x32xf32>
    %309 = vector.extract_strided_slice %306 {offsets = [0, 64], sizes = [16, 32], strides = [1, 1]} : vector<16x96xf32> to vector<16x32xf32>
    %310 = vector.extract_strided_slice %301 {offsets = [0, 96], sizes = [16, 32], strides = [1, 1]} : vector<16x128xf32> to vector<16x32xf32>
    %311 = arith.mulf %308, %269 : vector<16x32xf32>
    %312 = arith.mulf %307, %310 : vector<16x32xf32>
    %313 = arith.addf %311, %312 : vector<16x32xf32>
    %314 = math.tanh %313 : vector<16x32xf32>
    %315 = arith.mulf %309, %314 : vector<16x32xf32>
    %316 = arith.truncf %315 : vector<16x32xf32> to vector<16x32xbf16>
    %cst_89 = arith.constant dense<0.000000e+00> : vector<16x128xf32>
    %317 = tpu.matmul %316, %14, %cst_89 {dimension_numbers = #tpu.dot_dimension_numbers<[1], [0], [0], [1], [0, 0, 1, 1], [], []>} : vector<16x32xbf16>, vector<32x128xbf16>, vector<16x128xf32> -> vector<16x128xf32>
    %318 = arith.addf %293, %317 : vector<16x128xf32>
    %319 = arith.addf %318, %18 : vector<16x128xf32>
    %320 = arith.mulf %319, %23 : vector<16x128xf32>
    %321 = math.tanh %320 : vector<16x128xf32>
    %322 = vector.extract_strided_slice %321 {offsets = [0, 0], sizes = [16, 96], strides = [1, 1]} : vector<16x128xf32> to vector<16x96xf32>
    %cst_90 = arith.constant 5.000000e-01 : f32
    %323 = vector.broadcast %cst_90 : f32 to vector<16x96xf32>
    %324 = arith.mulf %323, %322 : vector<16x96xf32>
    %cst_91 = arith.constant 5.000000e-01 : f32
    %325 = vector.broadcast %cst_91 : f32 to vector<16x96xf32>
    %326 = arith.addf %324, %325 : vector<16x96xf32>
    %327 = vector.extract_strided_slice %326 {offsets = [0, 0], sizes = [16, 32], strides = [1, 1]} : vector<16x96xf32> to vector<16x32xf32>
    %328 = vector.extract_strided_slice %326 {offsets = [0, 32], sizes = [16, 32], strides = [1, 1]} : vector<16x96xf32> to vector<16x32xf32>
    %329 = vector.extract_strided_slice %326 {offsets = [0, 64], sizes = [16, 32], strides = [1, 1]} : vector<16x96xf32> to vector<16x32xf32>
    %330 = vector.extract_strided_slice %321 {offsets = [0, 96], sizes = [16, 32], strides = [1, 1]} : vector<16x128xf32> to vector<16x32xf32>
    %331 = arith.mulf %328, %289 : vector<16x32xf32>
    %332 = arith.mulf %327, %330 : vector<16x32xf32>
    %333 = arith.addf %331, %332 : vector<16x32xf32>
    %334 = math.tanh %333 : vector<16x32xf32>
    %335 = arith.mulf %329, %334 : vector<16x32xf32>
    %c7_i32 = arith.constant 7 : i32
    %336 = arith.truncf %335 : vector<16x32xf32> to vector<16x32xbf16>
    %cst_92 = arith.constant dense<0.000000e+00> : vector<16x128xf32>
    %337 = tpu.matmul %336, %15, %cst_92 {dimension_numbers = #tpu.dot_dimension_numbers<[1], [0], [0], [1], [0, 0, 1, 1], [], []>} : vector<16x32xbf16>, vector<32x128xbf16>, vector<16x128xf32> -> vector<16x128xf32>
    %338 = arith.index_cast %c7_i32 : i32 to index
    %c0_93 = arith.constant 0 : index
    %c0_94 = arith.constant 0 : index
    %339 = vector.load %arg15[%338, %c0_93, %c0_94] : memref<8x16x128xf32, #tpu.memory_space<vmem>>, vector<1x16x128xf32>
    %340 = vector.shape_cast %339 : vector<1x16x128xf32> to vector<16x128xf32>
    %341 = arith.truncf %315 : vector<16x32xf32> to vector<16x32xbf16>
    %cst_95 = arith.constant dense<0.000000e+00> : vector<16x128xf32>
    %342 = tpu.matmul %341, %13, %cst_95 {dimension_numbers = #tpu.dot_dimension_numbers<[1], [0], [0], [1], [0, 0, 1, 1], [], []>} : vector<16x32xbf16>, vector<32x128xbf16>, vector<16x128xf32> -> vector<16x128xf32>
    %343 = arith.addf %340, %342 : vector<16x128xf32>
    %344 = arith.mulf %343, %23 : vector<16x128xf32>
    %345 = math.tanh %344 : vector<16x128xf32>
    %346 = vector.extract_strided_slice %345 {offsets = [0, 0], sizes = [16, 96], strides = [1, 1]} : vector<16x128xf32> to vector<16x96xf32>
    %cst_96 = arith.constant 5.000000e-01 : f32
    %347 = vector.broadcast %cst_96 : f32 to vector<16x96xf32>
    %348 = arith.mulf %347, %346 : vector<16x96xf32>
    %cst_97 = arith.constant 5.000000e-01 : f32
    %349 = vector.broadcast %cst_97 : f32 to vector<16x96xf32>
    %350 = arith.addf %348, %349 : vector<16x96xf32>
    %351 = vector.extract_strided_slice %350 {offsets = [0, 0], sizes = [16, 32], strides = [1, 1]} : vector<16x96xf32> to vector<16x32xf32>
    %352 = vector.extract_strided_slice %350 {offsets = [0, 32], sizes = [16, 32], strides = [1, 1]} : vector<16x96xf32> to vector<16x32xf32>
    %353 = vector.extract_strided_slice %350 {offsets = [0, 64], sizes = [16, 32], strides = [1, 1]} : vector<16x96xf32> to vector<16x32xf32>
    %354 = vector.extract_strided_slice %345 {offsets = [0, 96], sizes = [16, 32], strides = [1, 1]} : vector<16x128xf32> to vector<16x32xf32>
    %355 = arith.mulf %352, %313 : vector<16x32xf32>
    %356 = arith.mulf %351, %354 : vector<16x32xf32>
    %357 = arith.addf %355, %356 : vector<16x32xf32>
    %358 = math.tanh %357 : vector<16x32xf32>
    %359 = arith.mulf %353, %358 : vector<16x32xf32>
    %360 = arith.truncf %359 : vector<16x32xf32> to vector<16x32xbf16>
    %cst_98 = arith.constant dense<0.000000e+00> : vector<16x128xf32>
    %361 = tpu.matmul %360, %14, %cst_98 {dimension_numbers = #tpu.dot_dimension_numbers<[1], [0], [0], [1], [0, 0, 1, 1], [], []>} : vector<16x32xbf16>, vector<32x128xbf16>, vector<16x128xf32> -> vector<16x128xf32>
    %362 = arith.addf %337, %361 : vector<16x128xf32>
    %363 = arith.addf %362, %18 : vector<16x128xf32>
    %364 = arith.mulf %363, %23 : vector<16x128xf32>
    %365 = math.tanh %364 : vector<16x128xf32>
    %366 = vector.extract_strided_slice %365 {offsets = [0, 0], sizes = [16, 96], strides = [1, 1]} : vector<16x128xf32> to vector<16x96xf32>
    %cst_99 = arith.constant 5.000000e-01 : f32
    %367 = vector.broadcast %cst_99 : f32 to vector<16x96xf32>
    %368 = arith.mulf %367, %366 : vector<16x96xf32>
    %cst_100 = arith.constant 5.000000e-01 : f32
    %369 = vector.broadcast %cst_100 : f32 to vector<16x96xf32>
    %370 = arith.addf %368, %369 : vector<16x96xf32>
    %371 = vector.extract_strided_slice %370 {offsets = [0, 0], sizes = [16, 32], strides = [1, 1]} : vector<16x96xf32> to vector<16x32xf32>
    %372 = vector.extract_strided_slice %370 {offsets = [0, 32], sizes = [16, 32], strides = [1, 1]} : vector<16x96xf32> to vector<16x32xf32>
    %373 = vector.extract_strided_slice %370 {offsets = [0, 64], sizes = [16, 32], strides = [1, 1]} : vector<16x96xf32> to vector<16x32xf32>
    %374 = vector.extract_strided_slice %365 {offsets = [0, 96], sizes = [16, 32], strides = [1, 1]} : vector<16x128xf32> to vector<16x32xf32>
    %375 = arith.mulf %372, %333 : vector<16x32xf32>
    %376 = arith.mulf %371, %374 : vector<16x32xf32>
    %377 = arith.addf %375, %376 : vector<16x32xf32>
    %378 = math.tanh %377 : vector<16x32xf32>
    %379 = arith.mulf %373, %378 : vector<16x32xf32>
    %c8_i32 = arith.constant 8 : i32
    %c0_101 = arith.constant 0 : index
    %c0_102 = arith.constant 0 : index
    %380 = vector.load %arg11[%c0_101, %c0_102] : memref<16x32xf32, #tpu.memory_space<vmem>>, vector<16x32xf32>
    tpu.vector_store %arg11[%c0_101, %c0_102], %359 {strides = array<i32>} : memref<16x32xf32, #tpu.memory_space<vmem>>, vector<16x32xf32>,
    %c0_103 = arith.constant 0 : index
    %c0_104 = arith.constant 0 : index
    %381 = vector.load %arg12[%c0_103, %c0_104] : memref<16x32xf32, #tpu.memory_space<vmem>>, vector<16x32xf32>
    tpu.vector_store %arg12[%c0_103, %c0_104], %357 {strides = array<i32>} : memref<16x32xf32, #tpu.memory_space<vmem>>, vector<16x32xf32>,
    %c0_105 = arith.constant 0 : index
    %c0_106 = arith.constant 0 : index
    %382 = vector.load %arg13[%c0_105, %c0_106] : memref<16x32xf32, #tpu.memory_space<vmem>>, vector<16x32xf32>
    tpu.vector_store %arg13[%c0_105, %c0_106], %379 {strides = array<i32>} : memref<16x32xf32, #tpu.memory_space<vmem>>, vector<16x32xf32>,
    %c0_107 = arith.constant 0 : index
    %c0_108 = arith.constant 0 : index
    %383 = vector.load %arg14[%c0_107, %c0_108] : memref<16x32xf32, #tpu.memory_space<vmem>>, vector<16x32xf32>
    tpu.vector_store %arg14[%c0_107, %c0_108], %377 {strides = array<i32>} : memref<16x32xf32, #tpu.memory_space<vmem>>, vector<16x32xf32>,
    %c0_i32_109 = arith.constant 0 : i32
    %384 = arith.cmpi eq, %arg0, %c0_i32_109 : i32
    %385 = arith.extui %384 : i1 to i32
    %c0_i32_110 = arith.constant 0 : i32
    %386 = arith.cmpi ne, %385, %c0_i32_110 : i32
    scf.if %386 {
      %c0_111 = arith.constant 0 : index
      %c0_112 = arith.constant 0 : index
      %387 = vector.load %arg8[%c0_111, %c0_112] : memref<1x32xf32, #tpu.memory_space<vmem>>, vector<1x32xf32>
      %388 = vector.broadcast %387 : vector<1x32xf32> to vector<16x32xf32>
      %389 = arith.mulf %379, %388 : vector<16x32xf32>
      %cst_113 = arith.constant dense<0.000000e+00> : vector<16xf32>
      %390 = vector.multi_reduction <add>, %389, %cst_113 [1] : vector<16x32xf32> to vector<16xf32>
      %391 = vector.shape_cast %390 : vector<16xf32> to vector<16x1xf32>
      %c0_114 = arith.constant 0 : index
      %c0_115 = arith.constant 0 : index
      %392 = vector.load %arg9[%c0_114, %c0_115] : memref<1x1xf32, #tpu.memory_space<vmem>>, vector<1x1xf32>
      %393 = vector.broadcast %392 : vector<1x1xf32> to vector<16x1xf32>
      %394 = arith.addf %391, %393 : vector<16x1xf32>
      %395 = arith.negf %394 : vector<16x1xf32>
      %396 = math.exp %395 : vector<16x1xf32>
      %cst_116 = arith.constant 1.000000e+00 : f32
      %397 = vector.broadcast %cst_116 : f32 to vector<16x1xf32>
      %398 = arith.addf %397, %396 : vector<16x1xf32>
      %399 = arith.divf %397, %398 : vector<16x1xf32>
      %c0_117 = arith.constant 0 : index
      %c0_118 = arith.constant 0 : index
      %400 = vector.load %arg10[%c0_117, %c0_118] : memref<16x1xf32, #tpu.memory_space<vmem>>, vector<16x1xf32>
      tpu.vector_store %arg10[%c0_117, %c0_118], %399 {strides = array<i32>} : memref<16x1xf32, #tpu.memory_space<vmem>>, vector<16x1xf32>,
    } else {
    }
    return
  }
  func.func @transform_0(%arg0: i32) -> (i32, i32, i32) {
    %c0_i32 = arith.constant 0 : i32
    %c0_i32_0 = arith.constant 0 : i32
    %c0_i32_1 = arith.constant 0 : i32
    return %arg0, %c0_i32, %c0_i32_0 : i32, i32, i32
  }
  func.func @transform_1(%arg0: i32) -> (i32, i32) {
    %c0_i32 = arith.constant 0 : i32
    %c0_i32_0 = arith.constant 0 : i32
    %c0_i32_1 = arith.constant 0 : i32
    return %c0_i32, %c0_i32_0 : i32, i32
  }
  func.func @transform_2(%arg0: i32) -> (i32, i32) {
    %c0_i32 = arith.constant 0 : i32
    %c0_i32_0 = arith.constant 0 : i32
    %c0_i32_1 = arith.constant 0 : i32
    return %c0_i32, %c0_i32_0 : i32, i32
  }
  func.func @transform_3(%arg0: i32) -> (i32, i32) {
    %c0_i32 = arith.constant 0 : i32
    %c0_i32_0 = arith.constant 0 : i32
    %c0_i32_1 = arith.constant 0 : i32
    return %c0_i32, %c0_i32_0 : i32, i32
  }
  func.func @transform_4(%arg0: i32) -> (i32, i32) {
    %c0_i32 = arith.constant 0 : i32
    %c0_i32_0 = arith.constant 0 : i32
    %c0_i32_1 = arith.constant 0 : i32
    return %c0_i32, %c0_i32_0 : i32, i32
  }
  func.func @transform_5(%arg0: i32) -> (i32, i32) {
    %c0_i32 = arith.constant 0 : i32
    %c0_i32_0 = arith.constant 0 : i32
    %c0_i32_1 = arith.constant 0 : i32
    return %c0_i32, %c0_i32_0 : i32, i32
  }
  func.func @transform_6(%arg0: i32) -> (i32, i32) {
    %c0_i32 = arith.constant 0 : i32
    %c0_i32_0 = arith.constant 0 : i32
    %c0_i32_1 = arith.constant 0 : i32
    return %c0_i32, %c0_i32_0 : i32, i32
  }
  func.func @transform_7(%arg0: i32) -> (i32, i32) {
    %c0_i32 = arith.constant 0 : i32
    %c0_i32_0 = arith.constant 0 : i32
    %c0_i32_1 = arith.constant 0 : i32
    return %c0_i32, %c0_i32_0 : i32, i32
  }
  func.func @transform_8(%arg0: i32) -> (i32, i32) {
    %c0_i32 = arith.constant 0 : i32
    %c0_i32_0 = arith.constant 0 : i32
    %c0_i32_1 = arith.constant 0 : i32
    return %c0_i32, %c0_i32_0 : i32, i32
  }
  func.func @transform_9(%arg0: i32) -> (i32, i32) {
    %c0_i32 = arith.constant 0 : i32
    %c0_i32_0 = arith.constant 0 : i32
    %c0_i32_1 = arith.constant 0 : i32
    return %c0_i32, %c0_i32_0 : i32, i32
  }
}

</mosaic_0001>

<llo_original>
// kernel: tpu_custom_call.1
$region0: #{tpu_custom_call.1}
  #allocation0 [shape = 'u32[]', space=smem, size = 0x4, offset = 0x4, fixed_abs, tag = 'smem constant byte address 0x4 - core index']
  #allocation1 [shape = 'u32[144,128]{1,0:T(1,128)}', space=vmem, size = 0x12000, scoped, tag = 'internal scratch']
  #allocation2 [shape = 'f32[16,32]{1,0:T(8,128)}', space=vmem, size = 0x2000, scoped, tag = 'scratch operand']
  #allocation3 [shape = 'f32[16,32]{1,0:T(8,128)}', space=vmem, size = 0x2000, scoped, tag = 'scratch operand']
  #allocation4 [shape = 'f32[16,32]{1,0:T(8,128)}', space=vmem, size = 0x2000, scoped, tag = 'scratch operand']
  #allocation5 [shape = 'f32[16,32]{1,0:T(8,128)}', space=vmem, size = 0x2000, scoped, tag = 'scratch operand']
  #allocation6 [shape = 'f32[8,16,128]{2,1,0:T(8,128)}', space=vmem, size = 0x10000, scoped, tag = 'scratch operand']
  #allocation7 [shape = 'f32[1,1]{1,0:T(1,128)S(1)}', space=vmem, size = 0x200, scoped, tag = 'scoped memory for tpu_custom_call.1']
  %s0 = inlined_call_operand.hbm [shape: bf16[8,16,16], index: 0, kind: input, shape index: {}]
  %s1 = inlined_call_operand.hbm [shape: bf16[16,128], index: 1, kind: input, shape index: {}]
  %s2 = inlined_call_operand.hbm [shape: bf16[32,128], index: 2, kind: input, shape index: {}]
  %s3 = inlined_call_operand.vmem [shape: f32[1,128], index: 3, kind: input, shape index: {}]
  %s4 = inlined_call_operand.vmem [shape: bf16[32,128], index: 4, kind: input, shape index: {}]
  %s5 = inlined_call_operand.hbm [shape: bf16[32,128], index: 5, kind: input, shape index: {}]
  %s6 = inlined_call_operand.vmem [shape: f32[1,128], index: 6, kind: input, shape index: {}]
  %s7 = inlined_call_operand.vmem [shape: f32[1,32], index: 7, kind: input, shape index: {}]
  %s8 = inlined_call_operand.<no memory space> [shape: f32[1,1], index: 8, kind: input, shape index: {}]
  %s9 = inlined_call_operand.vmem [shape: f32[16,1], index: 9, kind: output, shape index: {}]
  %s10 = sld [smem:[#allocation0]]
  $region70: #{tpu_custom_call.1} parent=0
    _
  %s12 = ssub.s32 1, %s10
  %s13 = scalar_select 0, %s12, %s10
  %v14 = vstv %s8
  %15 = vst [vmem:[#allocation7] sm:$0x1] %v14
  $region1: #{tpu_custom_call.1} parent=0
    #allocation8 [shape = 'u8[32768]{0}', space=vmem, size = 0x8000, scoped, tag = 'input window, operand 0, single buffered']
    #allocation9 [shape = 's32[1]{0}', space=sflag, size = 0x4, scoped, tag = 'scoped memory for tpu_custom_call.1']
    #allocation10 [shape = 'u8[4096]{0}', space=vmem, size = 0x1000, scoped, tag = 'input window, operand 1, single buffered']
    #allocation11 [shape = 's32[1]{0}', space=sflag, size = 0x4, scoped, tag = 'scoped memory for tpu_custom_call.1']
    #allocation12 [shape = 'u8[8192]{0}', space=vmem, size = 0x2000, scoped, tag = 'input window, operand 2, single buffered']
    #allocation13 [shape = 'u8[8192]{0}', space=vmem, size = 0x2000, scoped, tag = 'input window, operand 5, single buffered']
    #allocation14 [shape = 's32[1]{0}', space=sflag, size = 0x4, scoped, tag = 'scoped memory for tpu_custom_call.1']
    %16 = vsyncpa [#allocation9], 0
    %17 = vsyncpa [#allocation11], 0
    %18 = vsyncpa [#allocation14], 0
    // Predicated region
    $region2: #{tpu_custom_call.1} parent=1 // pred_check
      _
    $region3: #{tpu_custom_call.1} parent=1 // pred_check_branch
      %20 = sbr.rel (0) target = $region5
    $region4: #{tpu_custom_call.1} parent=1 // pred_region
      %s22 = ssub.s32 1024, 1024
      %23 = vsyncadd [#allocation9], %s22
      %s24 = sshll.u32 [#allocation8], 4
      %s25 = int_to_ptr.vmem [resolvable:$true] %s24
      %30 = dma.hbm_to_vmem [thread:$0]  %s0, 1024, %s25, [#allocation9], 64, 64, 4
    $region5: #{tpu_custom_call.1} parent=1 // pred_fallthru
      _
    // Predicated region
    $region6: #{tpu_custom_call.1} parent=1 // pred_check
      _
    $region7: #{tpu_custom_call.1} parent=1 // pred_check_branch
      %32 = sbr.rel (0) target = $region9
    $region8: #{tpu_custom_call.1} parent=1 // pred_region
      %s34 = ssub.s32 128, 128
      %35 = vsyncadd [#allocation11], %s34
      %s36 = sshll.u32 [#allocation10], 4
      %s37 = int_to_ptr.vmem [resolvable:$true] %s36
      %42 = dma.hbm_to_vmem [thread:$0]  %s1, 128, %s37, [#allocation11], 64, 64, 4
    $region9: #{tpu_custom_call.1} parent=1 // pred_fallthru
      _
    // Predicated region
    $region10: #{tpu_custom_call.1} parent=1 // pred_check
      _
    $region11: #{tpu_custom_call.1} parent=1 // pred_check_branch
      %44 = sbr.rel (0) target = $region13
    $region12: #{tpu_custom_call.1} parent=1 // pred_region
      %s46 = ssub.s32 256, 256
      %47 = vsyncadd [#allocation11], %s46
      %s48 = sshll.u32 [#allocation12], 4
      %s49 = int_to_ptr.vmem [resolvable:$true] %s48
      %54 = dma.hbm_to_vmem [thread:$0]  %s2, 256, %s49, [#allocation11], 64, 64, 4
    $region13: #{tpu_custom_call.1} parent=1 // pred_fallthru
      _
    // Predicated region
    $region14: #{tpu_custom_call.1} parent=1 // pred_check
      _
    $region15: #{tpu_custom_call.1} parent=1 // pred_check_branch
      %56 = sbr.rel (0) target = $region17
    $region16: #{tpu_custom_call.1} parent=1 // pred_region
      _
    $region17: #{tpu_custom_call.1} parent=1 // pred_fallthru
      _
    // Predicated region
    $region18: #{tpu_custom_call.1} parent=1 // pred_check
      _
    $region19: #{tpu_custom_call.1} parent=1 // pred_check_branch
      %58 = sbr.rel (0) target = $region21
    $region20: #{tpu_custom_call.1} parent=1 // pred_region
      _
    $region21: #{tpu_custom_call.1} parent=1 // pred_fallthru
      _
    // Predicated region
    $region22: #{tpu_custom_call.1} parent=1 // pred_check
      _
    $region23: #{tpu_custom_call.1} parent=1 // pred_check_branch
      %60 = sbr.rel (0) target = $region25
    $region24: #{tpu_custom_call.1} parent=1 // pred_region
      %s62 = ssub.s32 256, 256
      %63 = vsyncadd [#allocation14], %s62
      %s64 = sshll.u32 [#allocation13], 4
      %s65 = int_to_ptr.vmem [resolvable:$true] %s64
      %70 = dma.hbm_to_vmem [thread:$0]  %s5, 256, %s65, [#allocation14], 64, 64, 4
    $region25: #{tpu_custom_call.1} parent=1 // pred_fallthru
      _
    // Predicated region
    $region26: #{tpu_custom_call.1} parent=1 // pred_check
      _
    $region27: #{tpu_custom_call.1} parent=1 // pred_check_branch
      %72 = sbr.rel (0) target = $region29
    $region28: #{tpu_custom_call.1} parent=1 // pred_region
      _
    $region29: #{tpu_custom_call.1} parent=1 // pred_fallthru
      _
    // Predicated region
    $region30: #{tpu_custom_call.1} parent=1 // pred_check
      _
    $region31: #{tpu_custom_call.1} parent=1 // pred_check_branch
      %74 = sbr.rel (0) target = $region33
    $region32: #{tpu_custom_call.1} parent=1 // pred_region
      _
    $region33: #{tpu_custom_call.1} parent=1 // pred_fallthru
      _
    // Predicated region
    $region34: #{tpu_custom_call.1} parent=1 // pred_check
      _
    $region35: #{tpu_custom_call.1} parent=1 // pred_check_branch
      %76 = sbr.rel (0) target = $region37
    $region36: #{tpu_custom_call.1} parent=1 // pred_region
      _
    $region37: #{tpu_custom_call.1} parent=1 // pred_fallthru
      _
    // Predicated region
    $region38: #{tpu_custom_call.1} parent=1 // pred_check
      _
    $region39: #{tpu_custom_call.1} parent=1 // pred_check_branch
      %78 = sbr.rel (0) target = $region41
    $region40: #{tpu_custom_call.1} parent=1 // pred_region
      %79 = dma.done [#allocation9], 1024
    $region41: #{tpu_custom_call.1} parent=1 // pred_fallthru
      _
    // Predicated region
    $region42: #{tpu_custom_call.1} parent=1 // pred_check
      _
    $region43: #{tpu_custom_call.1} parent=1 // pred_check_branch
      %81 = sbr.rel (0) target = $region45
    $region44: #{tpu_custom_call.1} parent=1 // pred_region
      %82 = dma.done [#allocation11], 128
    $region45: #{tpu_custom_call.1} parent=1 // pred_fallthru
      _
    // Predicated region
    $region46: #{tpu_custom_call.1} parent=1 // pred_check
      _
    $region47: #{tpu_custom_call.1} parent=1 // pred_check_branch
      %84 = sbr.rel (0) target = $region49
    $region48: #{tpu_custom_call.1} parent=1 // pred_region
      %85 = dma.done [#allocation11], 256
    $region49: #{tpu_custom_call.1} parent=1 // pred_fallthru
      _
    // Predicated region
    $region50: #{tpu_custom_call.1} parent=1 // pred_check
      _
    $region51: #{tpu_custom_call.1} parent=1 // pred_check_branch
      %87 = sbr.rel (0) target = $region53
    $region52: #{tpu_custom_call.1} parent=1 // pred_region
      %88 = dma.done [#allocation14], 256
    $region53: #{tpu_custom_call.1} parent=1 // pred_fallthru
      _
    %p90 = scmp.eq.s32.totalorder 0, 0
    // Predicated region
    $region54: #{tpu_custom_call.1} parent=1 // pred_check
      %p91 = pneg %p90
    $region55: #{tpu_custom_call.1} parent=1 // pred_check_branch
      %93 = sbr.rel (%p91) target = $region57
    $region56: #{tpu_custom_call.1} parent=1 // pred_region
      %vm94 = vcmask 261120
      %95 = vst.msk [vmem:[#allocation2] sm:$0xff] %vm94, 0.0
      %96 = vst.msk [vmem:[#allocation2 + $0x8] sm:$0xff] %vm94, 0.0
      %97 = vst.msk [vmem:[#allocation3] sm:$0xff] %vm94, 0.0
      %98 = vst.msk [vmem:[#allocation3 + $0x8] sm:$0xff] %vm94, 0.0
      %99 = vst.msk [vmem:[#allocation4] sm:$0xff] %vm94, 0.0
      %100 = vst.msk [vmem:[#allocation4 + $0x8] sm:$0xff] %vm94, 0.0
      %101 = vst.msk [vmem:[#allocation5] sm:$0xff] %vm94, 0.0
      %102 = vst.msk [vmem:[#allocation5 + $0x8] sm:$0xff] %vm94, 0.0
    $region57: #{tpu_custom_call.1} parent=1 // pred_fallthru
      _
    %v103 = vld [vmem:[#allocation8] sm:$0xf]
    %v104 = vld [vmem:[#allocation8 + $0x4] sm:$0xf]
    %v105 = vld [vmem:[#allocation8 + $0x8] sm:$0xf]
    %v106 = vld [vmem:[#allocation8 + $0xc] sm:$0xf]
    %v107 = vld [vmem:[#allocation8 + $0x10] sm:$0xf]
    %v108 = vld [vmem:[#allocation8 + $0x14] sm:$0xf]
    %v109 = vld [vmem:[#allocation8 + $0x18] sm:$0xf]
    %v110 = vld [vmem:[#allocation8 + $0x1c] sm:$0xf]
    %v111 = vld [vmem:[#allocation8 + $0x20] sm:$0xf]
    %v112 = vld [vmem:[#allocation8 + $0x24] sm:$0xf]
    %v113 = vld [vmem:[#allocation8 + $0x28] sm:$0xf]
    %v114 = vld [vmem:[#allocation8 + $0x2c] sm:$0xf]
    %v115 = vld [vmem:[#allocation8 + $0x30] sm:$0xf]
    %v116 = vld [vmem:[#allocation8 + $0x34] sm:$0xf]
    %v117 = vld [vmem:[#allocation8 + $0x38] sm:$0xf]
    %v118 = vld [vmem:[#allocation8 + $0x3c] sm:$0xf]
    %v119 = vld [vmem:[#allocation10] sm:$0xf]
    %v120 = vld [vmem:[#allocation10 + $0x4] sm:$0xf]
    %v137 = vunpack.c.l.b16 %v103
    %v138 = vunpack.c.l.b16 %v104
    %v139 = vunpack.c.l.b16 %v105
    %v140 = vunpack.c.l.b16 %v106
    %v141 = vunpack.c.l.b16 %v107
    %v142 = vunpack.c.l.b16 %v108
    %v143 = vunpack.c.l.b16 %v109
    %v144 = vunpack.c.l.b16 %v110
    %v145 = vunpack.c.l.b16 %v111
    %v146 = vunpack.c.l.b16 %v112
    %v147 = vunpack.c.l.b16 %v113
    %v148 = vunpack.c.l.b16 %v114
    %v149 = vunpack.c.l.b16 %v115
    %v150 = vunpack.c.l.b16 %v116
    %v151 = vunpack.c.l.b16 %v117
    %v152 = vunpack.c.l.b16 %v118
    %v153 = vpack.c.b16 %v138, %v137
    %v154 = vpack.c.b16 %v140, %v139
    %v155 = vpack.c.b16 %v142, %v141
    %v156 = vpack.c.b16 %v144, %v143
    %v157 = vpack.c.b16 %v146, %v145
    %v158 = vpack.c.b16 %v148, %v147
    %v159 = vpack.c.b16 %v150, %v149
    %v160 = vpack.c.b16 %v152, %v151
    %v163 = vunpack.c.l.b16 %v119
    %v164 = vunpack.c.l.b16 %v120
    %v165 = vpack.c.b16 %v164, %v163
    %vm167 = vcmask 130048
    %v169 = vsel %vm167, %v153, 0
    %v172 = vsel %vm167, %v154, 0
    %v175 = vsel %vm167, %v155, 0
    %v178 = vsel %vm167, %v156, 0
    %v181 = vsel %vm167, %v157, 0
    %v184 = vsel %vm167, %v158, 0
    %v187 = vsel %vm167, %v159, 0
    %v190 = vsel %vm167, %v160, 0
    %192 = vmatprep.subr.bf16.mxu0 0
    %193 = vmatpush1.bf16.msra.mxu0 %v165
    %194 = vmatprep.subr.bf16.mxu0 0
    %195 = vmatpush1.bf16.msra.mxu0 0
    %196 = vmatprep.subr.bf16.mxu0 0
    %197 = vmatpush1.bf16.msra.mxu0 0
    %198 = vmatprep.subr.bf16.mxu0 0
    %199 = vmatpush1.bf16.msra.mxu0 0
    %200 = vmatprep.subr.bf16.mxu0 0
    %201 = vmatpush1.bf16.msra.mxu0 0
    %202 = vmatprep.subr.bf16.mxu0 0
    %203 = vmatpush1.bf16.msra.mxu0 0
    %204 = vmatprep.subr.bf16.mxu0 0
    %205 = vmatpush1.bf16.msra.mxu0 0
    %206 = vmatprep.subr.bf16.mxu0 0
    %207 = vmatpush1.bf16.msra.mxu0 0
    %208 = vmatprep.subr.bf16.mxu0 0
    %209 = vmatpush1.bf16.msra.mxu0 0
    %210 = vmatprep.subr.bf16.mxu0 0
    %211 = vmatpush1.bf16.msra.mxu0 0
    %212 = vmatprep.subr.bf16.mxu0 0
    %213 = vmatpush1.bf16.msra.mxu0 0
    %214 = vmatprep.subr.bf16.mxu0 0
    %215 = vmatpush1.bf16.msra.mxu0 0
    %216 = vmatprep.subr.bf16.mxu0 0
    %217 = vmatpush1.bf16.msra.mxu0 0
    %218 = vmatprep.subr.bf16.mxu0 0
    %219 = vmatpush1.bf16.msra.mxu0 0
    %220 = vmatprep.subr.bf16.mxu0 0
    %221 = vmatpush1.bf16.msra.mxu0 0
    %222 = vmatprep.subr.bf16.mxu0 0
    %223 = vmatpush1.bf16.msra.mxu0 0
    %224 = vmatprep.mubr.bf16.mxu0 0
    %225 = vmatmul.mubr.bf16.gmra.mrb[0].mxu0 %v169
    %v226 = vpop.f32.mrb[0].mxu0
    %v227 = vadd.f32 0.0, %v226
    %v228 = vpop.f32.mrb[0].mxu0
    %v229 = vpop.f32.mrb[0].mxu0
    %v230 = vadd.f32 0.0, %v229
    %v231 = vpop.f32.mrb[0].mxu0
    %232 = vmatprep.mubr.bf16.mxu0 0
    %233 = vmatmul.mubr.bf16.gmra.mrb[0].mxu0 %v172
    %v234 = vpop.f32.mrb[0].mxu0
    %v235 = vadd.f32 0.0, %v234
    %v236 = vpop.f32.mrb[0].mxu0
    %v237 = vpop.f32.mrb[0].mxu0
    %v238 = vadd.f32 0.0, %v237
    %v239 = vpop.f32.mrb[0].mxu0
    %240 = vmatprep.mubr.bf16.mxu0 0
    %241 = vmatmul.mubr.bf16.gmra.mrb[0].mxu0 %v175
    %v242 = vpop.f32.mrb[0].mxu0
    %v243 = vadd.f32 0.0, %v242
    %v244 = vpop.f32.mrb[0].mxu0
    %v245 = vpop.f32.mrb[0].mxu0
    %v246 = vadd.f32 0.0, %v245
    %v247 = vpop.f32.mrb[0].mxu0
    %248 = vmatprep.mubr.bf16.mxu0 0
    %249 = vmatmul.mubr.bf16.gmra.mrb[0].mxu0 %v178
    %v250 = vpop.f32.mrb[0].mxu0
    %v251 = vadd.f32 0.0, %v250
    %v252 = vpop.f32.mrb[0].mxu0
    %v253 = vpop.f32.mrb[0].mxu0
    %v254 = vadd.f32 0.0, %v253
    %v255 = vpop.f32.mrb[0].mxu0
    %256 = vmatprep.mubr.bf16.mxu0 0
    %257 = vmatmul.mubr.bf16.gmra.mrb[0].mxu0 %v181
    %v258 = vpop.f32.mrb[0].mxu0
    %v259 = vadd.f32 0.0, %v258
    %v260 = vpop.f32.mrb[0].mxu0
    %v261 = vpop.f32.mrb[0].mxu0
    %v262 = vadd.f32 0.0, %v261
    %v263 = vpop.f32.mrb[0].mxu0
    %264 = vmatprep.mubr.bf16.mxu0 0
    %265 = vmatmul.mubr.bf16.gmra.mrb[0].mxu0 %v184
    %v266 = vpop.f32.mrb[0].mxu0
    %v267 = vadd.f32 0.0, %v266
    %v268 = vpop.f32.mrb[0].mxu0
    %v269 = vpop.f32.mrb[0].mxu0
    %v270 = vadd.f32 0.0, %v269
    %v271 = vpop.f32.mrb[0].mxu0
    %272 = vmatprep.mubr.bf16.mxu0 0
    %273 = vmatmul.mubr.bf16.gmra.mrb[0].mxu0 %v187
    %v274 = vpop.f32.mrb[0].mxu0
    %v275 = vadd.f32 0.0, %v274
    %v276 = vpop.f32.mrb[0].mxu0
    %v277 = vpop.f32.mrb[0].mxu0
    %v278 = vadd.f32 0.0, %v277
    %v279 = vpop.f32.mrb[0].mxu0
    %280 = vmatprep.mubr.bf16.mxu0 0
    %281 = vmatmul.mubr.bf16.gmra.mrb[0].mxu0 %v190
    %v282 = vpop.f32.mrb[0].mxu0
    %v283 = vadd.f32 0.0, %v282
    %v284 = vpop.f32.mrb[0].mxu0
    %v285 = vpop.f32.mrb[0].mxu0
    %v286 = vadd.f32 0.0, %v285
    %v287 = vpop.f32.mrb[0].mxu0
    %288 = vdwg.mxu0
    %v289 = vld [vmem:[%s3] sm:$0x1]
    %v291 = vlaneseq
    %v292 = vshrl.u32 %v291, 7
    %v293 = vsub.s32 0, %v292
    %v294 = vrot.slane %v289, %v293
    %v296 = vadd.f32 %v227, %v294
    %v297 = vadd.f32 %v230, %v294
    %v298 = vadd.f32 %v235, %v294
    %v299 = vadd.f32 %v238, %v294
    %v300 = vadd.f32 %v243, %v294
    %v301 = vadd.f32 %v246, %v294
    %v302 = vadd.f32 %v251, %v294
    %v303 = vadd.f32 %v254, %v294
    %v304 = vadd.f32 %v259, %v294
    %v305 = vadd.f32 %v262, %v294
    %v306 = vadd.f32 %v267, %v294
    %v307 = vadd.f32 %v270, %v294
    %v308 = vadd.f32 %v275, %v294
    %v309 = vadd.f32 %v278, %v294
    %v310 = vadd.f32 %v283, %v294
    %v311 = vadd.f32 %v286, %v294
    %312 = vst [vmem:[#allocation6] sm:$0xff] %v296
    %313 = vst [vmem:[#allocation6 + $0x8] sm:$0xff] %v297
    %314 = vst [vmem:[#allocation6 + $0x10] sm:$0xff] %v298
    %315 = vst [vmem:[#allocation6 + $0x18] sm:$0xff] %v299
    %316 = vst [vmem:[#allocation6 + $0x20] sm:$0xff] %v300
    %317 = vst [vmem:[#allocation6 + $0x28] sm:$0xff] %v301
    %318 = vst [vmem:[#allocation6 + $0x30] sm:$0xff] %v302
    %319 = vst [vmem:[#allocation6 + $0x38] sm:$0xff] %v303
    %320 = vst [vmem:[#allocation6 + $0x40] sm:$0xff] %v304
    %321 = vst [vmem:[#allocation6 + $0x48] sm:$0xff] %v305
    %322 = vst [vmem:[#allocation6 + $0x50] sm:$0xff] %v306
    %323 = vst [vmem:[#allocation6 + $0x58] sm:$0xff] %v307
    %324 = vst [vmem:[#allocation6 + $0x60] sm:$0xff] %v308
    %325 = vst [vmem:[#allocation6 + $0x68] sm:$0xff] %v309
    %326 = vst [vmem:[#allocation6 + $0x70] sm:$0xff] %v310
    %327 = vst [vmem:[#allocation6 + $0x78] sm:$0xff] %v311
    %v328 = vld [vmem:[#allocation12] sm:$0xf]
    %v329 = vld [vmem:[#allocation12 + $0x4] sm:$0xf]
    %v330 = vld [vmem:[#allocation12 + $0x8] sm:$0xf]
    %v331 = vld [vmem:[#allocation12 + $0xc] sm:$0xf]
    %v332 = vld [vmem:[%s4] sm:$0xf]
    %v333 = vld [vmem:[%s4 + $0x4] sm:$0xf]
    %v334 = vld [vmem:[%s4 + $0x8] sm:$0xf]
    %v335 = vld [vmem:[%s4 + $0xc] sm:$0xf]
    %v336 = vld [vmem:[#allocation13] sm:$0xf]
    %v337 = vld [vmem:[#allocation13 + $0x4] sm:$0xf]
    %v338 = vld [vmem:[#allocation13 + $0x8] sm:$0xf]
    %v339 = vld [vmem:[#allocation13 + $0xc] sm:$0xf]
    %v340 = vld [vmem:[%s6] sm:$0x1]
    %v342 = vlaneseq
    %v343 = vshrl.u32 %v342, 7
    %v344 = vsub.s32 0, %v343
    %v345 = vrot.slane %v340, %v344
    %vm347 = vcmask 785408
    %v348 = vsel %vm347, 0.5, 1.0
    %v349 = vlaneseq
    %v350 = vshrl.u32 %v349, 7
    %v351 = vsub.s32 0, %v350
    %v352 = vrot.slane %v348, %v351
    %v353 = vld [vmem:[#allocation2] sm:$0xff]
    %v354 = vld [vmem:[#allocation2 + $0x8] sm:$0xff]
    %v355 = vld [vmem:[#allocation3] sm:$0xff]
    %v356 = vld [vmem:[#allocation3 + $0x8] sm:$0xff]
    %v357 = vld [vmem:[#allocation4] sm:$0xff]
    %v358 = vld [vmem:[#allocation4 + $0x8] sm:$0xff]
    %v359 = vld [vmem:[#allocation5] sm:$0xff]
    %v360 = vld [vmem:[#allocation5 + $0x8] sm:$0xff]
    %v361 = vpack.c.bf16 %v358, %v357
    %v362 = vld [vmem:[#allocation6] sm:$0xff]
    %v363 = vld [vmem:[#allocation6 + $0x8] sm:$0xff]
    %v364 = vpack.c.bf16 %v354, %v353
    %v369 = vunpack.c.l.b16 %v328
    %v370 = vunpack.c.l.b16 %v329
    %v371 = vunpack.c.l.b16 %v330
    %v372 = vunpack.c.l.b16 %v331
    %v373 = vpack.c.b16 %v370, %v369
    %v374 = vpack.c.b16 %v372, %v371
    %vm377 = vcmask 261120
    %v379 = vsel %vm377, %v364, 0
    %381 = vmatprep.subr.bf16.mxu0 0
    %382 = vmatpush1.bf16.msra.mxu0 %v373
    %383 = vmatprep.subr.bf16.mxu0 0
    %384 = vmatpush1.bf16.msra.mxu0 %v374
    %385 = vmatprep.subr.bf16.mxu0 0
    %386 = vmatpush1.bf16.msra.mxu0 0
    %387 = vmatprep.subr.bf16.mxu0 0
    %388 = vmatpush1.bf16.msra.mxu0 0
    %389 = vmatprep.subr.bf16.mxu0 0
    %390 = vmatpush1.bf16.msra.mxu0 0
    %391 = vmatprep.subr.bf16.mxu0 0
    %392 = vmatpush1.bf16.msra.mxu0 0
    %393 = vmatprep.subr.bf16.mxu0 0
    %394 = vmatpush1.bf16.msra.mxu0 0
    %395 = vmatprep.subr.bf16.mxu0 0
    %396 = vmatpush1.bf16.msra.mxu0 0
    %397 = vmatprep.subr.bf16.mxu0 0
    %398 = vmatpush1.bf16.msra.mxu0 0
    %399 = vmatprep.subr.bf16.mxu0 0
    %400 = vmatpush1.bf16.msra.mxu0 0
    %401 = vmatprep.subr.bf16.mxu0 0
    %402 = vmatpush1.bf16.msra.mxu0 0
    %403 = vmatprep.subr.bf16.mxu0 0
    %404 = vmatpush1.bf16.msra.mxu0 0
    %405 = vmatprep.subr.bf16.mxu0 0
    %406 = vmatpush1.bf16.msra.mxu0 0
    %407 = vmatprep.subr.bf16.mxu0 0
    %408 = vmatpush1.bf16.msra.mxu0 0
    %409 = vmatprep.subr.bf16.mxu0 0
    %410 = vmatpush1.bf16.msra.mxu0 0
    %411 = vmatprep.subr.bf16.mxu0 0
    %412 = vmatpush1.bf16.msra.mxu0 0
    %413 = vmatprep.mubr.bf16.mxu0 0
    %414 = vmatmul.mubr.bf16.gmra.mrb[0].mxu0 %v379
    %v415 = vpop.f32.mrb[0].mxu0
    %v416 = vadd.f32 0.0, %v415
    %v417 = vpop.f32.mrb[0].mxu0
    %v418 = vpop.f32.mrb[0].mxu0
    %v419 = vadd.f32 0.0, %v418
    %v420 = vpop.f32.mrb[0].mxu0
    %421 = vdwg.mxu0
    %v422 = vadd.f32 %v362, %v416
    %v423 = vadd.f32 %v363, %v419
    %v424 = vmul.f32 %v422, %v352
    %v425 = vmul.f32 %v423, %v352
    %v426 = vtanh.pop %v424
    %v427 = vtanh.pop %v425
    %v428 = vmul.f32 %v426, 0.5
    %v429 = vmul.f32 %v427, 0.5
    %v430 = vadd.f32 %v428, 0.5
    %v431 = vadd.f32 %v429, 0.5
    %434 = vrot.lane.b32.xlu0 %v355, 32
    %v435 = vpop.permute.xlu0 %434
    %436 = vrot.lane.b32.xlu0 %v356, 32
    %v437 = vpop.permute.xlu0 %436
    %v440 = vmul.f32 %v430, %v435
    %v441 = vmul.f32 %v431, %v437
    %444 = vrot.lane.b32.xlu0 %v426, 32
    %v445 = vpop.permute.xlu0 %444
    %446 = vrot.lane.b32.xlu0 %v427, 32
    %v447 = vpop.permute.xlu0 %446
    %v450 = vmul.f32 %v430, %v445
    %v451 = vmul.f32 %v431, %v447
    %454 = vrot.lane.b32.xlu0 %v450, 32
    %v455 = vpop.permute.xlu0 %454
    %456 = vrot.lane.b32.xlu0 %v451, 32
    %v457 = vpop.permute.xlu0 %456
    %v460 = vadd.f32 %v440, %v455
    %v461 = vadd.f32 %v441, %v457
    %v462 = vtanh.pop %v460
    %v463 = vtanh.pop %v461
    %466 = vrot.lane.b32.xlu0 %v462, 32
    %v467 = vpop.permute.xlu0 %466
    %468 = vrot.lane.b32.xlu0 %v463, 32
    %v469 = vpop.permute.xlu0 %468
    %v472 = vmul.f32 %v430, %v467
    %v473 = vmul.f32 %v431, %v469
    %v474 = vpack.c.bf16 %v473, %v472
    %476 = vrot.lane.b32.xlu0 %v474, 64
    %v477 = vpop.permute.xlu0 %476
    %v482 = vunpack.c.l.b16 %v332
    %v483 = vunpack.c.l.b16 %v333
    %v484 = vunpack.c.l.b16 %v334
    %v485 = vunpack.c.l.b16 %v335
    %v486 = vpack.c.b16 %v483, %v482
    %v487 = vpack.c.b16 %v485, %v484
    %v491 = vsel %vm377, %v477, 0
    %493 = vmatprep.subr.bf16.mxu0 0
    %494 = vmatpush1.bf16.msra.mxu0 %v486
    %495 = vmatprep.subr.bf16.mxu0 0
    %496 = vmatpush1.bf16.msra.mxu0 %v487
    %497 = vmatprep.subr.bf16.mxu0 0
    %498 = vmatpush1.bf16.msra.mxu0 0
    %499 = vmatprep.subr.bf16.mxu0 0
    %500 = vmatpush1.bf16.msra.mxu0 0
    %501 = vmatprep.subr.bf16.mxu0 0
    %502 = vmatpush1.bf16.msra.mxu0 0
    %503 = vmatprep.subr.bf16.mxu0 0
    %504 = vmatpush1.bf16.msra.mxu0 0
    %505 = vmatprep.subr.bf16.mxu0 0
    %506 = vmatpush1.bf16.msra.mxu0 0
    %507 = vmatprep.subr.bf16.mxu0 0
    %508 = vmatpush1.bf16.msra.mxu0 0
    %509 = vmatprep.subr.bf16.mxu0 0
    %510 = vmatpush1.bf16.msra.mxu0 0
    %511 = vmatprep.subr.bf16.mxu0 0
    %512 = vmatpush1.bf16.msra.mxu0 0
    %513 = vmatprep.subr.bf16.mxu0 0
    %514 = vmatpush1.bf16.msra.mxu0 0
    %515 = vmatprep.subr.bf16.mxu0 0
    %516 = vmatpush1.bf16.msra.mxu0 0
    %517 = vmatprep.subr.bf16.mxu0 0
    %518 = vmatpush1.bf16.msra.mxu0 0
    %519 = vmatprep.subr.bf16.mxu0 0
    %520 = vmatpush1.bf16.msra.mxu0 0
    %521 = vmatprep.subr.bf16.mxu0 0
    %522 = vmatpush1.bf16.msra.mxu0 0
    %523 = vmatprep.subr.bf16.mxu0 0
    %524 = vmatpush1.bf16.msra.mxu0 0
    %525 = vmatprep.mubr.bf16.mxu0 0
    %526 = vmatmul.mubr.bf16.gmra.mrb[0].mxu0 %v491
    %v527 = vpop.f32.mrb[0].mxu0
    %v528 = vadd.f32 0.0, %v527
    %v529 = vpop.f32.mrb[0].mxu0
    %v530 = vpop.f32.mrb[0].mxu0
    %v531 = vadd.f32 0.0, %v530
    %v532 = vpop.f32.mrb[0].mxu0
    %533 = vdwg.mxu0
    %v538 = vunpack.c.l.b16 %v336
    %v539 = vunpack.c.l.b16 %v337
    %v540 = vunpack.c.l.b16 %v338
    %v541 = vunpack.c.l.b16 %v339
    %v542 = vpack.c.b16 %v539, %v538
    %v543 = vpack.c.b16 %v541, %v540
    %v547 = vsel %vm377, %v361, 0
    %549 = vmatprep.subr.bf16.mxu0 0
    %550 = vmatpush1.bf16.msra.mxu0 %v542
    %551 = vmatprep.subr.bf16.mxu0 0
    %552 = vmatpush1.bf16.msra.mxu0 %v543
    %553 = vmatprep.subr.bf16.mxu0 0
    %554 = vmatpush1.bf16.msra.mxu0 0
    %555 = vmatprep.subr.bf16.mxu0 0
    %556 = vmatpush1.bf16.msra.mxu0 0
    %557 = vmatprep.subr.bf16.mxu0 0
    %558 = vmatpush1.bf16.msra.mxu0 0
    %559 = vmatprep.subr.bf16.mxu0 0
    %560 = vmatpush1.bf16.msra.mxu0 0
    %561 = vmatprep.subr.bf16.mxu0 0
    %562 = vmatpush1.bf16.msra.mxu0 0
    %563 = vmatprep.subr.bf16.mxu0 0
    %564 = vmatpush1.bf16.msra.mxu0 0
    %565 = vmatprep.subr.bf16.mxu0 0
    %566 = vmatpush1.bf16.msra.mxu0 0
    %567 = vmatprep.subr.bf16.mxu0 0
    %568 = vmatpush1.bf16.msra.mxu0 0
    %569 = vmatprep.subr.bf16.mxu0 0
    %570 = vmatpush1.bf16.msra.mxu0 0
    %571 = vmatprep.subr.bf16.mxu0 0
    %572 = vmatpush1.bf16.msra.mxu0 0
    %573 = vmatprep.subr.bf16.mxu0 0
    %574 = vmatpush1.bf16.msra.mxu0 0
    %575 = vmatprep.subr.bf16.mxu0 0
    %576 = vmatpush1.bf16.msra.mxu0 0
    %577 = vmatprep.subr.bf16.mxu0 0
    %578 = vmatpush1.bf16.msra.mxu0 0
    %579 = vmatprep.subr.bf16.mxu0 0
    %580 = vmatpush1.bf16.msra.mxu0 0
    %581 = vmatprep.mubr.bf16.mxu0 0
    %582 = vmatmul.mubr.bf16.gmra.mrb[0].mxu0 %v547
    %v583 = vpop.f32.mrb[0].mxu0
    %v584 = vadd.f32 %v528, %v583
    %v585 = vpop.f32.mrb[0].mxu0
    %v586 = vpop.f32.mrb[0].mxu0
    %v587 = vadd.f32 %v531, %v586
    %v588 = vpop.f32.mrb[0].mxu0
    %589 = vdwg.mxu0
    %v590 = vadd.f32 %v584, %v345
    %v591 = vadd.f32 %v587, %v345
    %v592 = vmul.f32 %v590, %v352
    %v593 = vmul.f32 %v591, %v352
    %v594 = vtanh.pop %v592
    %v595 = vtanh.pop %v593
    %v596 = vmul.f32 %v594, 0.5
    %v597 = vmul.f32 %v595, 0.5
    %v598 = vadd.f32 %v596, 0.5
    %v599 = vadd.f32 %v597, 0.5
    %602 = vrot.lane.b32.xlu0 %v359, 32
    %v603 = vpop.permute.xlu0 %602
    %604 = vrot.lane.b32.xlu0 %v360, 32
    %v605 = vpop.permute.xlu0 %604
    %v608 = vmul.f32 %v598, %v603
    %v609 = vmul.f32 %v599, %v605
    %612 = vrot.lane.b32.xlu0 %v594, 32
    %v613 = vpop.permute.xlu0 %612
    %614 = vrot.lane.b32.xlu0 %v595, 32
    %v615 = vpop.permute.xlu0 %614
    %v618 = vmul.f32 %v598, %v613
    %v619 = vmul.f32 %v599, %v615
    %622 = vrot.lane.b32.xlu0 %v618, 32
    %v623 = vpop.permute.xlu0 %622
    %624 = vrot.lane.b32.xlu0 %v619, 32
    %v625 = vpop.permute.xlu0 %624
    %v628 = vadd.f32 %v608, %v623
    %v629 = vadd.f32 %v609, %v625
    %v630 = vtanh.pop %v628
    %v631 = vtanh.pop %v629
    %634 = vrot.lane.b32.xlu0 %v630, 32
    %v635 = vpop.permute.xlu0 %634
    %636 = vrot.lane.b32.xlu0 %v631, 32
    %v637 = vpop.permute.xlu0 %636
    %v640 = vmul.f32 %v598, %v635
    %v641 = vmul.f32 %v599, %v637
    %v642 = vpack.c.bf16 %v641, %v640
    %s643 = scalar_lea.vmem [#allocation6], 16
    %v644 = vld [vmem:[%s643] sm:$0xff]
    %v645 = vld [vmem:[%s643 + $0x8] sm:$0xff]
    %646 = vmatprep.subr.bf16.mxu0 0
    %647 = vmatpush1.bf16.msra.mxu0 %v373
    %648 = vmatprep.subr.bf16.mxu0 0
    %649 = vmatpush1.bf16.msra.mxu0 %v374
    %650 = vmatprep.subr.bf16.mxu0 0
    %651 = vmatpush1.bf16.msra.mxu0 0
    %652 = vmatprep.subr.bf16.mxu0 0
    %653 = vmatpush1.bf16.msra.mxu0 0
    %654 = vmatprep.subr.bf16.mxu0 0
    %655 = vmatpush1.bf16.msra.mxu0 0
    %656 = vmatprep.subr.bf16.mxu0 0
    %657 = vmatpush1.bf16.msra.mxu0 0
    %658 = vmatprep.subr.bf16.mxu0 0
    %659 = vmatpush1.bf16.msra.mxu0 0
    %660 = vmatprep.subr.bf16.mxu0 0
    %661 = vmatpush1.bf16.msra.mxu0 0
    %662 = vmatprep.subr.bf16.mxu0 0
    %663 = vmatpush1.bf16.msra.mxu0 0
    %664 = vmatprep.subr.bf16.mxu0 0
    %665 = vmatpush1.bf16.msra.mxu0 0
    %666 = vmatprep.subr.bf16.mxu0 0
    %667 = vmatpush1.bf16.msra.mxu0 0
    %668 = vmatprep.subr.bf16.mxu0 0
    %669 = vmatpush1.bf16.msra.mxu0 0
    %670 = vmatprep.subr.bf16.mxu0 0
    %671 = vmatpush1.bf16.msra.mxu0 0
    %672 = vmatprep.subr.bf16.mxu0 0
    %673 = vmatpush1.bf16.msra.mxu0 0
    %674 = vmatprep.subr.bf16.mxu0 0
    %675 = vmatpush1.bf16.msra.mxu0 0
    %676 = vmatprep.subr.bf16.mxu0 0
    %677 = vmatpush1.bf16.msra.mxu0 0
    %678 = vmatprep.mubr.bf16.mxu0 0
    %679 = vmatmul.mubr.bf16.gmra.mrb[0].mxu0 %v491
    %v680 = vpop.f32.mrb[0].mxu0
    %v681 = vadd.f32 0.0, %v680
    %v682 = vpop.f32.mrb[0].mxu0
    %v683 = vpop.f32.mrb[0].mxu0
    %v684 = vadd.f32 0.0, %v683
    %v685 = vpop.f32.mrb[0].mxu0
    %686 = vdwg.mxu0
    %v687 = vadd.f32 %v644, %v681
    %v688 = vadd.f32 %v645, %v684
    %v689 = vmul.f32 %v687, %v352
    %v690 = vmul.f32 %v688, %v352
    %v691 = vtanh.pop %v689
    %v692 = vtanh.pop %v690
    %v693 = vmul.f32 %v691, 0.5
    %v694 = vmul.f32 %v692, 0.5
    %v695 = vadd.f32 %v693, 0.5
    %v696 = vadd.f32 %v694, 0.5
    %v697 = vmul.f32 %v695, %v460
    %v698 = vmul.f32 %v696, %v461
    %701 = vrot.lane.b32.xlu0 %v691, 32
    %v702 = vpop.permute.xlu0 %701
    %703 = vrot.lane.b32.xlu0 %v692, 32
    %v704 = vpop.permute.xlu0 %703
    %v707 = vmul.f32 %v695, %v702
    %v708 = vmul.f32 %v696, %v704
    %711 = vrot.lane.b32.xlu0 %v707, 32
    %v712 = vpop.permute.xlu0 %711
    %713 = vrot.lane.b32.xlu0 %v708, 32
    %v714 = vpop.permute.xlu0 %713
    %v717 = vadd.f32 %v697, %v712
    %v718 = vadd.f32 %v698, %v714
    %v719 = vtanh.pop %v717
    %v720 = vtanh.pop %v718
    %723 = vrot.lane.b32.xlu0 %v719, 32
    %v724 = vpop.permute.xlu0 %723
    %725 = vrot.lane.b32.xlu0 %v720, 32
    %v726 = vpop.permute.xlu0 %725
    %v729 = vmul.f32 %v695, %v724
    %v730 = vmul.f32 %v696, %v726
    %v731 = vpack.c.bf16 %v730, %v729
    %733 = vrot.lane.b32.xlu0 %v731, 64
    %v734 = vpop.permute.xlu0 %733
    %v736 = vsel %vm377, %v734, 0
    %738 = vmatprep.subr.bf16.mxu0 0
    %739 = vmatpush1.bf16.msra.mxu0 %v486
    %740 = vmatprep.subr.bf16.mxu0 0
    %741 = vmatpush1.bf16.msra.mxu0 %v487
    %742 = vmatprep.subr.bf16.mxu0 0
    %743 = vmatpush1.bf16.msra.mxu0 0
    %744 = vmatprep.subr.bf16.mxu0 0
    %745 = vmatpush1.bf16.msra.mxu0 0
    %746 = vmatprep.subr.bf16.mxu0 0
    %747 = vmatpush1.bf16.msra.mxu0 0
    %748 = vmatprep.subr.bf16.mxu0 0
    %749 = vmatpush1.bf16.msra.mxu0 0
    %750 = vmatprep.subr.bf16.mxu0 0
    %751 = vmatpush1.bf16.msra.mxu0 0
    %752 = vmatprep.subr.bf16.mxu0 0
    %753 = vmatpush1.bf16.msra.mxu0 0
    %754 = vmatprep.subr.bf16.mxu0 0
    %755 = vmatpush1.bf16.msra.mxu0 0
    %756 = vmatprep.subr.bf16.mxu0 0
    %757 = vmatpush1.bf16.msra.mxu0 0
    %758 = vmatprep.subr.bf16.mxu0 0
    %759 = vmatpush1.bf16.msra.mxu0 0
    %760 = vmatprep.subr.bf16.mxu0 0
    %761 = vmatpush1.bf16.msra.mxu0 0
    %762 = vmatprep.subr.bf16.mxu0 0
    %763 = vmatpush1.bf16.msra.mxu0 0
    %764 = vmatprep.subr.bf16.mxu0 0
    %765 = vmatpush1.bf16.msra.mxu0 0
    %766 = vmatprep.subr.bf16.mxu0 0
    %767 = vmatpush1.bf16.msra.mxu0 0
    %768 = vmatprep.subr.bf16.mxu0 0
    %769 = vmatpush1.bf16.msra.mxu0 0
    %770 = vmatprep.mubr.bf16.mxu0 0
    %771 = vmatmul.mubr.bf16.gmra.mrb[0].mxu0 %v736
    %v772 = vpop.f32.mrb[0].mxu0
    %v773 = vadd.f32 0.0, %v772
    %v774 = vpop.f32.mrb[0].mxu0
    %v775 = vpop.f32.mrb[0].mxu0
    %v776 = vadd.f32 0.0, %v775
    %v777 = vpop.f32.mrb[0].mxu0
    %778 = vdwg.mxu0
    %780 = vrot.lane.b32.xlu0 %v642, 64
    %v781 = vpop.permute.xlu0 %780
    %v783 = vsel %vm377, %v781, 0
    %785 = vmatprep.subr.bf16.mxu0 0
    %786 = vmatpush1.bf16.msra.mxu0 %v542
    %787 = vmatprep.subr.bf16.mxu0 0
    %788 = vmatpush1.bf16.msra.mxu0 %v543
    %789 = vmatprep.subr.bf16.mxu0 0
    %790 = vmatpush1.bf16.msra.mxu0 0
    %791 = vmatprep.subr.bf16.mxu0 0
    %792 = vmatpush1.bf16.msra.mxu0 0
    %793 = vmatprep.subr.bf16.mxu0 0
    %794 = vmatpush1.bf16.msra.mxu0 0
    %795 = vmatprep.subr.bf16.mxu0 0
    %796 = vmatpush1.bf16.msra.mxu0 0
    %797 = vmatprep.subr.bf16.mxu0 0
    %798 = vmatpush1.bf16.msra.mxu0 0
    %799 = vmatprep.subr.bf16.mxu0 0
    %800 = vmatpush1.bf16.msra.mxu0 0
    %801 = vmatprep.subr.bf16.mxu0 0
    %802 = vmatpush1.bf16.msra.mxu0 0
    %803 = vmatprep.subr.bf16.mxu0 0
    %804 = vmatpush1.bf16.msra.mxu0 0
    %805 = vmatprep.subr.bf16.mxu0 0
    %806 = vmatpush1.bf16.msra.mxu0 0
    %807 = vmatprep.subr.bf16.mxu0 0
    %808 = vmatpush1.bf16.msra.mxu0 0
    %809 = vmatprep.subr.bf16.mxu0 0
    %810 = vmatpush1.bf16.msra.mxu0 0
    %811 = vmatprep.subr.bf16.mxu0 0
    %812 = vmatpush1.bf16.msra.mxu0 0
    %813 = vmatprep.subr.bf16.mxu0 0
    %814 = vmatpush1.bf16.msra.mxu0 0
    %815 = vmatprep.subr.bf16.mxu0 0
    %816 = vmatpush1.bf16.msra.mxu0 0
    %817 = vmatprep.mubr.bf16.mxu0 0
    %818 = vmatmul.mubr.bf16.gmra.mrb[0].mxu0 %v783
    %v819 = vpop.f32.mrb[0].mxu0
    %v820 = vadd.f32 %v773, %v819
    %v821 = vpop.f32.mrb[0].mxu0
    %v822 = vpop.f32.mrb[0].mxu0
    %v823 = vadd.f32 %v776, %v822
    %v824 = vpop.f32.mrb[0].mxu0
    %825 = vdwg.mxu0
    %v826 = vadd.f32 %v820, %v345
    %v827 = vadd.f32 %v823, %v345
    %v828 = vmul.f32 %v826, %v352
    %v829 = vmul.f32 %v827, %v352
    %v830 = vtanh.pop %v828
    %v831 = vtanh.pop %v829
    %v832 = vmul.f32 %v830, 0.5
    %v833 = vmul.f32 %v831, 0.5
    %v834 = vadd.f32 %v832, 0.5
    %v835 = vadd.f32 %v833, 0.5
    %v836 = vmul.f32 %v834, %v628
    %v837 = vmul.f32 %v835, %v629
    %840 = vrot.lane.b32.xlu0 %v830, 32
    %v841 = vpop.permute.xlu0 %840
    %842 = vrot.lane.b32.xlu0 %v831, 32
    %v843 = vpop.permute.xlu0 %842
    %v846 = vmul.f32 %v834, %v841
    %v847 = vmul.f32 %v835, %v843
    %850 = vrot.lane.b32.xlu0 %v846, 32
    %v851 = vpop.permute.xlu0 %850
    %852 = vrot.lane.b32.xlu0 %v847, 32
    %v853 = vpop.permute.xlu0 %852
    %v856 = vadd.f32 %v836, %v851
    %v857 = vadd.f32 %v837, %v853
    %v858 = vtanh.pop %v856
    %v859 = vtanh.pop %v857
    %862 = vrot.lane.b32.xlu0 %v858, 32
    %v863 = vpop.permute.xlu0 %862
    %864 = vrot.lane.b32.xlu0 %v859, 32
    %v865 = vpop.permute.xlu0 %864
    %v868 = vmul.f32 %v834, %v863
    %v869 = vmul.f32 %v835, %v865
    %v870 = vpack.c.bf16 %v869, %v868
    %s871 = scalar_lea.vmem [#allocation6], 32
    %v872 = vld [vmem:[%s871] sm:$0xff]
    %v873 = vld [vmem:[%s871 + $0x8] sm:$0xff]
    %874 = vmatprep.subr.bf16.mxu0 0
    %875 = vmatpush1.bf16.msra.mxu0 %v373
    %876 = vmatprep.subr.bf16.mxu0 0
    %877 = vmatpush1.bf16.msra.mxu0 %v374
    %878 = vmatprep.subr.bf16.mxu0 0
    %879 = vmatpush1.bf16.msra.mxu0 0
    %880 = vmatprep.subr.bf16.mxu0 0
    %881 = vmatpush1.bf16.msra.mxu0 0
    %882 = vmatprep.subr.bf16.mxu0 0
    %883 = vmatpush1.bf16.msra.mxu0 0
    %884 = vmatprep.subr.bf16.mxu0 0
    %885 = vmatpush1.bf16.msra.mxu0 0
    %886 = vmatprep.subr.bf16.mxu0 0
    %887 = vmatpush1.bf16.msra.mxu0 0
    %888 = vmatprep.subr.bf16.mxu0 0
    %889 = vmatpush1.bf16.msra.mxu0 0
    %890 = vmatprep.subr.bf16.mxu0 0
    %891 = vmatpush1.bf16.msra.mxu0 0
    %892 = vmatprep.subr.bf16.mxu0 0
    %893 = vmatpush1.bf16.msra.mxu0 0
    %894 = vmatprep.subr.bf16.mxu0 0
    %895 = vmatpush1.bf16.msra.mxu0 0
    %896 = vmatprep.subr.bf16.mxu0 0
    %897 = vmatpush1.bf16.msra.mxu0 0
    %898 = vmatprep.subr.bf16.mxu0 0
    %899 = vmatpush1.bf16.msra.mxu0 0
    %900 = vmatprep.subr.bf16.mxu0 0
    %901 = vmatpush1.bf16.msra.mxu0 0
    %902 = vmatprep.subr.bf16.mxu0 0
    %903 = vmatpush1.bf16.msra.mxu0 0
    %904 = vmatprep.subr.bf16.mxu0 0
    %905 = vmatpush1.bf16.msra.mxu0 0
    %906 = vmatprep.mubr.bf16.mxu0 0
    %907 = vmatmul.mubr.bf16.gmra.mrb[0].mxu0 %v736
    %v908 = vpop.f32.mrb[0].mxu0
    %v909 = vadd.f32 0.0, %v908
    %v910 = vpop.f32.mrb[0].mxu0
    %v911 = vpop.f32.mrb[0].mxu0
    %v912 = vadd.f32 0.0, %v911
    %v913 = vpop.f32.mrb[0].mxu0
    %914 = vdwg.mxu0
    %v915 = vadd.f32 %v872, %v909
    %v916 = vadd.f32 %v873, %v912
    %v917 = vmul.f32 %v915, %v352
    %v918 = vmul.f32 %v916, %v352
    %v919 = vtanh.pop %v917
    %v920 = vtanh.pop %v918
    %v921 = vmul.f32 %v919, 0.5
    %v922 = vmul.f32 %v920, 0.5
    %v923 = vadd.f32 %v921, 0.5
    %v924 = vadd.f32 %v922, 0.5
    %v925 = vmul.f32 %v923, %v717
    %v926 = vmul.f32 %v924, %v718
    %929 = vrot.lane.b32.xlu0 %v919, 32
    %v930 = vpop.permute.xlu0 %929
    %931 = vrot.lane.b32.xlu0 %v920, 32
    %v932 = vpop.permute.xlu0 %931
    %v935 = vmul.f32 %v923, %v930
    %v936 = vmul.f32 %v924, %v932
    %939 = vrot.lane.b32.xlu0 %v935, 32
    %v940 = vpop.permute.xlu0 %939
    %941 = vrot.lane.b32.xlu0 %v936, 32
    %v942 = vpop.permute.xlu0 %941
    %v945 = vadd.f32 %v925, %v940
    %v946 = vadd.f32 %v926, %v942
    %v947 = vtanh.pop %v945
    %v948 = vtanh.pop %v946
    %951 = vrot.lane.b32.xlu0 %v947, 32
    %v952 = vpop.permute.xlu0 %951
    %953 = vrot.lane.b32.xlu0 %v948, 32
    %v954 = vpop.permute.xlu0 %953
    %v957 = vmul.f32 %v923, %v952
    %v958 = vmul.f32 %v924, %v954
    %v959 = vpack.c.bf16 %v958, %v957
    %961 = vrot.lane.b32.xlu0 %v959, 64
    %v962 = vpop.permute.xlu0 %961
    %v964 = vsel %vm377, %v962, 0
    %966 = vmatprep.subr.bf16.mxu0 0
    %967 = vmatpush1.bf16.msra.mxu0 %v486
    %968 = vmatprep.subr.bf16.mxu0 0
    %969 = vmatpush1.bf16.msra.mxu0 %v487
    %970 = vmatprep.subr.bf16.mxu0 0
    %971 = vmatpush1.bf16.msra.mxu0 0
    %972 = vmatprep.subr.bf16.mxu0 0
    %973 = vmatpush1.bf16.msra.mxu0 0
    %974 = vmatprep.subr.bf16.mxu0 0
    %975 = vmatpush1.bf16.msra.mxu0 0
    %976 = vmatprep.subr.bf16.mxu0 0
    %977 = vmatpush1.bf16.msra.mxu0 0
    %978 = vmatprep.subr.bf16.mxu0 0
    %979 = vmatpush1.bf16.msra.mxu0 0
    %980 = vmatprep.subr.bf16.mxu0 0
    %981 = vmatpush1.bf16.msra.mxu0 0
    %982 = vmatprep.subr.bf16.mxu0 0
    %983 = vmatpush1.bf16.msra.mxu0 0
    %984 = vmatprep.subr.bf16.mxu0 0
    %985 = vmatpush1.bf16.msra.mxu0 0
    %986 = vmatprep.subr.bf16.mxu0 0
    %987 = vmatpush1.bf16.msra.mxu0 0
    %988 = vmatprep.subr.bf16.mxu0 0
    %989 = vmatpush1.bf16.msra.mxu0 0
    %990 = vmatprep.subr.bf16.mxu0 0
    %991 = vmatpush1.bf16.msra.mxu0 0
    %992 = vmatprep.subr.bf16.mxu0 0
    %993 = vmatpush1.bf16.msra.mxu0 0
    %994 = vmatprep.subr.bf16.mxu0 0
    %995 = vmatpush1.bf16.msra.mxu0 0
    %996 = vmatprep.subr.bf16.mxu0 0
    %997 = vmatpush1.bf16.msra.mxu0 0
    %998 = vmatprep.mubr.bf16.mxu0 0
    %999 = vmatmul.mubr.bf16.gmra.mrb[0].mxu0 %v964
    %v1000 = vpop.f32.mrb[0].mxu0
    %v1001 = vadd.f32 0.0, %v1000
    %v1002 = vpop.f32.mrb[0].mxu0
    %v1003 = vpop.f32.mrb[0].mxu0
    %v1004 = vadd.f32 0.0, %v1003
    %v1005 = vpop.f32.mrb[0].mxu0
    %1006 = vdwg.mxu0
    %1008 = vrot.lane.b32.xlu0 %v870, 64
    %v1009 = vpop.permute.xlu0 %1008
    %v1011 = vsel %vm377, %v1009, 0
    %1013 = vmatprep.subr.bf16.mxu0 0
    %1014 = vmatpush1.bf16.msra.mxu0 %v542
    %1015 = vmatprep.subr.bf16.mxu0 0
    %1016 = vmatpush1.bf16.msra.mxu0 %v543
    %1017 = vmatprep.subr.bf16.mxu0 0
    %1018 = vmatpush1.bf16.msra.mxu0 0
    %1019 = vmatprep.subr.bf16.mxu0 0
    %1020 = vmatpush1.bf16.msra.mxu0 0
    %1021 = vmatprep.subr.bf16.mxu0 0
    %1022 = vmatpush1.bf16.msra.mxu0 0
    %1023 = vmatprep.subr.bf16.mxu0 0
    %1024 = vmatpush1.bf16.msra.mxu0 0
    %1025 = vmatprep.subr.bf16.mxu0 0
    %1026 = vmatpush1.bf16.msra.mxu0 0
    %1027 = vmatprep.subr.bf16.mxu0 0
    %1028 = vmatpush1.bf16.msra.mxu0 0
    %1029 = vmatprep.subr.bf16.mxu0 0
    %1030 = vmatpush1.bf16.msra.mxu0 0
    %1031 = vmatprep.subr.bf16.mxu0 0
    %1032 = vmatpush1.bf16.msra.mxu0 0
    %1033 = vmatprep.subr.bf16.mxu0 0
    %1034 = vmatpush1.bf16.msra.mxu0 0
    %1035 = vmatprep.subr.bf16.mxu0 0
    %1036 = vmatpush1.bf16.msra.mxu0 0
    %1037 = vmatprep.subr.bf16.mxu0 0
    %1038 = vmatpush1.bf16.msra.mxu0 0
    %1039 = vmatprep.subr.bf16.mxu0 0
    %1040 = vmatpush1.bf16.msra.mxu0 0
    %1041 = vmatprep.subr.bf16.mxu0 0
    %1042 = vmatpush1.bf16.msra.mxu0 0
    %1043 = vmatprep.subr.bf16.mxu0 0
    %1044 = vmatpush1.bf16.msra.mxu0 0
    %1045 = vmatprep.mubr.bf16.mxu0 0
    %1046 = vmatmul.mubr.bf16.gmra.mrb[0].mxu0 %v1011
    %v1047 = vpop.f32.mrb[0].mxu0
    %v1048 = vadd.f32 %v1001, %v1047
    %v1049 = vpop.f32.mrb[0].mxu0
    %v1050 = vpop.f32.mrb[0].mxu0
    %v1051 = vadd.f32 %v1004, %v1050
    %v1052 = vpop.f32.mrb[0].mxu0
    %1053 = vdwg.mxu0
    %v1054 = vadd.f32 %v1048, %v345
    %v1055 = vadd.f32 %v1051, %v345
    %v1056 = vmul.f32 %v1054, %v352
    %v1057 = vmul.f32 %v1055, %v352
    %v1058 = vtanh.pop %v1056
    %v1059 = vtanh.pop %v1057
    %v1060 = vmul.f32 %v1058, 0.5
    %v1061 = vmul.f32 %v1059, 0.5
    %v1062 = vadd.f32 %v1060, 0.5
    %v1063 = vadd.f32 %v1061, 0.5
    %v1064 = vmul.f32 %v1062, %v856
    %v1065 = vmul.f32 %v1063, %v857
    %1068 = vrot.lane.b32.xlu0 %v1058, 32
    %v1069 = vpop.permute.xlu0 %1068
    %1070 = vrot.lane.b32.xlu0 %v1059, 32
    %v1071 = vpop.permute.xlu0 %1070
    %v1074 = vmul.f32 %v1062, %v1069
    %v1075 = vmul.f32 %v1063, %v1071
    %1078 = vrot.lane.b32.xlu0 %v1074, 32
    %v1079 = vpop.permute.xlu0 %1078
    %1080 = vrot.lane.b32.xlu0 %v1075, 32
    %v1081 = vpop.permute.xlu0 %1080
    %v1084 = vadd.f32 %v1064, %v1079
    %v1085 = vadd.f32 %v1065, %v1081
    %v1086 = vtanh.pop %v1084
    %v1087 = vtanh.pop %v1085
    %1090 = vrot.lane.b32.xlu0 %v1086, 32
    %v1091 = vpop.permute.xlu0 %1090
    %1092 = vrot.lane.b32.xlu0 %v1087, 32
    %v1093 = vpop.permute.xlu0 %1092
    %v1096 = vmul.f32 %v1062, %v1091
    %v1097 = vmul.f32 %v1063, %v1093
    %v1098 = vpack.c.bf16 %v1097, %v1096
    %s1099 = scalar_lea.vmem [#allocation6], 48
    %v1100 = vld [vmem:[%s1099] sm:$0xff]
    %v1101 = vld [vmem:[%s1099 + $0x8] sm:$0xff]
    %1102 = vmatprep.subr.bf16.mxu0 0
    %1103 = vmatpush1.bf16.msra.mxu0 %v373
    %1104 = vmatprep.subr.bf16.mxu0 0
    %1105 = vmatpush1.bf16.msra.mxu0 %v374
    %1106 = vmatprep.subr.bf16.mxu0 0
    %1107 = vmatpush1.bf16.msra.mxu0 0
    %1108 = vmatprep.subr.bf16.mxu0 0
    %1109 = vmatpush1.bf16.msra.mxu0 0
    %1110 = vmatprep.subr.bf16.mxu0 0
    %1111 = vmatpush1.bf16.msra.mxu0 0
    %1112 = vmatprep.subr.bf16.mxu0 0
    %1113 = vmatpush1.bf16.msra.mxu0 0
    %1114 = vmatprep.subr.bf16.mxu0 0
    %1115 = vmatpush1.bf16.msra.mxu0 0
    %1116 = vmatprep.subr.bf16.mxu0 0
    %1117 = vmatpush1.bf16.msra.mxu0 0
    %1118 = vmatprep.subr.bf16.mxu0 0
    %1119 = vmatpush1.bf16.msra.mxu0 0
    %1120 = vmatprep.subr.bf16.mxu0 0
    %1121 = vmatpush1.bf16.msra.mxu0 0
    %1122 = vmatprep.subr.bf16.mxu0 0
    %1123 = vmatpush1.bf16.msra.mxu0 0
    %1124 = vmatprep.subr.bf16.mxu0 0
    %1125 = vmatpush1.bf16.msra.mxu0 0
    %1126 = vmatprep.subr.bf16.mxu0 0
    %1127 = vmatpush1.bf16.msra.mxu0 0
    %1128 = vmatprep.subr.bf16.mxu0 0
    %1129 = vmatpush1.bf16.msra.mxu0 0
    %1130 = vmatprep.subr.bf16.mxu0 0
    %1131 = vmatpush1.bf16.msra.mxu0 0
    %1132 = vmatprep.subr.bf16.mxu0 0
    %1133 = vmatpush1.bf16.msra.mxu0 0
    %1134 = vmatprep.mubr.bf16.mxu0 0
    %1135 = vmatmul.mubr.bf16.gmra.mrb[0].mxu0 %v964
    %v1136 = vpop.f32.mrb[0].mxu0
    %v1137 = vadd.f32 0.0, %v1136
    %v1138 = vpop.f32.mrb[0].mxu0
    %v1139 = vpop.f32.mrb[0].mxu0
    %v1140 = vadd.f32 0.0, %v1139
    %v1141 = vpop.f32.mrb[0].mxu0
    %1142 = vdwg.mxu0
    %v1143 = vadd.f32 %v1100, %v1137
    %v1144 = vadd.f32 %v1101, %v1140
    %v1145 = vmul.f32 %v1143, %v352
    %v1146 = vmul.f32 %v1144, %v352
    %v1147 = vtanh.pop %v1145
    %v1148 = vtanh.pop %v1146
    %v1149 = vmul.f32 %v1147, 0.5
    %v1150 = vmul.f32 %v1148, 0.5
    %v1151 = vadd.f32 %v1149, 0.5
    %v1152 = vadd.f32 %v1150, 0.5
    %v1153 = vmul.f32 %v1151, %v945
    %v1154 = vmul.f32 %v1152, %v946
    %1157 = vrot.lane.b32.xlu0 %v1147, 32
    %v1158 = vpop.permute.xlu0 %1157
    %1159 = vrot.lane.b32.xlu0 %v1148, 32
    %v1160 = vpop.permute.xlu0 %1159
    %v1163 = vmul.f32 %v1151, %v1158
    %v1164 = vmul.f32 %v1152, %v1160
    %1167 = vrot.lane.b32.xlu0 %v1163, 32
    %v1168 = vpop.permute.xlu0 %1167
    %1169 = vrot.lane.b32.xlu0 %v1164, 32
    %v1170 = vpop.permute.xlu0 %1169
    %v1173 = vadd.f32 %v1153, %v1168
    %v1174 = vadd.f32 %v1154, %v1170
    %v1175 = vtanh.pop %v1173
    %v1176 = vtanh.pop %v1174
    %1179 = vrot.lane.b32.xlu0 %v1175, 32
    %v1180 = vpop.permute.xlu0 %1179
    %1181 = vrot.lane.b32.xlu0 %v1176, 32
    %v1182 = vpop.permute.xlu0 %1181
    %v1185 = vmul.f32 %v1151, %v1180
    %v1186 = vmul.f32 %v1152, %v1182
    %v1187 = vpack.c.bf16 %v1186, %v1185
    %1189 = vrot.lane.b32.xlu0 %v1187, 64
    %v1190 = vpop.permute.xlu0 %1189
    %v1192 = vsel %vm377, %v1190, 0
    %1194 = vmatprep.subr.bf16.mxu0 0
    %1195 = vmatpush1.bf16.msra.mxu0 %v486
    %1196 = vmatprep.subr.bf16.mxu0 0
    %1197 = vmatpush1.bf16.msra.mxu0 %v487
    %1198 = vmatprep.subr.bf16.mxu0 0
    %1199 = vmatpush1.bf16.msra.mxu0 0
    %1200 = vmatprep.subr.bf16.mxu0 0
    %1201 = vmatpush1.bf16.msra.mxu0 0
    %1202 = vmatprep.subr.bf16.mxu0 0
    %1203 = vmatpush1.bf16.msra.mxu0 0
    %1204 = vmatprep.subr.bf16.mxu0 0
    %1205 = vmatpush1.bf16.msra.mxu0 0
    %1206 = vmatprep.subr.bf16.mxu0 0
    %1207 = vmatpush1.bf16.msra.mxu0 0
    %1208 = vmatprep.subr.bf16.mxu0 0
    %1209 = vmatpush1.bf16.msra.mxu0 0
    %1210 = vmatprep.subr.bf16.mxu0 0
    %1211 = vmatpush1.bf16.msra.mxu0 0
    %1212 = vmatprep.subr.bf16.mxu0 0
    %1213 = vmatpush1.bf16.msra.mxu0 0
    %1214 = vmatprep.subr.bf16.mxu0 0
    %1215 = vmatpush1.bf16.msra.mxu0 0
    %1216 = vmatprep.subr.bf16.mxu0 0
    %1217 = vmatpush1.bf16.msra.mxu0 0
    %1218 = vmatprep.subr.bf16.mxu0 0
    %1219 = vmatpush1.bf16.msra.mxu0 0
    %1220 = vmatprep.subr.bf16.mxu0 0
    %1221 = vmatpush1.bf16.msra.mxu0 0
    %1222 = vmatprep.subr.bf16.mxu0 0
    %1223 = vmatpush1.bf16.msra.mxu0 0
    %1224 = vmatprep.subr.bf16.mxu0 0
    %1225 = vmatpush1.bf16.msra.mxu0 0
    %1226 = vmatprep.mubr.bf16.mxu0 0
    %1227 = vmatmul.mubr.bf16.gmra.mrb[0].mxu0 %v1192
    %v1228 = vpop.f32.mrb[0].mxu0
    %v1229 = vadd.f32 0.0, %v1228
    %v1230 = vpop.f32.mrb[0].mxu0
    %v1231 = vpop.f32.mrb[0].mxu0
    %v1232 = vadd.f32 0.0, %v1231
    %v1233 = vpop.f32.mrb[0].mxu0
    %1234 = vdwg.mxu0
    %1236 = vrot.lane.b32.xlu0 %v1098, 64
    %v1237 = vpop.permute.xlu0 %1236
    %v1239 = vsel %vm377, %v1237, 0
    %1241 = vmatprep.subr.bf16.mxu0 0
    %1242 = vmatpush1.bf16.msra.mxu0 %v542
    %1243 = vmatprep.subr.bf16.mxu0 0
    %1244 = vmatpush1.bf16.msra.mxu0 %v543
    %1245 = vmatprep.subr.bf16.mxu0 0
    %1246 = vmatpush1.bf16.msra.mxu0 0
    %1247 = vmatprep.subr.bf16.mxu0 0
    %1248 = vmatpush1.bf16.msra.mxu0 0
    %1249 = vmatprep.subr.bf16.mxu0 0
    %1250 = vmatpush1.bf16.msra.mxu0 0
    %1251 = vmatprep.subr.bf16.mxu0 0
    %1252 = vmatpush1.bf16.msra.mxu0 0
    %1253 = vmatprep.subr.bf16.mxu0 0
    %1254 = vmatpush1.bf16.msra.mxu0 0
    %1255 = vmatprep.subr.bf16.mxu0 0
    %1256 = vmatpush1.bf16.msra.mxu0 0
    %1257 = vmatprep.subr.bf16.mxu0 0
    %1258 = vmatpush1.bf16.msra.mxu0 0
    %1259 = vmatprep.subr.bf16.mxu0 0
    %1260 = vmatpush1.bf16.msra.mxu0 0
    %1261 = vmatprep.subr.bf16.mxu0 0
    %1262 = vmatpush1.bf16.msra.mxu0 0
    %1263 = vmatprep.subr.bf16.mxu0 0
    %1264 = vmatpush1.bf16.msra.mxu0 0
    %1265 = vmatprep.subr.bf16.mxu0 0
    %1266 = vmatpush1.bf16.msra.mxu0 0
    %1267 = vmatprep.subr.bf16.mxu0 0
    %1268 = vmatpush1.bf16.msra.mxu0 0
    %1269 = vmatprep.subr.bf16.mxu0 0
    %1270 = vmatpush1.bf16.msra.mxu0 0
    %1271 = vmatprep.subr.bf16.mxu0 0
    %1272 = vmatpush1.bf16.msra.mxu0 0
    %1273 = vmatprep.mubr.bf16.mxu0 0
    %1274 = vmatmul.mubr.bf16.gmra.mrb[0].mxu0 %v1239
    %v1275 = vpop.f32.mrb[0].mxu0
    %v1276 = vadd.f32 %v1229, %v1275
    %v1277 = vpop.f32.mrb[0].mxu0
    %v1278 = vpop.f32.mrb[0].mxu0
    %v1279 = vadd.f32 %v1232, %v1278
    %v1280 = vpop.f32.mrb[0].mxu0
    %1281 = vdwg.mxu0
    %v1282 = vadd.f32 %v1276, %v345
    %v1283 = vadd.f32 %v1279, %v345
    %v1284 = vmul.f32 %v1282, %v352
    %v1285 = vmul.f32 %v1283, %v352
    %v1286 = vtanh.pop %v1284
    %v1287 = vtanh.pop %v1285
    %v1288 = vmul.f32 %v1286, 0.5
    %v1289 = vmul.f32 %v1287, 0.5
    %v1290 = vadd.f32 %v1288, 0.5
    %v1291 = vadd.f32 %v1289, 0.5
    %v1292 = vmul.f32 %v1290, %v1084
    %v1293 = vmul.f32 %v1291, %v1085
    %1296 = vrot.lane.b32.xlu0 %v1286, 32
    %v1297 = vpop.permute.xlu0 %1296
    %1298 = vrot.lane.b32.xlu0 %v1287, 32
    %v1299 = vpop.permute.xlu0 %1298
    %v1302 = vmul.f32 %v1290, %v1297
    %v1303 = vmul.f32 %v1291, %v1299
    %1306 = vrot.lane.b32.xlu0 %v1302, 32
    %v1307 = vpop.permute.xlu0 %1306
    %1308 = vrot.lane.b32.xlu0 %v1303, 32
    %v1309 = vpop.permute.xlu0 %1308
    %v1312 = vadd.f32 %v1292, %v1307
    %v1313 = vadd.f32 %v1293, %v1309
    %v1314 = vtanh.pop %v1312
    %v1315 = vtanh.pop %v1313
    %1318 = vrot.lane.b32.xlu0 %v1314, 32
    %v1319 = vpop.permute.xlu0 %1318
    %1320 = vrot.lane.b32.xlu0 %v1315, 32
    %v1321 = vpop.permute.xlu0 %1320
    %v1324 = vmul.f32 %v1290, %v1319
    %v1325 = vmul.f32 %v1291, %v1321
    %v1326 = vpack.c.bf16 %v1325, %v1324
    %s1327 = scalar_lea.vmem [#allocation6], 64
    %v1328 = vld [vmem:[%s1327] sm:$0xff]
    %v1329 = vld [vmem:[%s1327 + $0x8] sm:$0xff]
    %1330 = vmatprep.subr.bf16.mxu0 0
    %1331 = vmatpush1.bf16.msra.mxu0 %v373
    %1332 = vmatprep.subr.bf16.mxu0 0
    %1333 = vmatpush1.bf16.msra.mxu0 %v374
    %1334 = vmatprep.subr.bf16.mxu0 0
    %1335 = vmatpush1.bf16.msra.mxu0 0
    %1336 = vmatprep.subr.bf16.mxu0 0
    %1337 = vmatpush1.bf16.msra.mxu0 0
    %1338 = vmatprep.subr.bf16.mxu0 0
    %1339 = vmatpush1.bf16.msra.mxu0 0
    %1340 = vmatprep.subr.bf16.mxu0 0
    %1341 = vmatpush1.bf16.msra.mxu0 0
    %1342 = vmatprep.subr.bf16.mxu0 0
    %1343 = vmatpush1.bf16.msra.mxu0 0
    %1344 = vmatprep.subr.bf16.mxu0 0
    %1345 = vmatpush1.bf16.msra.mxu0 0
    %1346 = vmatprep.subr.bf16.mxu0 0
    %1347 = vmatpush1.bf16.msra.mxu0 0
    %1348 = vmatprep.subr.bf16.mxu0 0
    %1349 = vmatpush1.bf16.msra.mxu0 0
    %1350 = vmatprep.subr.bf16.mxu0 0
    %1351 = vmatpush1.bf16.msra.mxu0 0
    %1352 = vmatprep.subr.bf16.mxu0 0
    %1353 = vmatpush1.bf16.msra.mxu0 0
    %1354 = vmatprep.subr.bf16.mxu0 0
    %1355 = vmatpush1.bf16.msra.mxu0 0
    %1356 = vmatprep.subr.bf16.mxu0 0
    %1357 = vmatpush1.bf16.msra.mxu0 0
    %1358 = vmatprep.subr.bf16.mxu0 0
    %1359 = vmatpush1.bf16.msra.mxu0 0
    %1360 = vmatprep.subr.bf16.mxu0 0
    %1361 = vmatpush1.bf16.msra.mxu0 0
    %1362 = vmatprep.mubr.bf16.mxu0 0
    %1363 = vmatmul.mubr.bf16.gmra.mrb[0].mxu0 %v1192
    %v1364 = vpop.f32.mrb[0].mxu0
    %v1365 = vadd.f32 0.0, %v1364
    %v1366 = vpop.f32.mrb[0].mxu0
    %v1367 = vpop.f32.mrb[0].mxu0
    %v1368 = vadd.f32 0.0, %v1367
    %v1369 = vpop.f32.mrb[0].mxu0
    %1370 = vdwg.mxu0
    %v1371 = vadd.f32 %v1328, %v1365
    %v1372 = vadd.f32 %v1329, %v1368
    %v1373 = vmul.f32 %v1371, %v352
    %v1374 = vmul.f32 %v1372, %v352
    %v1375 = vtanh.pop %v1373
    %v1376 = vtanh.pop %v1374
    %v1377 = vmul.f32 %v1375, 0.5
    %v1378 = vmul.f32 %v1376, 0.5
    %v1379 = vadd.f32 %v1377, 0.5
    %v1380 = vadd.f32 %v1378, 0.5
    %v1381 = vmul.f32 %v1379, %v1173
    %v1382 = vmul.f32 %v1380, %v1174
    %1385 = vrot.lane.b32.xlu0 %v1375, 32
    %v1386 = vpop.permute.xlu0 %1385
    %1387 = vrot.lane.b32.xlu0 %v1376, 32
    %v1388 = vpop.permute.xlu0 %1387
    %v1391 = vmul.f32 %v1379, %v1386
    %v1392 = vmul.f32 %v1380, %v1388
    %1395 = vrot.lane.b32.xlu0 %v1391, 32
    %v1396 = vpop.permute.xlu0 %1395
    %1397 = vrot.lane.b32.xlu0 %v1392, 32
    %v1398 = vpop.permute.xlu0 %1397
    %v1401 = vadd.f32 %v1381, %v1396
    %v1402 = vadd.f32 %v1382, %v1398
    %v1403 = vtanh.pop %v1401
    %v1404 = vtanh.pop %v1402
    %1407 = vrot.lane.b32.xlu0 %v1403, 32
    %v1408 = vpop.permute.xlu0 %1407
    %1409 = vrot.lane.b32.xlu0 %v1404, 32
    %v1410 = vpop.permute.xlu0 %1409
    %v1413 = vmul.f32 %v1379, %v1408
    %v1414 = vmul.f32 %v1380, %v1410
    %v1415 = vpack.c.bf16 %v1414, %v1413
    %1417 = vrot.lane.b32.xlu0 %v1415, 64
    %v1418 = vpop.permute.xlu0 %1417
    %v1420 = vsel %vm377, %v1418, 0
    %1422 = vmatprep.subr.bf16.mxu0 0
    %1423 = vmatpush1.bf16.msra.mxu0 %v486
    %1424 = vmatprep.subr.bf16.mxu0 0
    %1425 = vmatpush1.bf16.msra.mxu0 %v487
    %1426 = vmatprep.subr.bf16.mxu0 0
    %1427 = vmatpush1.bf16.msra.mxu0 0
    %1428 = vmatprep.subr.bf16.mxu0 0
    %1429 = vmatpush1.bf16.msra.mxu0 0
    %1430 = vmatprep.subr.bf16.mxu0 0
    %1431 = vmatpush1.bf16.msra.mxu0 0
    %1432 = vmatprep.subr.bf16.mxu0 0
    %1433 = vmatpush1.bf16.msra.mxu0 0
    %1434 = vmatprep.subr.bf16.mxu0 0
    %1435 = vmatpush1.bf16.msra.mxu0 0
    %1436 = vmatprep.subr.bf16.mxu0 0
    %1437 = vmatpush1.bf16.msra.mxu0 0
    %1438 = vmatprep.subr.bf16.mxu0 0
    %1439 = vmatpush1.bf16.msra.mxu0 0
    %1440 = vmatprep.subr.bf16.mxu0 0
    %1441 = vmatpush1.bf16.msra.mxu0 0
    %1442 = vmatprep.subr.bf16.mxu0 0
    %1443 = vmatpush1.bf16.msra.mxu0 0
    %1444 = vmatprep.subr.bf16.mxu0 0
    %1445 = vmatpush1.bf16.msra.mxu0 0
    %1446 = vmatprep.subr.bf16.mxu0 0
    %1447 = vmatpush1.bf16.msra.mxu0 0
    %1448 = vmatprep.subr.bf16.mxu0 0
    %1449 = vmatpush1.bf16.msra.mxu0 0
    %1450 = vmatprep.subr.bf16.mxu0 0
    %1451 = vmatpush1.bf16.msra.mxu0 0
    %1452 = vmatprep.subr.bf16.mxu0 0
    %1453 = vmatpush1.bf16.msra.mxu0 0
    %1454 = vmatprep.mubr.bf16.mxu0 0
    %1455 = vmatmul.mubr.bf16.gmra.mrb[0].mxu0 %v1420
    %v1456 = vpop.f32.mrb[0].mxu0
    %v1457 = vadd.f32 0.0, %v1456
    %v1458 = vpop.f32.mrb[0].mxu0
    %v1459 = vpop.f32.mrb[0].mxu0
    %v1460 = vadd.f32 0.0, %v1459
    %v1461 = vpop.f32.mrb[0].mxu0
    %1462 = vdwg.mxu0
    %1464 = vrot.lane.b32.xlu0 %v1326, 64
    %v1465 = vpop.permute.xlu0 %1464
    %v1467 = vsel %vm377, %v1465, 0
    %1469 = vmatprep.subr.bf16.mxu0 0
    %1470 = vmatpush1.bf16.msra.mxu0 %v542
    %1471 = vmatprep.subr.bf16.mxu0 0
    %1472 = vmatpush1.bf16.msra.mxu0 %v543
    %1473 = vmatprep.subr.bf16.mxu0 0
    %1474 = vmatpush1.bf16.msra.mxu0 0
    %1475 = vmatprep.subr.bf16.mxu0 0
    %1476 = vmatpush1.bf16.msra.mxu0 0
    %1477 = vmatprep.subr.bf16.mxu0 0
    %1478 = vmatpush1.bf16.msra.mxu0 0
    %1479 = vmatprep.subr.bf16.mxu0 0
    %1480 = vmatpush1.bf16.msra.mxu0 0
    %1481 = vmatprep.subr.bf16.mxu0 0
    %1482 = vmatpush1.bf16.msra.mxu0 0
    %1483 = vmatprep.subr.bf16.mxu0 0
    %1484 = vmatpush1.bf16.msra.mxu0 0
    %1485 = vmatprep.subr.bf16.mxu0 0
    %1486 = vmatpush1.bf16.msra.mxu0 0
    %1487 = vmatprep.subr.bf16.mxu0 0
    %1488 = vmatpush1.bf16.msra.mxu0 0
    %1489 = vmatprep.subr.bf16.mxu0 0
    %1490 = vmatpush1.bf16.msra.mxu0 0
    %1491 = vmatprep.subr.bf16.mxu0 0
    %1492 = vmatpush1.bf16.msra.mxu0 0
    %1493 = vmatprep.subr.bf16.mxu0 0
    %1494 = vmatpush1.bf16.msra.mxu0 0
    %1495 = vmatprep.subr.bf16.mxu0 0
    %1496 = vmatpush1.bf16.msra.mxu0 0
    %1497 = vmatprep.subr.bf16.mxu0 0
    %1498 = vmatpush1.bf16.msra.mxu0 0
    %1499 = vmatprep.subr.bf16.mxu0 0
    %1500 = vmatpush1.bf16.msra.mxu0 0
    %1501 = vmatprep.mubr.bf16.mxu0 0
    %1502 = vmatmul.mubr.bf16.gmra.mrb[0].mxu0 %v1467
    %v1503 = vpop.f32.mrb[0].mxu0
    %v1504 = vadd.f32 %v1457, %v1503
    %v1505 = vpop.f32.mrb[0].mxu0
    %v1506 = vpop.f32.mrb[0].mxu0
    %v1507 = vadd.f32 %v1460, %v1506
    %v1508 = vpop.f32.mrb[0].mxu0
    %1509 = vdwg.mxu0
    %v1510 = vadd.f32 %v1504, %v345
    %v1511 = vadd.f32 %v1507, %v345
    %v1512 = vmul.f32 %v1510, %v352
    %v1513 = vmul.f32 %v1511, %v352
    %v1514 = vtanh.pop %v1512
    %v1515 = vtanh.pop %v1513
    %v1516 = vmul.f32 %v1514, 0.5
    %v1517 = vmul.f32 %v1515, 0.5
    %v1518 = vadd.f32 %v1516, 0.5
    %v1519 = vadd.f32 %v1517, 0.5
    %v1520 = vmul.f32 %v1518, %v1312
    %v1521 = vmul.f32 %v1519, %v1313
    %1524 = vrot.lane.b32.xlu0 %v1514, 32
    %v1525 = vpop.permute.xlu0 %1524
    %1526 = vrot.lane.b32.xlu0 %v1515, 32
    %v1527 = vpop.permute.xlu0 %1526
    %v1530 = vmul.f32 %v1518, %v1525
    %v1531 = vmul.f32 %v1519, %v1527
    %1534 = vrot.lane.b32.xlu0 %v1530, 32
    %v1535 = vpop.permute.xlu0 %1534
    %1536 = vrot.lane.b32.xlu0 %v1531, 32
    %v1537 = vpop.permute.xlu0 %1536
    %v1540 = vadd.f32 %v1520, %v1535
    %v1541 = vadd.f32 %v1521, %v1537
    %v1542 = vtanh.pop %v1540
    %v1543 = vtanh.pop %v1541
    %1546 = vrot.lane.b32.xlu0 %v1542, 32
    %v1547 = vpop.permute.xlu0 %1546
    %1548 = vrot.lane.b32.xlu0 %v1543, 32
    %v1549 = vpop.permute.xlu0 %1548
    %v1552 = vmul.f32 %v1518, %v1547
    %v1553 = vmul.f32 %v1519, %v1549
    %v1554 = vpack.c.bf16 %v1553, %v1552
    %s1555 = scalar_lea.vmem [#allocation6], 80
    %v1556 = vld [vmem:[%s1555] sm:$0xff]
    %v1557 = vld [vmem:[%s1555 + $0x8] sm:$0xff]
    %1558 = vmatprep.subr.bf16.mxu0 0
    %1559 = vmatpush1.bf16.msra.mxu0 %v373
    %1560 = vmatprep.subr.bf16.mxu0 0
    %1561 = vmatpush1.bf16.msra.mxu0 %v374
    %1562 = vmatprep.subr.bf16.mxu0 0
    %1563 = vmatpush1.bf16.msra.mxu0 0
    %1564 = vmatprep.subr.bf16.mxu0 0
    %1565 = vmatpush1.bf16.msra.mxu0 0
    %1566 = vmatprep.subr.bf16.mxu0 0
    %1567 = vmatpush1.bf16.msra.mxu0 0
    %1568 = vmatprep.subr.bf16.mxu0 0
    %1569 = vmatpush1.bf16.msra.mxu0 0
    %1570 = vmatprep.subr.bf16.mxu0 0
    %1571 = vmatpush1.bf16.msra.mxu0 0
    %1572 = vmatprep.subr.bf16.mxu0 0
    %1573 = vmatpush1.bf16.msra.mxu0 0
    %1574 = vmatprep.subr.bf16.mxu0 0
    %1575 = vmatpush1.bf16.msra.mxu0 0
    %1576 = vmatprep.subr.bf16.mxu0 0
    %1577 = vmatpush1.bf16.msra.mxu0 0
    %1578 = vmatprep.subr.bf16.mxu0 0
    %1579 = vmatpush1.bf16.msra.mxu0 0
    %1580 = vmatprep.subr.bf16.mxu0 0
    %1581 = vmatpush1.bf16.msra.mxu0 0
    %1582 = vmatprep.subr.bf16.mxu0 0
    %1583 = vmatpush1.bf16.msra.mxu0 0
    %1584 = vmatprep.subr.bf16.mxu0 0
    %1585 = vmatpush1.bf16.msra.mxu0 0
    %1586 = vmatprep.subr.bf16.mxu0 0
    %1587 = vmatpush1.bf16.msra.mxu0 0
    %1588 = vmatprep.subr.bf16.mxu0 0
    %1589 = vmatpush1.bf16.msra.mxu0 0
    %1590 = vmatprep.mubr.bf16.mxu0 0
    %1591 = vmatmul.mubr.bf16.gmra.mrb[0].mxu0 %v1420
    %v1592 = vpop.f32.mrb[0].mxu0
    %v1593 = vadd.f32 0.0, %v1592
    %v1594 = vpop.f32.mrb[0].mxu0
    %v1595 = vpop.f32.mrb[0].mxu0
    %v1596 = vadd.f32 0.0, %v1595
    %v1597 = vpop.f32.mrb[0].mxu0
    %1598 = vdwg.mxu0
    %v1599 = vadd.f32 %v1556, %v1593
    %v1600 = vadd.f32 %v1557, %v1596
    %v1601 = vmul.f32 %v1599, %v352
    %v1602 = vmul.f32 %v1600, %v352
    %v1603 = vtanh.pop %v1601
    %v1604 = vtanh.pop %v1602
    %v1605 = vmul.f32 %v1603, 0.5
    %v1606 = vmul.f32 %v1604, 0.5
    %v1607 = vadd.f32 %v1605, 0.5
    %v1608 = vadd.f32 %v1606, 0.5
    %v1609 = vmul.f32 %v1607, %v1401
    %v1610 = vmul.f32 %v1608, %v1402
    %1613 = vrot.lane.b32.xlu0 %v1603, 32
    %v1614 = vpop.permute.xlu0 %1613
    %1615 = vrot.lane.b32.xlu0 %v1604, 32
    %v1616 = vpop.permute.xlu0 %1615
    %v1619 = vmul.f32 %v1607, %v1614
    %v1620 = vmul.f32 %v1608, %v1616
    %1623 = vrot.lane.b32.xlu0 %v1619, 32
    %v1624 = vpop.permute.xlu0 %1623
    %1625 = vrot.lane.b32.xlu0 %v1620, 32
    %v1626 = vpop.permute.xlu0 %1625
    %v1629 = vadd.f32 %v1609, %v1624
    %v1630 = vadd.f32 %v1610, %v1626
    %v1631 = vtanh.pop %v1629
    %v1632 = vtanh.pop %v1630
    %1635 = vrot.lane.b32.xlu0 %v1631, 32
    %v1636 = vpop.permute.xlu0 %1635
    %1637 = vrot.lane.b32.xlu0 %v1632, 32
    %v1638 = vpop.permute.xlu0 %1637
    %v1641 = vmul.f32 %v1607, %v1636
    %v1642 = vmul.f32 %v1608, %v1638
    %v1643 = vpack.c.bf16 %v1642, %v1641
    %1645 = vrot.lane.b32.xlu0 %v1643, 64
    %v1646 = vpop.permute.xlu0 %1645
    %v1648 = vsel %vm377, %v1646, 0
    %1650 = vmatprep.subr.bf16.mxu0 0
    %1651 = vmatpush1.bf16.msra.mxu0 %v486
    %1652 = vmatprep.subr.bf16.mxu0 0
    %1653 = vmatpush1.bf16.msra.mxu0 %v487
    %1654 = vmatprep.subr.bf16.mxu0 0
    %1655 = vmatpush1.bf16.msra.mxu0 0
    %1656 = vmatprep.subr.bf16.mxu0 0
    %1657 = vmatpush1.bf16.msra.mxu0 0
    %1658 = vmatprep.subr.bf16.mxu0 0
    %1659 = vmatpush1.bf16.msra.mxu0 0
    %1660 = vmatprep.subr.bf16.mxu0 0
    %1661 = vmatpush1.bf16.msra.mxu0 0
    %1662 = vmatprep.subr.bf16.mxu0 0
    %1663 = vmatpush1.bf16.msra.mxu0 0
    %1664 = vmatprep.subr.bf16.mxu0 0
    %1665 = vmatpush1.bf16.msra.mxu0 0
    %1666 = vmatprep.subr.bf16.mxu0 0
    %1667 = vmatpush1.bf16.msra.mxu0 0
    %1668 = vmatprep.subr.bf16.mxu0 0
    %1669 = vmatpush1.bf16.msra.mxu0 0
    %1670 = vmatprep.subr.bf16.mxu0 0
    %1671 = vmatpush1.bf16.msra.mxu0 0
    %1672 = vmatprep.subr.bf16.mxu0 0
    %1673 = vmatpush1.bf16.msra.mxu0 0
    %1674 = vmatprep.subr.bf16.mxu0 0
    %1675 = vmatpush1.bf16.msra.mxu0 0
    %1676 = vmatprep.subr.bf16.mxu0 0
    %1677 = vmatpush1.bf16.msra.mxu0 0
    %1678 = vmatprep.subr.bf16.mxu0 0
    %1679 = vmatpush1.bf16.msra.mxu0 0
    %1680 = vmatprep.subr.bf16.mxu0 0
    %1681 = vmatpush1.bf16.msra.mxu0 0
    %1682 = vmatprep.mubr.bf16.mxu0 0
    %1683 = vmatmul.mubr.bf16.gmra.mrb[0].mxu0 %v1648
    %v1684 = vpop.f32.mrb[0].mxu0
    %v1685 = vadd.f32 0.0, %v1684
    %v1686 = vpop.f32.mrb[0].mxu0
    %v1687 = vpop.f32.mrb[0].mxu0
    %v1688 = vadd.f32 0.0, %v1687
    %v1689 = vpop.f32.mrb[0].mxu0
    %1690 = vdwg.mxu0
    %1692 = vrot.lane.b32.xlu0 %v1554, 64
    %v1693 = vpop.permute.xlu0 %1692
    %v1695 = vsel %vm377, %v1693, 0
    %1697 = vmatprep.subr.bf16.mxu0 0
    %1698 = vmatpush1.bf16.msra.mxu0 %v542
    %1699 = vmatprep.subr.bf16.mxu0 0
    %1700 = vmatpush1.bf16.msra.mxu0 %v543
    %1701 = vmatprep.subr.bf16.mxu0 0
    %1702 = vmatpush1.bf16.msra.mxu0 0
    %1703 = vmatprep.subr.bf16.mxu0 0
    %1704 = vmatpush1.bf16.msra.mxu0 0
    %1705 = vmatprep.subr.bf16.mxu0 0
    %1706 = vmatpush1.bf16.msra.mxu0 0
    %1707 = vmatprep.subr.bf16.mxu0 0
    %1708 = vmatpush1.bf16.msra.mxu0 0
    %1709 = vmatprep.subr.bf16.mxu0 0
    %1710 = vmatpush1.bf16.msra.mxu0 0
    %1711 = vmatprep.subr.bf16.mxu0 0
    %1712 = vmatpush1.bf16.msra.mxu0 0
    %1713 = vmatprep.subr.bf16.mxu0 0
    %1714 = vmatpush1.bf16.msra.mxu0 0
    %1715 = vmatprep.subr.bf16.mxu0 0
    %1716 = vmatpush1.bf16.msra.mxu0 0
    %1717 = vmatprep.subr.bf16.mxu0 0
    %1718 = vmatpush1.bf16.msra.mxu0 0
    %1719 = vmatprep.subr.bf16.mxu0 0
    %1720 = vmatpush1.bf16.msra.mxu0 0
    %1721 = vmatprep.subr.bf16.mxu0 0
    %1722 = vmatpush1.bf16.msra.mxu0 0
    %1723 = vmatprep.subr.bf16.mxu0 0
    %1724 = vmatpush1.bf16.msra.mxu0 0
    %1725 = vmatprep.subr.bf16.mxu0 0
    %1726 = vmatpush1.bf16.msra.mxu0 0
    %1727 = vmatprep.subr.bf16.mxu0 0
    %1728 = vmatpush1.bf16.msra.mxu0 0
    %1729 = vmatprep.mubr.bf16.mxu0 0
    %1730 = vmatmul.mubr.bf16.gmra.mrb[0].mxu0 %v1695
    %v1731 = vpop.f32.mrb[0].mxu0
    %v1732 = vadd.f32 %v1685, %v1731
    %v1733 = vpop.f32.mrb[0].mxu0
    %v1734 = vpop.f32.mrb[0].mxu0
    %v1735 = vadd.f32 %v1688, %v1734
    %v1736 = vpop.f32.mrb[0].mxu0
    %1737 = vdwg.mxu0
    %v1738 = vadd.f32 %v1732, %v345
    %v1739 = vadd.f32 %v1735, %v345
    %v1740 = vmul.f32 %v1738, %v352
    %v1741 = vmul.f32 %v1739, %v352
    %v1742 = vtanh.pop %v1740
    %v1743 = vtanh.pop %v1741
    %v1744 = vmul.f32 %v1742, 0.5
    %v1745 = vmul.f32 %v1743, 0.5
    %v1746 = vadd.f32 %v1744, 0.5
    %v1747 = vadd.f32 %v1745, 0.5
    %v1748 = vmul.f32 %v1746, %v1540
    %v1749 = vmul.f32 %v1747, %v1541
    %1752 = vrot.lane.b32.xlu0 %v1742, 32
    %v1753 = vpop.permute.xlu0 %1752
    %1754 = vrot.lane.b32.xlu0 %v1743, 32
    %v1755 = vpop.permute.xlu0 %1754
    %v1758 = vmul.f32 %v1746, %v1753
    %v1759 = vmul.f32 %v1747, %v1755
    %1762 = vrot.lane.b32.xlu0 %v1758, 32
    %v1763 = vpop.permute.xlu0 %1762
    %1764 = vrot.lane.b32.xlu0 %v1759, 32
    %v1765 = vpop.permute.xlu0 %1764
    %v1768 = vadd.f32 %v1748, %v1763
    %v1769 = vadd.f32 %v1749, %v1765
    %v1770 = vtanh.pop %v1768
    %v1771 = vtanh.pop %v1769
    %1774 = vrot.lane.b32.xlu0 %v1770, 32
    %v1775 = vpop.permute.xlu0 %1774
    %1776 = vrot.lane.b32.xlu0 %v1771, 32
    %v1777 = vpop.permute.xlu0 %1776
    %v1780 = vmul.f32 %v1746, %v1775
    %v1781 = vmul.f32 %v1747, %v1777
    %v1782 = vpack.c.bf16 %v1781, %v1780
    %s1783 = scalar_lea.vmem [#allocation6], 96
    %v1784 = vld [vmem:[%s1783] sm:$0xff]
    %v1785 = vld [vmem:[%s1783 + $0x8] sm:$0xff]
    %1786 = vmatprep.subr.bf16.mxu0 0
    %1787 = vmatpush1.bf16.msra.mxu0 %v373
    %1788 = vmatprep.subr.bf16.mxu0 0
    %1789 = vmatpush1.bf16.msra.mxu0 %v374
    %1790 = vmatprep.subr.bf16.mxu0 0
    %1791 = vmatpush1.bf16.msra.mxu0 0
    %1792 = vmatprep.subr.bf16.mxu0 0
    %1793 = vmatpush1.bf16.msra.mxu0 0
    %1794 = vmatprep.subr.bf16.mxu0 0
    %1795 = vmatpush1.bf16.msra.mxu0 0
    %1796 = vmatprep.subr.bf16.mxu0 0
    %1797 = vmatpush1.bf16.msra.mxu0 0
    %1798 = vmatprep.subr.bf16.mxu0 0
    %1799 = vmatpush1.bf16.msra.mxu0 0
    %1800 = vmatprep.subr.bf16.mxu0 0
    %1801 = vmatpush1.bf16.msra.mxu0 0
    %1802 = vmatprep.subr.bf16.mxu0 0
    %1803 = vmatpush1.bf16.msra.mxu0 0
    %1804 = vmatprep.subr.bf16.mxu0 0
    %1805 = vmatpush1.bf16.msra.mxu0 0
    %1806 = vmatprep.subr.bf16.mxu0 0
    %1807 = vmatpush1.bf16.msra.mxu0 0
    %1808 = vmatprep.subr.bf16.mxu0 0
    %1809 = vmatpush1.bf16.msra.mxu0 0
    %1810 = vmatprep.subr.bf16.mxu0 0
    %1811 = vmatpush1.bf16.msra.mxu0 0
    %1812 = vmatprep.subr.bf16.mxu0 0
    %1813 = vmatpush1.bf16.msra.mxu0 0
    %1814 = vmatprep.subr.bf16.mxu0 0
    %1815 = vmatpush1.bf16.msra.mxu0 0
    %1816 = vmatprep.subr.bf16.mxu0 0
    %1817 = vmatpush1.bf16.msra.mxu0 0
    %1818 = vmatprep.mubr.bf16.mxu0 0
    %1819 = vmatmul.mubr.bf16.gmra.mrb[0].mxu0 %v1648
    %v1820 = vpop.f32.mrb[0].mxu0
    %v1821 = vadd.f32 0.0, %v1820
    %v1822 = vpop.f32.mrb[0].mxu0
    %v1823 = vpop.f32.mrb[0].mxu0
    %v1824 = vadd.f32 0.0, %v1823
    %v1825 = vpop.f32.mrb[0].mxu0
    %1826 = vdwg.mxu0
    %v1827 = vadd.f32 %v1784, %v1821
    %v1828 = vadd.f32 %v1785, %v1824
    %v1829 = vmul.f32 %v1827, %v352
    %v1830 = vmul.f32 %v1828, %v352
    %v1831 = vtanh.pop %v1829
    %v1832 = vtanh.pop %v1830
    %v1833 = vmul.f32 %v1831, 0.5
    %v1834 = vmul.f32 %v1832, 0.5
    %v1835 = vadd.f32 %v1833, 0.5
    %v1836 = vadd.f32 %v1834, 0.5
    %v1837 = vmul.f32 %v1835, %v1629
    %v1838 = vmul.f32 %v1836, %v1630
    %1841 = vrot.lane.b32.xlu0 %v1831, 32
    %v1842 = vpop.permute.xlu0 %1841
    %1843 = vrot.lane.b32.xlu0 %v1832, 32
    %v1844 = vpop.permute.xlu0 %1843
    %v1847 = vmul.f32 %v1835, %v1842
    %v1848 = vmul.f32 %v1836, %v1844
    %1851 = vrot.lane.b32.xlu0 %v1847, 32
    %v1852 = vpop.permute.xlu0 %1851
    %1853 = vrot.lane.b32.xlu0 %v1848, 32
    %v1854 = vpop.permute.xlu0 %1853
    %v1857 = vadd.f32 %v1837, %v1852
    %v1858 = vadd.f32 %v1838, %v1854
    %v1859 = vtanh.pop %v1857
    %v1860 = vtanh.pop %v1858
    %1863 = vrot.lane.b32.xlu0 %v1859, 32
    %v1864 = vpop.permute.xlu0 %1863
    %1865 = vrot.lane.b32.xlu0 %v1860, 32
    %v1866 = vpop.permute.xlu0 %1865
    %v1869 = vmul.f32 %v1835, %v1864
    %v1870 = vmul.f32 %v1836, %v1866
    %v1871 = vpack.c.bf16 %v1870, %v1869
    %1873 = vrot.lane.b32.xlu0 %v1871, 64
    %v1874 = vpop.permute.xlu0 %1873
    %v1876 = vsel %vm377, %v1874, 0
    %1878 = vmatprep.subr.bf16.mxu0 0
    %1879 = vmatpush1.bf16.msra.mxu0 %v486
    %1880 = vmatprep.subr.bf16.mxu0 0
    %1881 = vmatpush1.bf16.msra.mxu0 %v487
    %1882 = vmatprep.subr.bf16.mxu0 0
    %1883 = vmatpush1.bf16.msra.mxu0 0
    %1884 = vmatprep.subr.bf16.mxu0 0
    %1885 = vmatpush1.bf16.msra.mxu0 0
    %1886 = vmatprep.subr.bf16.mxu0 0
    %1887 = vmatpush1.bf16.msra.mxu0 0
    %1888 = vmatprep.subr.bf16.mxu0 0
    %1889 = vmatpush1.bf16.msra.mxu0 0
    %1890 = vmatprep.subr.bf16.mxu0 0
    %1891 = vmatpush1.bf16.msra.mxu0 0
    %1892 = vmatprep.subr.bf16.mxu0 0
    %1893 = vmatpush1.bf16.msra.mxu0 0
    %1894 = vmatprep.subr.bf16.mxu0 0
    %1895 = vmatpush1.bf16.msra.mxu0 0
    %1896 = vmatprep.subr.bf16.mxu0 0
    %1897 = vmatpush1.bf16.msra.mxu0 0
    %1898 = vmatprep.subr.bf16.mxu0 0
    %1899 = vmatpush1.bf16.msra.mxu0 0
    %1900 = vmatprep.subr.bf16.mxu0 0
    %1901 = vmatpush1.bf16.msra.mxu0 0
    %1902 = vmatprep.subr.bf16.mxu0 0
    %1903 = vmatpush1.bf16.msra.mxu0 0
    %1904 = vmatprep.subr.bf16.mxu0 0
    %1905 = vmatpush1.bf16.msra.mxu0 0
    %1906 = vmatprep.subr.bf16.mxu0 0
    %1907 = vmatpush1.bf16.msra.mxu0 0
    %1908 = vmatprep.subr.bf16.mxu0 0
    %1909 = vmatpush1.bf16.msra.mxu0 0
    %1910 = vmatprep.mubr.bf16.mxu0 0
    %1911 = vmatmul.mubr.bf16.gmra.mrb[0].mxu0 %v1876
    %v1912 = vpop.f32.mrb[0].mxu0
    %v1913 = vadd.f32 0.0, %v1912
    %v1914 = vpop.f32.mrb[0].mxu0
    %v1915 = vpop.f32.mrb[0].mxu0
    %v1916 = vadd.f32 0.0, %v1915
    %v1917 = vpop.f32.mrb[0].mxu0
    %1918 = vdwg.mxu0
    %1920 = vrot.lane.b32.xlu0 %v1782, 64
    %v1921 = vpop.permute.xlu0 %1920
    %v1923 = vsel %vm377, %v1921, 0
    %1925 = vmatprep.subr.bf16.mxu0 0
    %1926 = vmatpush1.bf16.msra.mxu0 %v542
    %1927 = vmatprep.subr.bf16.mxu0 0
    %1928 = vmatpush1.bf16.msra.mxu0 %v543
    %1929 = vmatprep.subr.bf16.mxu0 0
    %1930 = vmatpush1.bf16.msra.mxu0 0
    %1931 = vmatprep.subr.bf16.mxu0 0
    %1932 = vmatpush1.bf16.msra.mxu0 0
    %1933 = vmatprep.subr.bf16.mxu0 0
    %1934 = vmatpush1.bf16.msra.mxu0 0
    %1935 = vmatprep.subr.bf16.mxu0 0
    %1936 = vmatpush1.bf16.msra.mxu0 0
    %1937 = vmatprep.subr.bf16.mxu0 0
    %1938 = vmatpush1.bf16.msra.mxu0 0
    %1939 = vmatprep.subr.bf16.mxu0 0
    %1940 = vmatpush1.bf16.msra.mxu0 0
    %1941 = vmatprep.subr.bf16.mxu0 0
    %1942 = vmatpush1.bf16.msra.mxu0 0
    %1943 = vmatprep.subr.bf16.mxu0 0
    %1944 = vmatpush1.bf16.msra.mxu0 0
    %1945 = vmatprep.subr.bf16.mxu0 0
    %1946 = vmatpush1.bf16.msra.mxu0 0
    %1947 = vmatprep.subr.bf16.mxu0 0
    %1948 = vmatpush1.bf16.msra.mxu0 0
    %1949 = vmatprep.subr.bf16.mxu0 0
    %1950 = vmatpush1.bf16.msra.mxu0 0
    %1951 = vmatprep.subr.bf16.mxu0 0
    %1952 = vmatpush1.bf16.msra.mxu0 0
    %1953 = vmatprep.subr.bf16.mxu0 0
    %1954 = vmatpush1.bf16.msra.mxu0 0
    %1955 = vmatprep.subr.bf16.mxu0 0
    %1956 = vmatpush1.bf16.msra.mxu0 0
    %1957 = vmatprep.mubr.bf16.mxu0 0
    %1958 = vmatmul.mubr.bf16.gmra.mrb[0].mxu0 %v1923
    %v1959 = vpop.f32.mrb[0].mxu0
    %v1960 = vadd.f32 %v1913, %v1959
    %v1961 = vpop.f32.mrb[0].mxu0
    %v1962 = vpop.f32.mrb[0].mxu0
    %v1963 = vadd.f32 %v1916, %v1962
    %v1964 = vpop.f32.mrb[0].mxu0
    %1965 = vdwg.mxu0
    %v1966 = vadd.f32 %v1960, %v345
    %v1967 = vadd.f32 %v1963, %v345
    %v1968 = vmul.f32 %v1966, %v352
    %v1969 = vmul.f32 %v1967, %v352
    %v1970 = vtanh.pop %v1968
    %v1971 = vtanh.pop %v1969
    %v1972 = vmul.f32 %v1970, 0.5
    %v1973 = vmul.f32 %v1971, 0.5
    %v1974 = vadd.f32 %v1972, 0.5
    %v1975 = vadd.f32 %v1973, 0.5
    %v1976 = vmul.f32 %v1974, %v1768
    %v1977 = vmul.f32 %v1975, %v1769
    %1980 = vrot.lane.b32.xlu0 %v1970, 32
    %v1981 = vpop.permute.xlu0 %1980
    %1982 = vrot.lane.b32.xlu0 %v1971, 32
    %v1983 = vpop.permute.xlu0 %1982
    %v1986 = vmul.f32 %v1974, %v1981
    %v1987 = vmul.f32 %v1975, %v1983
    %1990 = vrot.lane.b32.xlu0 %v1986, 32
    %v1991 = vpop.permute.xlu0 %1990
    %1992 = vrot.lane.b32.xlu0 %v1987, 32
    %v1993 = vpop.permute.xlu0 %1992
    %v1996 = vadd.f32 %v1976, %v1991
    %v1997 = vadd.f32 %v1977, %v1993
    %v1998 = vtanh.pop %v1996
    %v1999 = vtanh.pop %v1997
    %2002 = vrot.lane.b32.xlu0 %v1998, 32
    %v2003 = vpop.permute.xlu0 %2002
    %2004 = vrot.lane.b32.xlu0 %v1999, 32
    %v2005 = vpop.permute.xlu0 %2004
    %v2008 = vmul.f32 %v1974, %v2003
    %v2009 = vmul.f32 %v1975, %v2005
    %v2010 = vpack.c.bf16 %v2009, %v2008
    %s2011 = scalar_lea.vmem [#allocation6], 112
    %v2012 = vld [vmem:[%s2011] sm:$0xff]
    %v2013 = vld [vmem:[%s2011 + $0x8] sm:$0xff]
    %2014 = vmatprep.subr.bf16.mxu0 0
    %2015 = vmatpush1.bf16.msra.mxu0 %v373
    %2016 = vmatprep.subr.bf16.mxu0 0
    %2017 = vmatpush1.bf16.msra.mxu0 %v374
    %2018 = vmatprep.subr.bf16.mxu0 0
    %2019 = vmatpush1.bf16.msra.mxu0 0
    %2020 = vmatprep.subr.bf16.mxu0 0
    %2021 = vmatpush1.bf16.msra.mxu0 0
    %2022 = vmatprep.subr.bf16.mxu0 0
    %2023 = vmatpush1.bf16.msra.mxu0 0
    %2024 = vmatprep.subr.bf16.mxu0 0
    %2025 = vmatpush1.bf16.msra.mxu0 0
    %2026 = vmatprep.subr.bf16.mxu0 0
    %2027 = vmatpush1.bf16.msra.mxu0 0
    %2028 = vmatprep.subr.bf16.mxu0 0
    %2029 = vmatpush1.bf16.msra.mxu0 0
    %2030 = vmatprep.subr.bf16.mxu0 0
    %2031 = vmatpush1.bf16.msra.mxu0 0
    %2032 = vmatprep.subr.bf16.mxu0 0
    %2033 = vmatpush1.bf16.msra.mxu0 0
    %2034 = vmatprep.subr.bf16.mxu0 0
    %2035 = vmatpush1.bf16.msra.mxu0 0
    %2036 = vmatprep.subr.bf16.mxu0 0
    %2037 = vmatpush1.bf16.msra.mxu0 0
    %2038 = vmatprep.subr.bf16.mxu0 0
    %2039 = vmatpush1.bf16.msra.mxu0 0
    %2040 = vmatprep.subr.bf16.mxu0 0
    %2041 = vmatpush1.bf16.msra.mxu0 0
    %2042 = vmatprep.subr.bf16.mxu0 0
    %2043 = vmatpush1.bf16.msra.mxu0 0
    %2044 = vmatprep.subr.bf16.mxu0 0
    %2045 = vmatpush1.bf16.msra.mxu0 0
    %2046 = vmatprep.mubr.bf16.mxu0 0
    %2047 = vmatmul.mubr.bf16.gmra.mrb[0].mxu0 %v1876
    %v2048 = vpop.f32.mrb[0].mxu0
    %v2049 = vadd.f32 0.0, %v2048
    %v2050 = vpop.f32.mrb[0].mxu0
    %v2051 = vpop.f32.mrb[0].mxu0
    %v2052 = vadd.f32 0.0, %v2051
    %v2053 = vpop.f32.mrb[0].mxu0
    %2054 = vdwg.mxu0
    %v2055 = vadd.f32 %v2012, %v2049
    %v2056 = vadd.f32 %v2013, %v2052
    %v2057 = vmul.f32 %v2055, %v352
    %v2058 = vmul.f32 %v2056, %v352
    %v2059 = vtanh.pop %v2057
    %v2060 = vtanh.pop %v2058
    %v2061 = vmul.f32 %v2059, 0.5
    %v2062 = vmul.f32 %v2060, 0.5
    %v2063 = vadd.f32 %v2061, 0.5
    %v2064 = vadd.f32 %v2062, 0.5
    %v2065 = vmul.f32 %v2063, %v1857
    %v2066 = vmul.f32 %v2064, %v1858
    %2069 = vrot.lane.b32.xlu0 %v2059, 32
    %v2070 = vpop.permute.xlu0 %2069
    %2071 = vrot.lane.b32.xlu0 %v2060, 32
    %v2072 = vpop.permute.xlu0 %2071
    %v2075 = vmul.f32 %v2063, %v2070
    %v2076 = vmul.f32 %v2064, %v2072
    %2079 = vrot.lane.b32.xlu0 %v2075, 32
    %v2080 = vpop.permute.xlu0 %2079
    %2081 = vrot.lane.b32.xlu0 %v2076, 32
    %v2082 = vpop.permute.xlu0 %2081
    %v2085 = vadd.f32 %v2065, %v2080
    %v2086 = vadd.f32 %v2066, %v2082
    %v2087 = vtanh.pop %v2085
    %v2088 = vtanh.pop %v2086
    %2091 = vrot.lane.b32.xlu0 %v2087, 32
    %v2092 = vpop.permute.xlu0 %2091
    %2093 = vrot.lane.b32.xlu0 %v2088, 32
    %v2094 = vpop.permute.xlu0 %2093
    %v2097 = vmul.f32 %v2063, %v2092
    %v2098 = vmul.f32 %v2064, %v2094
    %v2099 = vpack.c.bf16 %v2098, %v2097
    %2101 = vrot.lane.b32.xlu0 %v2099, 64
    %v2102 = vpop.permute.xlu0 %2101
    %v2104 = vsel %vm377, %v2102, 0
    %2106 = vmatprep.subr.bf16.mxu0 0
    %2107 = vmatpush1.bf16.msra.mxu0 %v486
    %2108 = vmatprep.subr.bf16.mxu0 0
    %2109 = vmatpush1.bf16.msra.mxu0 %v487
    %2110 = vmatprep.subr.bf16.mxu0 0
    %2111 = vmatpush1.bf16.msra.mxu0 0
    %2112 = vmatprep.subr.bf16.mxu0 0
    %2113 = vmatpush1.bf16.msra.mxu0 0
    %2114 = vmatprep.subr.bf16.mxu0 0
    %2115 = vmatpush1.bf16.msra.mxu0 0
    %2116 = vmatprep.subr.bf16.mxu0 0
    %2117 = vmatpush1.bf16.msra.mxu0 0
    %2118 = vmatprep.subr.bf16.mxu0 0
    %2119 = vmatpush1.bf16.msra.mxu0 0
    %2120 = vmatprep.subr.bf16.mxu0 0
    %2121 = vmatpush1.bf16.msra.mxu0 0
    %2122 = vmatprep.subr.bf16.mxu0 0
    %2123 = vmatpush1.bf16.msra.mxu0 0
    %2124 = vmatprep.subr.bf16.mxu0 0
    %2125 = vmatpush1.bf16.msra.mxu0 0
    %2126 = vmatprep.subr.bf16.mxu0 0
    %2127 = vmatpush1.bf16.msra.mxu0 0
    %2128 = vmatprep.subr.bf16.mxu0 0
    %2129 = vmatpush1.bf16.msra.mxu0 0
    %2130 = vmatprep.subr.bf16.mxu0 0
    %2131 = vmatpush1.bf16.msra.mxu0 0
    %2132 = vmatprep.subr.bf16.mxu0 0
    %2133 = vmatpush1.bf16.msra.mxu0 0
    %2134 = vmatprep.subr.bf16.mxu0 0
    %2135 = vmatpush1.bf16.msra.mxu0 0
    %2136 = vmatprep.subr.bf16.mxu0 0
    %2137 = vmatpush1.bf16.msra.mxu0 0
    %2138 = vmatprep.mubr.bf16.mxu0 0
    %2139 = vmatmul.mubr.bf16.gmra.mrb[0].mxu0 %v2104
    %v2140 = vpop.f32.mrb[0].mxu0
    %v2141 = vadd.f32 0.0, %v2140
    %v2142 = vpop.f32.mrb[0].mxu0
    %v2143 = vpop.f32.mrb[0].mxu0
    %v2144 = vadd.f32 0.0, %v2143
    %v2145 = vpop.f32.mrb[0].mxu0
    %2146 = vdwg.mxu0
    %2148 = vrot.lane.b32.xlu0 %v2010, 64
    %v2149 = vpop.permute.xlu0 %2148
    %v2151 = vsel %vm377, %v2149, 0
    %2153 = vmatprep.subr.bf16.mxu0 0
    %2154 = vmatpush1.bf16.msra.mxu0 %v542
    %2155 = vmatprep.subr.bf16.mxu0 0
    %2156 = vmatpush1.bf16.msra.mxu0 %v543
    %2157 = vmatprep.subr.bf16.mxu0 0
    %2158 = vmatpush1.bf16.msra.mxu0 0
    %2159 = vmatprep.subr.bf16.mxu0 0
    %2160 = vmatpush1.bf16.msra.mxu0 0
    %2161 = vmatprep.subr.bf16.mxu0 0
    %2162 = vmatpush1.bf16.msra.mxu0 0
    %2163 = vmatprep.subr.bf16.mxu0 0
    %2164 = vmatpush1.bf16.msra.mxu0 0
    %2165 = vmatprep.subr.bf16.mxu0 0
    %2166 = vmatpush1.bf16.msra.mxu0 0
    %2167 = vmatprep.subr.bf16.mxu0 0
    %2168 = vmatpush1.bf16.msra.mxu0 0
    %2169 = vmatprep.subr.bf16.mxu0 0
    %2170 = vmatpush1.bf16.msra.mxu0 0
    %2171 = vmatprep.subr.bf16.mxu0 0
    %2172 = vmatpush1.bf16.msra.mxu0 0
    %2173 = vmatprep.subr.bf16.mxu0 0
    %2174 = vmatpush1.bf16.msra.mxu0 0
    %2175 = vmatprep.subr.bf16.mxu0 0
    %2176 = vmatpush1.bf16.msra.mxu0 0
    %2177 = vmatprep.subr.bf16.mxu0 0
    %2178 = vmatpush1.bf16.msra.mxu0 0
    %2179 = vmatprep.subr.bf16.mxu0 0
    %2180 = vmatpush1.bf16.msra.mxu0 0
    %2181 = vmatprep.subr.bf16.mxu0 0
    %2182 = vmatpush1.bf16.msra.mxu0 0
    %2183 = vmatprep.subr.bf16.mxu0 0
    %2184 = vmatpush1.bf16.msra.mxu0 0
    %2185 = vmatprep.mubr.bf16.mxu0 0
    %2186 = vmatmul.mubr.bf16.gmra.mrb[0].mxu0 %v2151
    %v2187 = vpop.f32.mrb[0].mxu0
    %v2188 = vadd.f32 %v2141, %v2187
    %v2189 = vpop.f32.mrb[0].mxu0
    %v2190 = vpop.f32.mrb[0].mxu0
    %v2191 = vadd.f32 %v2144, %v2190
    %v2192 = vpop.f32.mrb[0].mxu0
    %2193 = vdwg.mxu0
    %v2194 = vadd.f32 %v2188, %v345
    %v2195 = vadd.f32 %v2191, %v345
    %v2196 = vmul.f32 %v2194, %v352
    %v2197 = vmul.f32 %v2195, %v352
    %v2198 = vtanh.pop %v2196
    %v2199 = vtanh.pop %v2197
    %v2200 = vmul.f32 %v2198, 0.5
    %v2201 = vmul.f32 %v2199, 0.5
    %v2202 = vadd.f32 %v2200, 0.5
    %v2203 = vadd.f32 %v2201, 0.5
    %v2204 = vmul.f32 %v2202, %v1996
    %v2205 = vmul.f32 %v2203, %v1997
    %2208 = vrot.lane.b32.xlu0 %v2198, 32
    %v2209 = vpop.permute.xlu0 %2208
    %2210 = vrot.lane.b32.xlu0 %v2199, 32
    %v2211 = vpop.permute.xlu0 %2210
    %v2214 = vmul.f32 %v2202, %v2209
    %v2215 = vmul.f32 %v2203, %v2211
    %2218 = vrot.lane.b32.xlu0 %v2214, 32
    %v2219 = vpop.permute.xlu0 %2218
    %2220 = vrot.lane.b32.xlu0 %v2215, 32
    %v2221 = vpop.permute.xlu0 %2220
    %v2224 = vadd.f32 %v2204, %v2219
    %v2225 = vadd.f32 %v2205, %v2221
    %v2226 = vtanh.pop %v2224
    %v2227 = vtanh.pop %v2225
    %2230 = vrot.lane.b32.xlu0 %v2226, 32
    %v2231 = vpop.permute.xlu0 %2230
    %2232 = vrot.lane.b32.xlu0 %v2227, 32
    %v2233 = vpop.permute.xlu0 %2232
    %v2236 = vmul.f32 %v2202, %v2231
    %v2237 = vmul.f32 %v2203, %v2233
    %2240 = vrot.lane.b32.xlu0 %v2097, 64
    %v2241 = vpop.permute.xlu0 %2240
    %2242 = vrot.lane.b32.xlu0 %v2098, 64
    %v2243 = vpop.permute.xlu0 %2242
    %2246 = vst.msk [vmem:[#allocation2] sm:$0xff] %vm377, %v2241
    %2247 = vst.msk [vmem:[#allocation2 + $0x8] sm:$0xff] %vm377, %v2243
    %2250 = vrot.lane.b32.xlu0 %v2085, 96
    %v2251 = vpop.permute.xlu0 %2250
    %2252 = vrot.lane.b32.xlu0 %v2086, 96
    %v2253 = vpop.permute.xlu0 %2252
    %2256 = vst.msk [vmem:[#allocation3] sm:$0xff] %vm377, %v2251
    %2257 = vst.msk [vmem:[#allocation3 + $0x8] sm:$0xff] %vm377, %v2253
    %2260 = vrot.lane.b32.xlu0 %v2236, 64
    %v2261 = vpop.permute.xlu0 %2260
    %2262 = vrot.lane.b32.xlu0 %v2237, 64
    %v2263 = vpop.permute.xlu0 %2262
    %2266 = vst.msk [vmem:[#allocation4] sm:$0xff] %vm377, %v2261
    %2267 = vst.msk [vmem:[#allocation4 + $0x8] sm:$0xff] %vm377, %v2263
    %2270 = vrot.lane.b32.xlu0 %v2224, 96
    %v2271 = vpop.permute.xlu0 %2270
    %2272 = vrot.lane.b32.xlu0 %v2225, 96
    %v2273 = vpop.permute.xlu0 %2272
    %2276 = vst.msk [vmem:[#allocation5] sm:$0xff] %vm377, %v2271
    %2277 = vst.msk [vmem:[#allocation5 + $0x8] sm:$0xff] %vm377, %v2273
    // Predicated region
    $region58: #{tpu_custom_call.1} parent=1 // pred_check
      %p2278 = pneg %p90
    $region59: #{tpu_custom_call.1} parent=1 // pred_check_branch
      %2280 = sbr.rel (%p2278) target = $region61
    $region60: #{tpu_custom_call.1} parent=1 // pred_region
      %v2281 = vld [vmem:[%s7] sm:$0x1]
      %v2283 = vlaneseq
      %v2284 = vshrl.u32 %v2283, 7
      %v2285 = vsub.s32 0, %v2284
      %v2286 = vrot.slane %v2281, %v2285
      %2287 = vrot.lane.b32.xlu0 %v2286, 64
      %v2288 = vpop.permute.xlu0 %2287
      %v2290 = vmul.f32 %v2236, %v2288
      %v2291 = vmul.f32 %v2237, %v2288
      %2294 = vrot.lane.b32.xlu0 %v2290, 64
      %v2295 = vpop.permute.xlu0 %2294
      %2296 = vrot.lane.b32.xlu0 %v2291, 64
      %v2297 = vpop.permute.xlu0 %2296
      %v2300 = vsel %vm377, %v2295, 0.0
      %2301 = vadd.xlane.f32.xlu0 %v2300
      %v2302 = vpop.xlane.xlu0 %2301
      %v2303 = vsel %vm377, %v2297, 0.0
      %2304 = vadd.xlane.f32.xlu0 %v2303
      %v2305 = vpop.xlane.xlu0 %2304
      %v2306 = vld [vmem:[#allocation7] sm:$0x1]
      %v2308 = vlaneseq
      %v2309 = vshrl.u32 %v2308, 7
      %v2310 = vsub.s32 0, %v2309
      %v2311 = vrot.slane %v2306, %v2310
      %v2313 = vadd.f32 %v2302, %v2311
      %v2314 = vadd.f32 %v2305, %v2311
      %v2315 = vxor.u32 %v2313, 2147483648
      %v2316 = vxor.u32 %v2314, 2147483648
      %v2317 = vmul.f32 %v2315, 1.442695
      %v2318 = vpow.pop %v2317
      %v2319 = vmul.f32 %v2316, 1.442695
      %v2320 = vpow.pop %v2319
      %v2321 = vadd.f32 %v2318, 1.0
      %v2322 = vadd.f32 %v2320, 1.0
      %v2323 = vrcp.pop %v2321
      %v2324 = vmul.f32 1.0, %v2323
      %v2325 = vrcp.pop %v2322
      %v2326 = vmul.f32 1.0, %v2325
      %vm2327 = vcmask 7168
      %2328 = vst.msk [vmem:[%s9] sm:$0xff] %vm2327, %v2324
      %2329 = vst.msk [vmem:[%s9 + $0x8] sm:$0xff] %vm2327, %v2326
    $region61: #{tpu_custom_call.1} parent=1 // pred_fallthru
      _
    // Predicated region
    $region62: #{tpu_custom_call.1} parent=1 // pred_check
      _
    $region63: #{tpu_custom_call.1} parent=1 // pred_check_branch
      %2331 = sbr.rel (0) target = $region65
    $region64: #{tpu_custom_call.1} parent=1 // pred_region
      _
    $region65: #{tpu_custom_call.1} parent=1 // pred_fallthru
      _
    // Predicated region
    $region66: #{tpu_custom_call.1} parent=1 // pred_check
      _
    $region67: #{tpu_custom_call.1} parent=1 // pred_check_branch
      %2333 = sbr.rel (0) target = $region69
    $region68: #{tpu_custom_call.1} parent=1 // pred_region
      _
    $region69: #{tpu_custom_call.1} parent=1 // pred_fallthru
      _
    %2334 = vsyncpa [#allocation9], 1
    %2335 = vsyncpa [#allocation11], 1
    %2336 = vsyncpa [#allocation14], 1

// kernel: tpu_custom_call.1
$region0: #{tpu_custom_call.1}
  #allocation0 [shape = 'u32[]', space=smem, size = 0x4, offset = 0x4, fixed_abs, tag = 'smem constant byte address 0x4 - core index']
  #allocation1 [shape = 'u32[144,128]{1,0:T(1,128)}', space=vmem, size = 0x12000, scoped, tag = 'internal scratch']
  #allocation2 [shape = 'f32[16,32]{1,0:T(8,128)}', space=vmem, size = 0x2000, scoped, tag = 'scratch operand']
  #allocation3 [shape = 'f32[16,32]{1,0:T(8,128)}', space=vmem, size = 0x2000, scoped, tag = 'scratch operand']
  #allocation4 [shape = 'f32[16,32]{1,0:T(8,128)}', space=vmem, size = 0x2000, scoped, tag = 'scratch operand']
  #allocation5 [shape = 'f32[16,32]{1,0:T(8,128)}', space=vmem, size = 0x2000, scoped, tag = 'scratch operand']
  #allocation6 [shape = 'f32[8,16,128]{2,1,0:T(8,128)}', space=vmem, size = 0x10000, scoped, tag = 'scratch operand']
  #allocation7 [shape = 'f32[1,1]{1,0:T(1,128)S(1)}', space=vmem, size = 0x200, scoped, tag = 'scoped memory for tpu_custom_call.1']
  %s0 = inlined_call_operand.hbm [shape: bf16[8,16,16], index: 0, kind: input, shape index: {}]
  %s1 = inlined_call_operand.hbm [shape: bf16[16,128], index: 1, kind: input, shape index: {}]
  %s2 = inlined_call_operand.hbm [shape: bf16[32,128], index: 2, kind: input, shape index: {}]
  %s3 = inlined_call_operand.vmem [shape: f32[1,128], index: 3, kind: input, shape index: {}]
  %s4 = inlined_call_operand.vmem [shape: bf16[32,128], index: 4, kind: input, shape index: {}]
  %s5 = inlined_call_operand.hbm [shape: bf16[32,128], index: 5, kind: input, shape index: {}]
  %s6 = inlined_call_operand.vmem [shape: f32[1,128], index: 6, kind: input, shape index: {}]
  %s7 = inlined_call_operand.vmem [shape: f32[1,32], index: 7, kind: input, shape index: {}]
  %s8 = inlined_call_operand.<no memory space> [shape: f32[1,1], index: 8, kind: input, shape index: {}]
  %s9 = inlined_call_operand.vmem [shape: f32[16,1], index: 9, kind: output, shape index: {}]
  %s10 = sld [smem:[#allocation0]]
  $region70: #{tpu_custom_call.1} parent=0
    _
  %s12 = ssub.s32 1, %s10
  %s13 = scalar_select 0, %s12, %s10
  %v14 = vstv %s8
  %15 = vst [vmem:[#allocation7] sm:$0x1] %v14
  $region1: #{tpu_custom_call.1} parent=0
    #allocation8 [shape = 'u8[32768]{0}', space=vmem, size = 0x8000, scoped, tag = 'input window, operand 0, single buffered']
    #allocation9 [shape = 's32[1]{0}', space=sflag, size = 0x4, scoped, tag = 'scoped memory for tpu_custom_call.1']
    #allocation10 [shape = 'u8[4096]{0}', space=vmem, size = 0x1000, scoped, tag = 'input window, operand 1, single buffered']
    #allocation11 [shape = 's32[1]{0}', space=sflag, size = 0x4, scoped, tag = 'scoped memory for tpu_custom_call.1']
    #allocation12 [shape = 'u8[8192]{0}', space=vmem, size = 0x2000, scoped, tag = 'input window, operand 2, single buffered']
    #allocation13 [shape = 'u8[8192]{0}', space=vmem, size = 0x2000, scoped, tag = 'input window, operand 5, single buffered']
    #allocation14 [shape = 's32[1]{0}', space=sflag, size = 0x4, scoped, tag = 'scoped memory for tpu_custom_call.1']
    %16 = vsyncpa [#allocation9], 0
    %17 = vsyncpa [#allocation11], 0
    %18 = vsyncpa [#allocation14], 0
    // Predicated region
    $region2: #{tpu_custom_call.1} parent=1 // pred_check
      _
    $region3: #{tpu_custom_call.1} parent=1 // pred_check_branch
      %20 = sbr.rel (0) target = $region5
    $region4: #{tpu_custom_call.1} parent=1 // pred_region
      %s22 = ssub.s32 1024, 1024
      %23 = vsyncadd [#allocation9], %s22
      %s24 = sshll.u32 [#allocation8], 4
      %s25 = int_to_ptr.vmem [resolvable:$true] %s24
      %30 = dma.hbm_to_vmem [thread:$0]  %s0, 1024, %s25, [#allocation9], 64, 64, 4
    $region5: #{tpu_custom_call.1} parent=1 // pred_fallthru
      _
    // Predicated region
    $region6: #{tpu_custom_call.1} parent=1 // pred_check
      _
    $region7: #{tpu_custom_call.1} parent=1 // pred_check_branch
      %32 = sbr.rel (0) target = $region9
    $region8: #{tpu_custom_call.1} parent=1 // pred_region
      %s34 = ssub.s32 128, 128
      %35 = vsyncadd [#allocation11], %s34
      %s36 = sshll.u32 [#allocation10], 4
      %s37 = int_to_ptr.vmem [resolvable:$true] %s36
      %42 = dma.hbm_to_vmem [thread:$0]  %s1, 128, %s37, [#allocation11], 64, 64, 4
    $region9: #{tpu_custom_call.1} parent=1 // pred_fallthru
      _
    // Predicated region
    $region10: #{tpu_custom_call.1} parent=1 // pred_check
      _
    $region11: #{tpu_custom_call.1} parent=1 // pred_check_branch
      %44 = sbr.rel (0) target = $region13
    $region12: #{tpu_custom_call.1} parent=1 // pred_region
      %s46 = ssub.s32 256, 256
      %47 = vsyncadd [#allocation11], %s46
      %s48 = sshll.u32 [#allocation12], 4
      %s49 = int_to_ptr.vmem [resolvable:$true] %s48
      %54 = dma.hbm_to_vmem [thread:$0]  %s2, 256, %s49, [#allocation11], 64, 64, 4
    $region13: #{tpu_custom_call.1} parent=1 // pred_fallthru
      _
    // Predicated region
    $region14: #{tpu_custom_call.1} parent=1 // pred_check
      _
    $region15: #{tpu_custom_call.1} parent=1 // pred_check_branch
      %56 = sbr.rel (0) target = $region17
    $region16: #{tpu_custom_call.1} parent=1 // pred_region
      _
    $region17: #{tpu_custom_call.1} parent=1 // pred_fallthru
      _
    // Predicated region
    $region18: #{tpu_custom_call.1} parent=1 // pred_check
      _
    $region19: #{tpu_custom_call.1} parent=1 // pred_check_branch
      %58 = sbr.rel (0) target = $region21
    $region20: #{tpu_custom_call.1} parent=1 // pred_region
      _
    $region21: #{tpu_custom_call.1} parent=1 // pred_fallthru
      _
    // Predicated region
    $region22: #{tpu_custom_call.1} parent=1 // pred_check
      _
    $region23: #{tpu_custom_call.1} parent=1 // pred_check_branch
      %60 = sbr.rel (0) target = $region25
    $region24: #{tpu_custom_call.1} parent=1 // pred_region
      %s62 = ssub.s32 256, 256
      %63 = vsyncadd [#allocation14], %s62
      %s64 = sshll.u32 [#allocation13], 4
      %s65 = int_to_ptr.vmem [resolvable:$true] %s64
      %70 = dma.hbm_to_vmem [thread:$0]  %s5, 256, %s65, [#allocation14], 64, 64, 4
    $region25: #{tpu_custom_call.1} parent=1 // pred_fallthru
      _
    // Predicated region
    $region26: #{tpu_custom_call.1} parent=1 // pred_check
      _
    $region27: #{tpu_custom_call.1} parent=1 // pred_check_branch
      %72 = sbr.rel (0) target = $region29
    $region28: #{tpu_custom_call.1} parent=1 // pred_region
      _
    $region29: #{tpu_custom_call.1} parent=1 // pred_fallthru
      _
    // Predicated region
    $region30: #{tpu_custom_call.1} parent=1 // pred_check
      _
    $region31: #{tpu_custom_call.1} parent=1 // pred_check_branch
      %74 = sbr.rel (0) target = $region33
    $region32: #{tpu_custom_call.1} parent=1 // pred_region
      _
    $region33: #{tpu_custom_call.1} parent=1 // pred_fallthru
      _
    // Predicated region
    $region34: #{tpu_custom_call.1} parent=1 // pred_check
      _
    $region35: #{tpu_custom_call.1} parent=1 // pred_check_branch
      %76 = sbr.rel (0) target = $region37
    $region36: #{tpu_custom_call.1} parent=1 // pred_region
      _
    $region37: #{tpu_custom_call.1} parent=1 // pred_fallthru
      _
    // Predicated region
    $region38: #{tpu_custom_call.1} parent=1 // pred_check
      _
    $region39: #{tpu_custom_call.1} parent=1 // pred_check_branch
      %78 = sbr.rel (0) target = $region41
    $region40: #{tpu_custom_call.1} parent=1 // pred_region
      %79 = dma.done [#allocation9], 1024
    $region41: #{tpu_custom_call.1} parent=1 // pred_fallthru
      _
    // Predicated region
    $region42: #{tpu_custom_call.1} parent=1 // pred_check
      _
    $region43: #{tpu_custom_call.1} parent=1 // pred_check_branch
      %81 = sbr.rel (0) target = $region45
    $region44: #{tpu_custom_call.1} parent=1 // pred_region
      %82 = dma.done [#allocation11], 128
    $region45: #{tpu_custom_call.1} parent=1 // pred_fallthru
      _
    // Predicated region
    $region46: #{tpu_custom_call.1} parent=1 // pred_check
      _
    $region47: #{tpu_custom_call.1} parent=1 // pred_check_branch
      %84 = sbr.rel (0) target = $region49
    $region48: #{tpu_custom_call.1} parent=1 // pred_region
      %85 = dma.done [#allocation11], 256
    $region49: #{tpu_custom_call.1} parent=1 // pred_fallthru
      _
    // Predicated region
    $region50: #{tpu_custom_call.1} parent=1 // pred_check
      _
    $region51: #{tpu_custom_call.1} parent=1 // pred_check_branch
      %87 = sbr.rel (0) target = $region53
    $region52: #{tpu_custom_call.1} parent=1 // pred_region
      %88 = dma.done [#allocation14], 256
    $region53: #{tpu_custom_call.1} parent=1 // pred_fallthru
      _
    %p90 = scmp.eq.s32.totalorder 0, 0
    // Predicated region
    $region54: #{tpu_custom_call.1} parent=1 // pred_check
      %p91 = pneg %p90
    $region55: #{tpu_custom_call.1} parent=1 // pred_check_branch
      %93 = sbr.rel (%p91) target = $region57
    $region56: #{tpu_custom_call.1} parent=1 // pred_region
      %vm94 = vcmask 261120
      %95 = vst.msk [vmem:[#allocation2] sm:$0xff] %vm94, 0.0
      %96 = vst.msk [vmem:[#allocation2 + $0x8] sm:$0xff] %vm94, 0.0
      %97 = vst.msk [vmem:[#allocation3] sm:$0xff] %vm94, 0.0
      %98 = vst.msk [vmem:[#allocation3 + $0x8] sm:$0xff] %vm94, 0.0
      %99 = vst.msk [vmem:[#allocation4] sm:$0xff] %vm94, 0.0
      %100 = vst.msk [vmem:[#allocation4 + $0x8] sm:$0xff] %vm94, 0.0
      %101 = vst.msk [vmem:[#allocation5] sm:$0xff] %vm94, 0.0
      %102 = vst.msk [vmem:[#allocation5 + $0x8] sm:$0xff] %vm94, 0.0
    $region57: #{tpu_custom_call.1} parent=1 // pred_fallthru
      _
    %v103 = vld [vmem:[#allocation8] sm:$0xf]
    %v104 = vld [vmem:[#allocation8 + $0x4] sm:$0xf]
    %v105 = vld [vmem:[#allocation8 + $0x8] sm:$0xf]
    %v106 = vld [vmem:[#allocation8 + $0xc] sm:$0xf]
    %v107 = vld [vmem:[#allocation8 + $0x10] sm:$0xf]
    %v108 = vld [vmem:[#allocation8 + $0x14] sm:$0xf]
    %v109 = vld [vmem:[#allocation8 + $0x18] sm:$0xf]
    %v110 = vld [vmem:[#allocation8 + $0x1c] sm:$0xf]
    %v111 = vld [vmem:[#allocation8 + $0x20] sm:$0xf]
    %v112 = vld [vmem:[#allocation8 + $0x24] sm:$0xf]
    %v113 = vld [vmem:[#allocation8 + $0x28] sm:$0xf]
    %v114 = vld [vmem:[#allocation8 + $0x2c] sm:$0xf]
    %v115 = vld [vmem:[#allocation8 + $0x30] sm:$0xf]
    %v116 = vld [vmem:[#allocation8 + $0x34] sm:$0xf]
    %v117 = vld [vmem:[#allocation8 + $0x38] sm:$0xf]
    %v118 = vld [vmem:[#allocation8 + $0x3c] sm:$0xf]
    %v119 = vld [vmem:[#allocation10] sm:$0xf]
    %v120 = vld [vmem:[#allocation10 + $0x4] sm:$0xf]
    %v137 = vunpack.c.l.b16 %v103
    %v138 = vunpack.c.l.b16 %v104
    %v139 = vunpack.c.l.b16 %v105
    %v140 = vunpack.c.l.b16 %v106
    %v141 = vunpack.c.l.b16 %v107
    %v142 = vunpack.c.l.b16 %v108
    %v143 = vunpack.c.l.b16 %v109
    %v144 = vunpack.c.l.b16 %v110
    %v145 = vunpack.c.l.b16 %v111
    %v146 = vunpack.c.l.b16 %v112
    %v147 = vunpack.c.l.b16 %v113
    %v148 = vunpack.c.l.b16 %v114
    %v149 = vunpack.c.l.b16 %v115
    %v150 = vunpack.c.l.b16 %v116
    %v151 = vunpack.c.l.b16 %v117
    %v152 = vunpack.c.l.b16 %v118
    %v153 = vpack.c.b16 %v138, %v137
    %v154 = vpack.c.b16 %v140, %v139
    %v155 = vpack.c.b16 %v142, %v141
    %v156 = vpack.c.b16 %v144, %v143
    %v157 = vpack.c.b16 %v146, %v145
    %v158 = vpack.c.b16 %v148, %v147
    %v159 = vpack.c.b16 %v150, %v149
    %v160 = vpack.c.b16 %v152, %v151
    %v163 = vunpack.c.l.b16 %v119
    %v164 = vunpack.c.l.b16 %v120
    %v165 = vpack.c.b16 %v164, %v163
    %vm167 = vcmask 130048
    %v169 = vsel %vm167, %v153, 0
    %v172 = vsel %vm167, %v154, 0
    %v175 = vsel %vm167, %v155, 0
    %v178 = vsel %vm167, %v156, 0
    %v181 = vsel %vm167, %v157, 0
    %v184 = vsel %vm167, %v158, 0
    %v187 = vsel %vm167, %v159, 0
    %v190 = vsel %vm167, %v160, 0
    %192 = vmatprep.subr.bf16.mxu0 0
    %193 = vmatpush1.bf16.msra.mxu0 %v165
    %194 = vmatprep.subr.bf16.mxu0 0
    %195 = vmatpush1.bf16.msra.mxu0 0
    %196 = vmatprep.subr.bf16.mxu0 0
    %197 = vmatpush1.bf16.msra.mxu0 0
    %198 = vmatprep.subr.bf16.mxu0 0
    %199 = vmatpush1.bf16.msra.mxu0 0
    %200 = vmatprep.subr.bf16.mxu0 0
    %201 = vmatpush1.bf16.msra.mxu0 0
    %202 = vmatprep.subr.bf16.mxu0 0
    %203 = vmatpush1.bf16.msra.mxu0 0
    %204 = vmatprep.subr.bf16.mxu0 0
    %205 = vmatpush1.bf16.msra.mxu0 0
    %206 = vmatprep.subr.bf16.mxu0 0
    %207 = vmatpush1.bf16.msra.mxu0 0
    %208 = vmatprep.subr.bf16.mxu0 0
    %209 = vmatpush1.bf16.msra.mxu0 0
    %210 = vmatprep.subr.bf16.mxu0 0
    %211 = vmatpush1.bf16.msra.mxu0 0
    %212 = vmatprep.subr.bf16.mxu0 0
    %213 = vmatpush1.bf16.msra.mxu0 0
    %214 = vmatprep.subr.bf16.mxu0 0
    %215 = vmatpush1.bf16.msra.mxu0 0
    %216 = vmatprep.subr.bf16.mxu0 0
    %217 = vmatpush1.bf16.msra.mxu0 0
    %218 = vmatprep.subr.bf16.mxu0 0
    %219 = vmatpush1.bf16.msra.mxu0 0
    %220 = vmatprep.subr.bf16.mxu0 0
    %221 = vmatpush1.bf16.msra.mxu0 0
    %222 = vmatprep.subr.bf16.mxu0 0
    %223 = vmatpush1.bf16.msra.mxu0 0
    %224 = vmatprep.mubr.bf16.mxu0 0
    %225 = vmatmul.mubr.bf16.gmra.mrb[0].mxu0 %v169
    %v226 = vpop.f32.mrb[0].mxu0
    %v227 = vadd.f32 0.0, %v226
    %v228 = vpop.f32.mrb[0].mxu0
    %v229 = vpop.f32.mrb[0].mxu0
    %v230 = vadd.f32 0.0, %v229
    %v231 = vpop.f32.mrb[0].mxu0
    %232 = vmatprep.mubr.bf16.mxu0 0
    %233 = vmatmul.mubr.bf16.gmra.mrb[0].mxu0 %v172
    %v234 = vpop.f32.mrb[0].mxu0
    %v235 = vadd.f32 0.0, %v234
    %v236 = vpop.f32.mrb[0].mxu0
    %v237 = vpop.f32.mrb[0].mxu0
    %v238 = vadd.f32 0.0, %v237
    %v239 = vpop.f32.mrb[0].mxu0
    %240 = vmatprep.mubr.bf16.mxu0 0
    %241 = vmatmul.mubr.bf16.gmra.mrb[0].mxu0 %v175
    %v242 = vpop.f32.mrb[0].mxu0
    %v243 = vadd.f32 0.0, %v242
    %v244 = vpop.f32.mrb[0].mxu0
    %v245 = vpop.f32.mrb[0].mxu0
    %v246 = vadd.f32 0.0, %v245
    %v247 = vpop.f32.mrb[0].mxu0
    %248 = vmatprep.mubr.bf16.mxu0 0
    %249 = vmatmul.mubr.bf16.gmra.mrb[0].mxu0 %v178
    %v250 = vpop.f32.mrb[0].mxu0
    %v251 = vadd.f32 0.0, %v250
    %v252 = vpop.f32.mrb[0].mxu0
    %v253 = vpop.f32.mrb[0].mxu0
    %v254 = vadd.f32 0.0, %v253
    %v255 = vpop.f32.mrb[0].mxu0
    %256 = vmatprep.mubr.bf16.mxu0 0
    %257 = vmatmul.mubr.bf16.gmra.mrb[0].mxu0 %v181
    %v258 = vpop.f32.mrb[0].mxu0
    %v259 = vadd.f32 0.0, %v258
    %v260 = vpop.f32.mrb[0].mxu0
    %v261 = vpop.f32.mrb[0].mxu0
    %v262 = vadd.f32 0.0, %v261
    %v263 = vpop.f32.mrb[0].mxu0
    %264 = vmatprep.mubr.bf16.mxu0 0
    %265 = vmatmul.mubr.bf16.gmra.mrb[0].mxu0 %v184
    %v266 = vpop.f32.mrb[0].mxu0
    %v267 = vadd.f32 0.0, %v266
    %v268 = vpop.f32.mrb[0].mxu0
    %v269 = vpop.f32.mrb[0].mxu0
    %v270 = vadd.f32 0.0, %v269
    %v271 = vpop.f32.mrb[0].mxu0
    %272 = vmatprep.mubr.bf16.mxu0 0
    %273 = vmatmul.mubr.bf16.gmra.mrb[0].mxu0 %v187
    %v274 = vpop.f32.mrb[0].mxu0
    %v275 = vadd.f32 0.0, %v274
    %v276 = vpop.f32.mrb[0].mxu0
    %v277 = vpop.f32.mrb[0].mxu0
    %v278 = vadd.f32 0.0, %v277
    %v279 = vpop.f32.mrb[0].mxu0
    %280 = vmatprep.mubr.bf16.mxu0 0
    %281 = vmatmul.mubr.bf16.gmra.mrb[0].mxu0 %v190
    %v282 = vpop.f32.mrb[0].mxu0
    %v283 = vadd.f32 0.0, %v282
    %v284 = vpop.f32.mrb[0].mxu0
    %v285 = vpop.f32.mrb[0].mxu0
    %v286 = vadd.f32 0.0, %v285
    %v287 = vpop.f32.mrb[0].mxu0
    %288 = vdwg.mxu0
    %v289 = vld [vmem:[%s3] sm:$0x1]
    %v291 = vlaneseq
    %v292 = vshrl.u32 %v291, 7
    %v293 = vsub.s32 0, %v292
    %v294 = vrot.slane %v289, %v293
    %v296 = vadd.f32 %v227, %v294
    %v297 = vadd.f32 %v230, %v294
    %v298 = vadd.f32 %v235, %v294
    %v299 = vadd.f32 %v238, %v294
    %v300 = vadd.f32 %v243, %v294
    %v301 = vadd.f32 %v246, %v294
    %v302 = vadd.f32 %v251, %v294
    %v303 = vadd.f32 %v254, %v294
    %v304 = vadd.f32 %v259, %v294
    %v305 = vadd.f32 %v262, %v294
    %v306 = vadd.f32 %v267, %v294
    %v307 = vadd.f32 %v270, %v294
    %v308 = vadd.f32 %v275, %v294
    %v309 = vadd.f32 %v278, %v294
    %v310 = vadd.f32 %v283, %v294
    %v311 = vadd.f32 %v286, %v294
    %312 = vst [vmem:[#allocation6] sm:$0xff] %v296
    %313 = vst [vmem:[#allocation6 + $0x8] sm:$0xff] %v297
    %314 = vst [vmem:[#allocation6 + $0x10] sm:$0xff] %v298
    %315 = vst [vmem:[#allocation6 + $0x18] sm:$0xff] %v299
    %316 = vst [vmem:[#allocation6 + $0x20] sm:$0xff] %v300
    %317 = vst [vmem:[#allocation6 + $0x28] sm:$0xff] %v301
    %318 = vst [vmem:[#allocation6 + $0x30] sm:$0xff] %v302
    %319 = vst [vmem:[#allocation6 + $0x38] sm:$0xff] %v303
    %320 = vst [vmem:[#allocation6 + $0x40] sm:$0xff] %v304
    %321 = vst [vmem:[#allocation6 + $0x48] sm:$0xff] %v305
    %322 = vst [vmem:[#allocation6 + $0x50] sm:$0xff] %v306
    %323 = vst [vmem:[#allocation6 + $0x58] sm:$0xff] %v307
    %324 = vst [vmem:[#allocation6 + $0x60] sm:$0xff] %v308
    %325 = vst [vmem:[#allocation6 + $0x68] sm:$0xff] %v309
    %326 = vst [vmem:[#allocation6 + $0x70] sm:$0xff] %v310
    %327 = vst [vmem:[#allocation6 + $0x78] sm:$0xff] %v311
    %v328 = vld [vmem:[#allocation12] sm:$0xf]
    %v329 = vld [vmem:[#allocation12 + $0x4] sm:$0xf]
    %v330 = vld [vmem:[#allocation12 + $0x8] sm:$0xf]
    %v331 = vld [vmem:[#allocation12 + $0xc] sm:$0xf]
    %v332 = vld [vmem:[%s4] sm:$0xf]
    %v333 = vld [vmem:[%s4 + $0x4] sm:$0xf]
    %v334 = vld [vmem:[%s4 + $0x8] sm:$0xf]
    %v335 = vld [vmem:[%s4 + $0xc] sm:$0xf]
    %v336 = vld [vmem:[#allocation13] sm:$0xf]
    %v337 = vld [vmem:[#allocation13 + $0x4] sm:$0xf]
    %v338 = vld [vmem:[#allocation13 + $0x8] sm:$0xf]
    %v339 = vld [vmem:[#allocation13 + $0xc] sm:$0xf]
    %v340 = vld [vmem:[%s6] sm:$0x1]
    %v342 = vlaneseq
    %v343 = vshrl.u32 %v342, 7
    %v344 = vsub.s32 0, %v343
    %v345 = vrot.slane %v340, %v344
    %vm347 = vcmask 785408
    %v348 = vsel %vm347, 0.5, 1.0
    %v349 = vlaneseq
    %v350 = vshrl.u32 %v349, 7
    %v351 = vsub.s32 0, %v350
    %v352 = vrot.slane %v348, %v351
    %v353 = vld [vmem:[#allocation2] sm:$0xff]
    %v354 = vld [vmem:[#allocation2 + $0x8] sm:$0xff]
    %v355 = vld [vmem:[#allocation3] sm:$0xff]
    %v356 = vld [vmem:[#allocation3 + $0x8] sm:$0xff]
    %v357 = vld [vmem:[#allocation4] sm:$0xff]
    %v358 = vld [vmem:[#allocation4 + $0x8] sm:$0xff]
    %v359 = vld [vmem:[#allocation5] sm:$0xff]
    %v360 = vld [vmem:[#allocation5 + $0x8] sm:$0xff]
    %v361 = vpack.c.bf16 %v358, %v357
    %v362 = vld [vmem:[#allocation6] sm:$0xff]
    %v363 = vld [vmem:[#allocation6 + $0x8] sm:$0xff]
    %v364 = vpack.c.bf16 %v354, %v353
    %v369 = vunpack.c.l.b16 %v328
    %v370 = vunpack.c.l.b16 %v329
    %v371 = vunpack.c.l.b16 %v330
    %v372 = vunpack.c.l.b16 %v331
    %v373 = vpack.c.b16 %v370, %v369
    %v374 = vpack.c.b16 %v372, %v371
    %vm377 = vcmask 261120
    %v379 = vsel %vm377, %v364, 0
    %381 = vmatprep.subr.bf16.mxu0 0
    %382 = vmatpush1.bf16.msra.mxu0 %v373
    %383 = vmatprep.subr.bf16.mxu0 0
    %384 = vmatpush1.bf16.msra.mxu0 %v374
    %385 = vmatprep.subr.bf16.mxu0 0
    %386 = vmatpush1.bf16.msra.mxu0 0
    %387 = vmatprep.subr.bf16.mxu0 0
    %388 = vmatpush1.bf16.msra.mxu0 0
    %389 = vmatprep.subr.bf16.mxu0 0
    %390 = vmatpush1.bf16.msra.mxu0 0
    %391 = vmatprep.subr.bf16.mxu0 0
    %392 = vmatpush1.bf16.msra.mxu0 0
    %393 = vmatprep.subr.bf16.mxu0 0
    %394 = vmatpush1.bf16.msra.mxu0 0
    %395 = vmatprep.subr.bf16.mxu0 0
    %396 = vmatpush1.bf16.msra.mxu0 0
    %397 = vmatprep.subr.bf16.mxu0 0
    %398 = vmatpush1.bf16.msra.mxu0 0
    %399 = vmatprep.subr.bf16.mxu0 0
    %400 = vmatpush1.bf16.msra.mxu0 0
    %401 = vmatprep.subr.bf16.mxu0 0
    %402 = vmatpush1.bf16.msra.mxu0 0
    %403 = vmatprep.subr.bf16.mxu0 0
    %404 = vmatpush1.bf16.msra.mxu0 0
    %405 = vmatprep.subr.bf16.mxu0 0
    %406 = vmatpush1.bf16.msra.mxu0 0
    %407 = vmatprep.subr.bf16.mxu0 0
    %408 = vmatpush1.bf16.msra.mxu0 0
    %409 = vmatprep.subr.bf16.mxu0 0
    %410 = vmatpush1.bf16.msra.mxu0 0
    %411 = vmatprep.subr.bf16.mxu0 0
    %412 = vmatpush1.bf16.msra.mxu0 0
    %413 = vmatprep.mubr.bf16.mxu0 0
    %414 = vmatmul.mubr.bf16.gmra.mrb[0].mxu0 %v379
    %v415 = vpop.f32.mrb[0].mxu0
    %v416 = vadd.f32 0.0, %v415
    %v417 = vpop.f32.mrb[0].mxu0
    %v418 = vpop.f32.mrb[0].mxu0
    %v419 = vadd.f32 0.0, %v418
    %v420 = vpop.f32.mrb[0].mxu0
    %421 = vdwg.mxu0
    %v422 = vadd.f32 %v362, %v416
    %v423 = vadd.f32 %v363, %v419
    %v424 = vmul.f32 %v422, %v352
    %v425 = vmul.f32 %v423, %v352
    %v426 = vtanh.pop %v424
    %v427 = vtanh.pop %v425
    %v428 = vmul.f32 %v426, 0.5
    %v429 = vmul.f32 %v427, 0.5
    %v430 = vadd.f32 %v428, 0.5
    %v431 = vadd.f32 %v429, 0.5
    %434 = vrot.lane.b32.xlu0 %v355, 32
    %v435 = vpop.permute.xlu0 %434
    %436 = vrot.lane.b32.xlu0 %v356, 32
    %v437 = vpop.permute.xlu0 %436
    %v440 = vmul.f32 %v430, %v435
    %v441 = vmul.f32 %v431, %v437
    %444 = vrot.lane.b32.xlu0 %v426, 32
    %v445 = vpop.permute.xlu0 %444
    %446 = vrot.lane.b32.xlu0 %v427, 32
    %v447 = vpop.permute.xlu0 %446
    %v450 = vmul.f32 %v430, %v445
    %v451 = vmul.f32 %v431, %v447
    %454 = vrot.lane.b32.xlu0 %v450, 32
    %v455 = vpop.permute.xlu0 %454
    %456 = vrot.lane.b32.xlu0 %v451, 32
    %v457 = vpop.permute.xlu0 %456
    %v460 = vadd.f32 %v440, %v455
    %v461 = vadd.f32 %v441, %v457
    %v462 = vtanh.pop %v460
    %v463 = vtanh.pop %v461
    %466 = vrot.lane.b32.xlu0 %v462, 32
    %v467 = vpop.permute.xlu0 %466
    %468 = vrot.lane.b32.xlu0 %v463, 32
    %v469 = vpop.permute.xlu0 %468
    %v472 = vmul.f32 %v430, %v467
    %v473 = vmul.f32 %v431, %v469
    %v474 = vpack.c.bf16 %v473, %v472
    %476 = vrot.lane.b32.xlu0 %v474, 64
    %v477 = vpop.permute.xlu0 %476
    %v482 = vunpack.c.l.b16 %v332
    %v483 = vunpack.c.l.b16 %v333
    %v484 = vunpack.c.l.b16 %v334
    %v485 = vunpack.c.l.b16 %v335
    %v486 = vpack.c.b16 %v483, %v482
    %v487 = vpack.c.b16 %v485, %v484
    %v491 = vsel %vm377, %v477, 0
    %493 = vmatprep.subr.bf16.mxu0 0
    %494 = vmatpush1.bf16.msra.mxu0 %v486
    %495 = vmatprep.subr.bf16.mxu0 0
    %496 = vmatpush1.bf16.msra.mxu0 %v487
    %497 = vmatprep.subr.bf16.mxu0 0
    %498 = vmatpush1.bf16.msra.mxu0 0
    %499 = vmatprep.subr.bf16.mxu0 0
    %500 = vmatpush1.bf16.msra.mxu0 0
    %501 = vmatprep.subr.bf16.mxu0 0
    %502 = vmatpush1.bf16.msra.mxu0 0
    %503 = vmatprep.subr.bf16.mxu0 0
    %504 = vmatpush1.bf16.msra.mxu0 0
    %505 = vmatprep.subr.bf16.mxu0 0
    %506 = vmatpush1.bf16.msra.mxu0 0
    %507 = vmatprep.subr.bf16.mxu0 0
    %508 = vmatpush1.bf16.msra.mxu0 0
    %509 = vmatprep.subr.bf16.mxu0 0
    %510 = vmatpush1.bf16.msra.mxu0 0
    %511 = vmatprep.subr.bf16.mxu0 0
    %512 = vmatpush1.bf16.msra.mxu0 0
    %513 = vmatprep.subr.bf16.mxu0 0
    %514 = vmatpush1.bf16.msra.mxu0 0
    %515 = vmatprep.subr.bf16.mxu0 0
    %516 = vmatpush1.bf16.msra.mxu0 0
    %517 = vmatprep.subr.bf16.mxu0 0
    %518 = vmatpush1.bf16.msra.mxu0 0
    %519 = vmatprep.subr.bf16.mxu0 0
    %520 = vmatpush1.bf16.msra.mxu0 0
    %521 = vmatprep.subr.bf16.mxu0 0
    %522 = vmatpush1.bf16.msra.mxu0 0
    %523 = vmatprep.subr.bf16.mxu0 0
    %524 = vmatpush1.bf16.msra.mxu0 0
    %525 = vmatprep.mubr.bf16.mxu0 0
    %526 = vmatmul.mubr.bf16.gmra.mrb[0].mxu0 %v491
    %v527 = vpop.f32.mrb[0].mxu0
    %v528 = vadd.f32 0.0, %v527
    %v529 = vpop.f32.mrb[0].mxu0
    %v530 = vpop.f32.mrb[0].mxu0
    %v531 = vadd.f32 0.0, %v530
    %v532 = vpop.f32.mrb[0].mxu0
    %533 = vdwg.mxu0
    %v538 = vunpack.c.l.b16 %v336
    %v539 = vunpack.c.l.b16 %v337
    %v540 = vunpack.c.l.b16 %v338
    %v541 = vunpack.c.l.b16 %v339
    %v542 = vpack.c.b16 %v539, %v538
    %v543 = vpack.c.b16 %v541, %v540
    %v547 = vsel %vm377, %v361, 0
    %549 = vmatprep.subr.bf16.mxu0 0
    %550 = vmatpush1.bf16.msra.mxu0 %v542
    %551 = vmatprep.subr.bf16.mxu0 0
    %552 = vmatpush1.bf16.msra.mxu0 %v543
    %553 = vmatprep.subr.bf16.mxu0 0
    %554 = vmatpush1.bf16.msra.mxu0 0
    %555 = vmatprep.subr.bf16.mxu0 0
    %556 = vmatpush1.bf16.msra.mxu0 0
    %557 = vmatprep.subr.bf16.mxu0 0
    %558 = vmatpush1.bf16.msra.mxu0 0
    %559 = vmatprep.subr.bf16.mxu0 0
    %560 = vmatpush1.bf16.msra.mxu0 0
    %561 = vmatprep.subr.bf16.mxu0 0
    %562 = vmatpush1.bf16.msra.mxu0 0
    %563 = vmatprep.subr.bf16.mxu0 0
    %564 = vmatpush1.bf16.msra.mxu0 0
    %565 = vmatprep.subr.bf16.mxu0 0
    %566 = vmatpush1.bf16.msra.mxu0 0
    %567 = vmatprep.subr.bf16.mxu0 0
    %568 = vmatpush1.bf16.msra.mxu0 0
    %569 = vmatprep.subr.bf16.mxu0 0
    %570 = vmatpush1.bf16.msra.mxu0 0
    %571 = vmatprep.subr.bf16.mxu0 0
    %572 = vmatpush1.bf16.msra.mxu0 0
    %573 = vmatprep.subr.bf16.mxu0 0
    %574 = vmatpush1.bf16.msra.mxu0 0
    %575 = vmatprep.subr.bf16.mxu0 0
    %576 = vmatpush1.bf16.msra.mxu0 0
    %577 = vmatprep.subr.bf16.mxu0 0
    %578 = vmatpush1.bf16.msra.mxu0 0
    %579 = vmatprep.subr.bf16.mxu0 0
    %580 = vmatpush1.bf16.msra.mxu0 0
    %581 = vmatprep.mubr.bf16.mxu0 0
    %582 = vmatmul.mubr.bf16.gmra.mrb[0].mxu0 %v547
    %v583 = vpop.f32.mrb[0].mxu0
    %v584 = vadd.f32 %v528, %v583
    %v585 = vpop.f32.mrb[0].mxu0
    %v586 = vpop.f32.mrb[0].mxu0
    %v587 = vadd.f32 %v531, %v586
    %v588 = vpop.f32.mrb[0].mxu0
    %589 = vdwg.mxu0
    %v590 = vadd.f32 %v584, %v345
    %v591 = vadd.f32 %v587, %v345
    %v592 = vmul.f32 %v590, %v352
    %v593 = vmul.f32 %v591, %v352
    %v594 = vtanh.pop %v592
    %v595 = vtanh.pop %v593
    %v596 = vmul.f32 %v594, 0.5
    %v597 = vmul.f32 %v595, 0.5
    %v598 = vadd.f32 %v596, 0.5
    %v599 = vadd.f32 %v597, 0.5
    %602 = vrot.lane.b32.xlu0 %v359, 32
    %v603 = vpop.permute.xlu0 %602
    %604 = vrot.lane.b32.xlu0 %v360, 32
    %v605 = vpop.permute.xlu0 %604
    %v608 = vmul.f32 %v598, %v603
    %v609 = vmul.f32 %v599, %v605
    %612 = vrot.lane.b32.xlu0 %v594, 32
    %v613 = vpop.permute.xlu0 %612
    %614 = vrot.lane.b32.xlu0 %v595, 32
    %v615 = vpop.permute.xlu0 %614
    %v618 = vmul.f32 %v598, %v613
    %v619 = vmul.f32 %v599, %v615
    %622 = vrot.lane.b32.xlu0 %v618, 32
    %v623 = vpop.permute.xlu0 %622
    %624 = vrot.lane.b32.xlu0 %v619, 32
    %v625 = vpop.permute.xlu0 %624
    %v628 = vadd.f32 %v608, %v623
    %v629 = vadd.f32 %v609, %v625
    %v630 = vtanh.pop %v628
    %v631 = vtanh.pop %v629
    %634 = vrot.lane.b32.xlu0 %v630, 32
    %v635 = vpop.permute.xlu0 %634
    %636 = vrot.lane.b32.xlu0 %v631, 32
    %v637 = vpop.permute.xlu0 %636
    %v640 = vmul.f32 %v598, %v635
    %v641 = vmul.f32 %v599, %v637
    %v642 = vpack.c.bf16 %v641, %v640
    %s643 = scalar_lea.vmem [#allocation6], 16
    %v644 = vld [vmem:[%s643] sm:$0xff]
    %v645 = vld [vmem:[%s643 + $0x8] sm:$0xff]
    %646 = vmatprep.subr.bf16.mxu0 0
    %647 = vmatpush1.bf16.msra.mxu0 %v373
    %648 = vmatprep.subr.bf16.mxu0 0
    %649 = vmatpush1.bf16.msra.mxu0 %v374
    %650 = vmatprep.subr.bf16.mxu0 0
    %651 = vmatpush1.bf16.msra.mxu0 0
    %652 = vmatprep.subr.bf16.mxu0 0
    %653 = vmatpush1.bf16.msra.mxu0 0
    %654 = vmatprep.subr.bf16.mxu0 0
    %655 = vmatpush1.bf16.msra.mxu0 0
    %656 = vmatprep.subr.bf16.mxu0 0
    %657 = vmatpush1.bf16.msra.mxu0 0
    %658 = vmatprep.subr.bf16.mxu0 0
    %659 = vmatpush1.bf16.msra.mxu0 0
    %660 = vmatprep.subr.bf16.mxu0 0
    %661 = vmatpush1.bf16.msra.mxu0 0
    %662 = vmatprep.subr.bf16.mxu0 0
    %663 = vmatpush1.bf16.msra.mxu0 0
    %664 = vmatprep.subr.bf16.mxu0 0
    %665 = vmatpush1.bf16.msra.mxu0 0
    %666 = vmatprep.subr.bf16.mxu0 0
    %667 = vmatpush1.bf16.msra.mxu0 0
    %668 = vmatprep.subr.bf16.mxu0 0
    %669 = vmatpush1.bf16.msra.mxu0 0
    %670 = vmatprep.subr.bf16.mxu0 0
    %671 = vmatpush1.bf16.msra.mxu0 0
    %672 = vmatprep.subr.bf16.mxu0 0
    %673 = vmatpush1.bf16.msra.mxu0 0
    %674 = vmatprep.subr.bf16.mxu0 0
    %675 = vmatpush1.bf16.msra.mxu0 0
    %676 = vmatprep.subr.bf16.mxu0 0
    %677 = vmatpush1.bf16.msra.mxu0 0
    %678 = vmatprep.mubr.bf16.mxu0 0
    %679 = vmatmul.mubr.bf16.gmra.mrb[0].mxu0 %v491
    %v680 = vpop.f32.mrb[0].mxu0
    %v681 = vadd.f32 0.0, %v680
    %v682 = vpop.f32.mrb[0].mxu0
    %v683 = vpop.f32.mrb[0].mxu0
    %v684 = vadd.f32 0.0, %v683
    %v685 = vpop.f32.mrb[0].mxu0
    %686 = vdwg.mxu0
    %v687 = vadd.f32 %v644, %v681
    %v688 = vadd.f32 %v645, %v684
    %v689 = vmul.f32 %v687, %v352
    %v690 = vmul.f32 %v688, %v352
    %v691 = vtanh.pop %v689
    %v692 = vtanh.pop %v690
    %v693 = vmul.f32 %v691, 0.5
    %v694 = vmul.f32 %v692, 0.5
    %v695 = vadd.f32 %v693, 0.5
    %v696 = vadd.f32 %v694, 0.5
    %v697 = vmul.f32 %v695, %v460
    %v698 = vmul.f32 %v696, %v461
    %701 = vrot.lane.b32.xlu0 %v691, 32
    %v702 = vpop.permute.xlu0 %701
    %703 = vrot.lane.b32.xlu0 %v692, 32
    %v704 = vpop.permute.xlu0 %703
    %v707 = vmul.f32 %v695, %v702
    %v708 = vmul.f32 %v696, %v704
    %711 = vrot.lane.b32.xlu0 %v707, 32
    %v712 = vpop.permute.xlu0 %711
    %713 = vrot.lane.b32.xlu0 %v708, 32
    %v714 = vpop.permute.xlu0 %713
    %v717 = vadd.f32 %v697, %v712
    %v718 = vadd.f32 %v698, %v714
    %v719 = vtanh.pop %v717
    %v720 = vtanh.pop %v718
    %723 = vrot.lane.b32.xlu0 %v719, 32
    %v724 = vpop.permute.xlu0 %723
    %725 = vrot.lane.b32.xlu0 %v720, 32
    %v726 = vpop.permute.xlu0 %725
    %v729 = vmul.f32 %v695, %v724
    %v730 = vmul.f32 %v696, %v726
    %v731 = vpack.c.bf16 %v730, %v729
    %733 = vrot.lane.b32.xlu0 %v731, 64
    %v734 = vpop.permute.xlu0 %733
    %v736 = vsel %vm377, %v734, 0
    %738 = vmatprep.subr.bf16.mxu0 0
    %739 = vmatpush1.bf16.msra.mxu0 %v486
    %740 = vmatprep.subr.bf16.mxu0 0
    %741 = vmatpush1.bf16.msra.mxu0 %v487
    %742 = vmatprep.subr.bf16.mxu0 0
    %743 = vmatpush1.bf16.msra.mxu0 0
    %744 = vmatprep.subr.bf16.mxu0 0
    %745 = vmatpush1.bf16.msra.mxu0 0
    %746 = vmatprep.subr.bf16.mxu0 0
    %747 = vmatpush1.bf16.msra.mxu0 0
    %748 = vmatprep.subr.bf16.mxu0 0
    %749 = vmatpush1.bf16.msra.mxu0 0
    %750 = vmatprep.subr.bf16.mxu0 0
    %751 = vmatpush1.bf16.msra.mxu0 0
    %752 = vmatprep.subr.bf16.mxu0 0
    %753 = vmatpush1.bf16.msra.mxu0 0
    %754 = vmatprep.subr.bf16.mxu0 0
    %755 = vmatpush1.bf16.msra.mxu0 0
    %756 = vmatprep.subr.bf16.mxu0 0
    %757 = vmatpush1.bf16.msra.mxu0 0
    %758 = vmatprep.subr.bf16.mxu0 0
    %759 = vmatpush1.bf16.msra.mxu0 0
    %760 = vmatprep.subr.bf16.mxu0 0
    %761 = vmatpush1.bf16.msra.mxu0 0
    %762 = vmatprep.subr.bf16.mxu0 0
    %763 = vmatpush1.bf16.msra.mxu0 0
    %764 = vmatprep.subr.bf16.mxu0 0
    %765 = vmatpush1.bf16.msra.mxu0 0
    %766 = vmatprep.subr.bf16.mxu0 0
    %767 = vmatpush1.bf16.msra.mxu0 0
    %768 = vmatprep.subr.bf16.mxu0 0
    %769 = vmatpush1.bf16.msra.mxu0 0
    %770 = vmatprep.mubr.bf16.mxu0 0
    %771 = vmatmul.mubr.bf16.gmra.mrb[0].mxu0 %v736
    %v772 = vpop.f32.mrb[0].mxu0
    %v773 = vadd.f32 0.0, %v772
    %v774 = vpop.f32.mrb[0].mxu0
    %v775 = vpop.f32.mrb[0].mxu0
    %v776 = vadd.f32 0.0, %v775
    %v777 = vpop.f32.mrb[0].mxu0
    %778 = vdwg.mxu0
    %780 = vrot.lane.b32.xlu0 %v642, 64
    %v781 = vpop.permute.xlu0 %780
    %v783 = vsel %vm377, %v781, 0
    %785 = vmatprep.subr.bf16.mxu0 0
    %786 = vmatpush1.bf16.msra.mxu0 %v542
    %787 = vmatprep.subr.bf16.mxu0 0
    %788 = vmatpush1.bf16.msra.mxu0 %v543
    %789 = vmatprep.subr.bf16.mxu0 0
    %790 = vmatpush1.bf16.msra.mxu0 0
    %791 = vmatprep.subr.bf16.mxu0 0
    %792 = vmatpush1.bf16.msra.mxu0 0
    %793 = vmatprep.subr.bf16.mxu0 0
    %794 = vmatpush1.bf16.msra.mxu0 0
    %795 = vmatprep.subr.bf16.mxu0 0
    %796 = vmatpush1.bf16.msra.mxu0 0
    %797 = vmatprep.subr.bf16.mxu0 0
    %798 = vmatpush1.bf16.msra.mxu0 0
    %799 = vmatprep.subr.bf16.mxu0 0
    %800 = vmatpush1.bf16.msra.mxu0 0
    %801 = vmatprep.subr.bf16.mxu0 0
    %802 = vmatpush1.bf16.msra.mxu0 0
    %803 = vmatprep.subr.bf16.mxu0 0
    %804 = vmatpush1.bf16.msra.mxu0 0
    %805 = vmatprep.subr.bf16.mxu0 0
    %806 = vmatpush1.bf16.msra.mxu0 0
    %807 = vmatprep.subr.bf16.mxu0 0
    %808 = vmatpush1.bf16.msra.mxu0 0
    %809 = vmatprep.subr.bf16.mxu0 0
    %810 = vmatpush1.bf16.msra.mxu0 0
    %811 = vmatprep.subr.bf16.mxu0 0
    %812 = vmatpush1.bf16.msra.mxu0 0
    %813 = vmatprep.subr.bf16.mxu0 0
    %814 = vmatpush1.bf16.msra.mxu0 0
    %815 = vmatprep.subr.bf16.mxu0 0
    %816 = vmatpush1.bf16.msra.mxu0 0
    %817 = vmatprep.mubr.bf16.mxu0 0
    %818 = vmatmul.mubr.bf16.gmra.mrb[0].mxu0 %v783
    %v819 = vpop.f32.mrb[0].mxu0
    %v820 = vadd.f32 %v773, %v819
    %v821 = vpop.f32.mrb[0].mxu0
    %v822 = vpop.f32.mrb[0].mxu0
    %v823 = vadd.f32 %v776, %v822
    %v824 = vpop.f32.mrb[0].mxu0
    %825 = vdwg.mxu0
    %v826 = vadd.f32 %v820, %v345
    %v827 = vadd.f32 %v823, %v345
    %v828 = vmul.f32 %v826, %v352
    %v829 = vmul.f32 %v827, %v352
    %v830 = vtanh.pop %v828
    %v831 = vtanh.pop %v829
    %v832 = vmul.f32 %v830, 0.5
    %v833 = vmul.f32 %v831, 0.5
    %v834 = vadd.f32 %v832, 0.5
    %v835 = vadd.f32 %v833, 0.5
    %v836 = vmul.f32 %v834, %v628
    %v837 = vmul.f32 %v835, %v629
    %840 = vrot.lane.b32.xlu0 %v830, 32
    %v841 = vpop.permute.xlu0 %840
    %842 = vrot.lane.b32.xlu0 %v831, 32
    %v843 = vpop.permute.xlu0 %842
    %v846 = vmul.f32 %v834, %v841
    %v847 = vmul.f32 %v835, %v843
    %850 = vrot.lane.b32.xlu0 %v846, 32
    %v851 = vpop.permute.xlu0 %850
    %852 = vrot.lane.b32.xlu0 %v847, 32
    %v853 = vpop.permute.xlu0 %852
    %v856 = vadd.f32 %v836, %v851
    %v857 = vadd.f32 %v837, %v853
    %v858 = vtanh.pop %v856
    %v859 = vtanh.pop %v857
    %862 = vrot.lane.b32.xlu0 %v858, 32
    %v863 = vpop.permute.xlu0 %862
    %864 = vrot.lane.b32.xlu0 %v859, 32
    %v865 = vpop.permute.xlu0 %864
    %v868 = vmul.f32 %v834, %v863
    %v869 = vmul.f32 %v835, %v865
    %v870 = vpack.c.bf16 %v869, %v868
    %s871 = scalar_lea.vmem [#allocation6], 32
    %v872 = vld [vmem:[%s871] sm:$0xff]
    %v873 = vld [vmem:[%s871 + $0x8] sm:$0xff]
    %874 = vmatprep.subr.bf16.mxu0 0
    %875 = vmatpush1.bf16.msra.mxu0 %v373
    %876 = vmatprep.subr.bf16.mxu0 0
    %877 = vmatpush1.bf16.msra.mxu0 %v374
    %878 = vmatprep.subr.bf16.mxu0 0
    %879 = vmatpush1.bf16.msra.mxu0 0
    %880 = vmatprep.subr.bf16.mxu0 0
    %881 = vmatpush1.bf16.msra.mxu0 0
    %882 = vmatprep.subr.bf16.mxu0 0
    %883 = vmatpush1.bf16.msra.mxu0 0
    %884 = vmatprep.subr.bf16.mxu0 0
    %885 = vmatpush1.bf16.msra.mxu0 0
    %886 = vmatprep.subr.bf16.mxu0 0
    %887 = vmatpush1.bf16.msra.mxu0 0
    %888 = vmatprep.subr.bf16.mxu0 0
    %889 = vmatpush1.bf16.msra.mxu0 0
    %890 = vmatprep.subr.bf16.mxu0 0
    %891 = vmatpush1.bf16.msra.mxu0 0
    %892 = vmatprep.subr.bf16.mxu0 0
    %893 = vmatpush1.bf16.msra.mxu0 0
    %894 = vmatprep.subr.bf16.mxu0 0
    %895 = vmatpush1.bf16.msra.mxu0 0
    %896 = vmatprep.subr.bf16.mxu0 0
    %897 = vmatpush1.bf16.msra.mxu0 0
    %898 = vmatprep.subr.bf16.mxu0 0
    %899 = vmatpush1.bf16.msra.mxu0 0
    %900 = vmatprep.subr.bf16.mxu0 0
    %901 = vmatpush1.bf16.msra.mxu0 0
    %902 = vmatprep.subr.bf16.mxu0 0
    %903 = vmatpush1.bf16.msra.mxu0 0
    %904 = vmatprep.subr.bf16.mxu0 0
    %905 = vmatpush1.bf16.msra.mxu0 0
    %906 = vmatprep.mubr.bf16.mxu0 0
    %907 = vmatmul.mubr.bf16.gmra.mrb[0].mxu0 %v736
    %v908 = vpop.f32.mrb[0].mxu0
    %v909 = vadd.f32 0.0, %v908
    %v910 = vpop.f32.mrb[0].mxu0
    %v911 = vpop.f32.mrb[0].mxu0
    %v912 = vadd.f32 0.0, %v911
    %v913 = vpop.f32.mrb[0].mxu0
    %914 = vdwg.mxu0
    %v915 = vadd.f32 %v872, %v909
    %v916 = vadd.f32 %v873, %v912
    %v917 = vmul.f32 %v915, %v352
    %v918 = vmul.f32 %v916, %v352
    %v919 = vtanh.pop %v917
    %v920 = vtanh.pop %v918
    %v921 = vmul.f32 %v919, 0.5
    %v922 = vmul.f32 %v920, 0.5
    %v923 = vadd.f32 %v921, 0.5
    %v924 = vadd.f32 %v922, 0.5
    %v925 = vmul.f32 %v923, %v717
    %v926 = vmul.f32 %v924, %v718
    %929 = vrot.lane.b32.xlu0 %v919, 32
    %v930 = vpop.permute.xlu0 %929
    %931 = vrot.lane.b32.xlu0 %v920, 32
    %v932 = vpop.permute.xlu0 %931
    %v935 = vmul.f32 %v923, %v930
    %v936 = vmul.f32 %v924, %v932
    %939 = vrot.lane.b32.xlu0 %v935, 32
    %v940 = vpop.permute.xlu0 %939
    %941 = vrot.lane.b32.xlu0 %v936, 32
    %v942 = vpop.permute.xlu0 %941
    %v945 = vadd.f32 %v925, %v940
    %v946 = vadd.f32 %v926, %v942
    %v947 = vtanh.pop %v945
    %v948 = vtanh.pop %v946
    %951 = vrot.lane.b32.xlu0 %v947, 32
    %v952 = vpop.permute.xlu0 %951
    %953 = vrot.lane.b32.xlu0 %v948, 32
    %v954 = vpop.permute.xlu0 %953
    %v957 = vmul.f32 %v923, %v952
    %v958 = vmul.f32 %v924, %v954
    %v959 = vpack.c.bf16 %v958, %v957
    %961 = vrot.lane.b32.xlu0 %v959, 64
    %v962 = vpop.permute.xlu0 %961
    %v964 = vsel %vm377, %v962, 0
    %966 = vmatprep.subr.bf16.mxu0 0
    %967 = vmatpush1.bf16.msra.mxu0 %v486
    %968 = vmatprep.subr.bf16.mxu0 0
    %969 = vmatpush1.bf16.msra.mxu0 %v487
    %970 = vmatprep.subr.bf16.mxu0 0
    %971 = vmatpush1.bf16.msra.mxu0 0
    %972 = vmatprep.subr.bf16.mxu0 0
    %973 = vmatpush1.bf16.msra.mxu0 0
    %974 = vmatprep.subr.bf16.mxu0 0
    %975 = vmatpush1.bf16.msra.mxu0 0
    %976 = vmatprep.subr.bf16.mxu0 0
    %977 = vmatpush1.bf16.msra.mxu0 0
    %978 = vmatprep.subr.bf16.mxu0 0
    %979 = vmatpush1.bf16.msra.mxu0 0
    %980 = vmatprep.subr.bf16.mxu0 0
    %981 = vmatpush1.bf16.msra.mxu0 0
    %982 = vmatprep.subr.bf16.mxu0 0
    %983 = vmatpush1.bf16.msra.mxu0 0
    %984 = vmatprep.subr.bf16.mxu0 0
    %985 = vmatpush1.bf16.msra.mxu0 0
    %986 = vmatprep.subr.bf16.mxu0 0
    %987 = vmatpush1.bf16.msra.mxu0 0
    %988 = vmatprep.subr.bf16.mxu0 0
    %989 = vmatpush1.bf16.msra.mxu0 0
    %990 = vmatprep.subr.bf16.mxu0 0
    %991 = vmatpush1.bf16.msra.mxu0 0
    %992 = vmatprep.subr.bf16.mxu0 0
    %993 = vmatpush1.bf16.msra.mxu0 0
    %994 = vmatprep.subr.bf16.mxu0 0
    %995 = vmatpush1.bf16.msra.mxu0 0
    %996 = vmatprep.subr.bf16.mxu0 0
    %997 = vmatpush1.bf16.msra.mxu0 0
    %998 = vmatprep.mubr.bf16.mxu0 0
    %999 = vmatmul.mubr.bf16.gmra.mrb[0].mxu0 %v964
    %v1000 = vpop.f32.mrb[0].mxu0
    %v1001 = vadd.f32 0.0, %v1000
    %v1002 = vpop.f32.mrb[0].mxu0
    %v1003 = vpop.f32.mrb[0].mxu0
    %v1004 = vadd.f32 0.0, %v1003
    %v1005 = vpop.f32.mrb[0].mxu0
    %1006 = vdwg.mxu0
    %1008 = vrot.lane.b32.xlu0 %v870, 64
    %v1009 = vpop.permute.xlu0 %1008
    %v1011 = vsel %vm377, %v1009, 0
    %1013 = vmatprep.subr.bf16.mxu0 0
    %1014 = vmatpush1.bf16.msra.mxu0 %v542
    %1015 = vmatprep.subr.bf16.mxu0 0
    %1016 = vmatpush1.bf16.msra.mxu0 %v543
    %1017 = vmatprep.subr.bf16.mxu0 0
    %1018 = vmatpush1.bf16.msra.mxu0 0
    %1019 = vmatprep.subr.bf16.mxu0 0
    %1020 = vmatpush1.bf16.msra.mxu0 0
    %1021 = vmatprep.subr.bf16.mxu0 0
    %1022 = vmatpush1.bf16.msra.mxu0 0
    %1023 = vmatprep.subr.bf16.mxu0 0
    %1024 = vmatpush1.bf16.msra.mxu0 0
    %1025 = vmatprep.subr.bf16.mxu0 0
    %1026 = vmatpush1.bf16.msra.mxu0 0
    %1027 = vmatprep.subr.bf16.mxu0 0
    %1028 = vmatpush1.bf16.msra.mxu0 0
    %1029 = vmatprep.subr.bf16.mxu0 0
    %1030 = vmatpush1.bf16.msra.mxu0 0
    %1031 = vmatprep.subr.bf16.mxu0 0
    %1032 = vmatpush1.bf16.msra.mxu0 0
    %1033 = vmatprep.subr.bf16.mxu0 0
    %1034 = vmatpush1.bf16.msra.mxu0 0
    %1035 = vmatprep.subr.bf16.mxu0 0
    %1036 = vmatpush1.bf16.msra.mxu0 0
    %1037 = vmatprep.subr.bf16.mxu0 0
    %1038 = vmatpush1.bf16.msra.mxu0 0
    %1039 = vmatprep.subr.bf16.mxu0 0
    %1040 = vmatpush1.bf16.msra.mxu0 0
    %1041 = vmatprep.subr.bf16.mxu0 0
    %1042 = vmatpush1.bf16.msra.mxu0 0
    %1043 = vmatprep.subr.bf16.mxu0 0
    %1044 = vmatpush1.bf16.msra.mxu0 0
    %1045 = vmatprep.mubr.bf16.mxu0 0
    %1046 = vmatmul.mubr.bf16.gmra.mrb[0].mxu0 %v1011
    %v1047 = vpop.f32.mrb[0].mxu0
    %v1048 = vadd.f32 %v1001, %v1047
    %v1049 = vpop.f32.mrb[0].mxu0
    %v1050 = vpop.f32.mrb[0].mxu0
    %v1051 = vadd.f32 %v1004, %v1050
    %v1052 = vpop.f32.mrb[0].mxu0
    %1053 = vdwg.mxu0
    %v1054 = vadd.f32 %v1048, %v345
    %v1055 = vadd.f32 %v1051, %v345
    %v1056 = vmul.f32 %v1054, %v352
    %v1057 = vmul.f32 %v1055, %v352
    %v1058 = vtanh.pop %v1056
    %v1059 = vtanh.pop %v1057
    %v1060 = vmul.f32 %v1058, 0.5
    %v1061 = vmul.f32 %v1059, 0.5
    %v1062 = vadd.f32 %v1060, 0.5
    %v1063 = vadd.f32 %v1061, 0.5
    %v1064 = vmul.f32 %v1062, %v856
    %v1065 = vmul.f32 %v1063, %v857
    %1068 = vrot.lane.b32.xlu0 %v1058, 32
    %v1069 = vpop.permute.xlu0 %1068
    %1070 = vrot.lane.b32.xlu0 %v1059, 32
    %v1071 = vpop.permute.xlu0 %1070
    %v1074 = vmul.f32 %v1062, %v1069
    %v1075 = vmul.f32 %v1063, %v1071
    %1078 = vrot.lane.b32.xlu0 %v1074, 32
    %v1079 = vpop.permute.xlu0 %1078
    %1080 = vrot.lane.b32.xlu0 %v1075, 32
    %v1081 = vpop.permute.xlu0 %1080
    %v1084 = vadd.f32 %v1064, %v1079
    %v1085 = vadd.f32 %v1065, %v1081
    %v1086 = vtanh.pop %v1084
    %v1087 = vtanh.pop %v1085
    %1090 = vrot.lane.b32.xlu0 %v1086, 32
    %v1091 = vpop.permute.xlu0 %1090
    %1092 = vrot.lane.b32.xlu0 %v1087, 32
    %v1093 = vpop.permute.xlu0 %1092
    %v1096 = vmul.f32 %v1062, %v1091
    %v1097 = vmul.f32 %v1063, %v1093
    %v1098 = vpack.c.bf16 %v1097, %v1096
    %s1099 = scalar_lea.vmem [#allocation6], 48
    %v1100 = vld [vmem:[%s1099] sm:$0xff]
    %v1101 = vld [vmem:[%s1099 + $0x8] sm:$0xff]
    %1102 = vmatprep.subr.bf16.mxu0 0
    %1103 = vmatpush1.bf16.msra.mxu0 %v373
    %1104 = vmatprep.subr.bf16.mxu0 0
    %1105 = vmatpush1.bf16.msra.mxu0 %v374
    %1106 = vmatprep.subr.bf16.mxu0 0
    %1107 = vmatpush1.bf16.msra.mxu0 0
    %1108 = vmatprep.subr.bf16.mxu0 0
    %1109 = vmatpush1.bf16.msra.mxu0 0
    %1110 = vmatprep.subr.bf16.mxu0 0
    %1111 = vmatpush1.bf16.msra.mxu0 0
    %1112 = vmatprep.subr.bf16.mxu0 0
    %1113 = vmatpush1.bf16.msra.mxu0 0
    %1114 = vmatprep.subr.bf16.mxu0 0
    %1115 = vmatpush1.bf16.msra.mxu0 0
    %1116 = vmatprep.subr.bf16.mxu0 0
    %1117 = vmatpush1.bf16.msra.mxu0 0
    %1118 = vmatprep.subr.bf16.mxu0 0
    %1119 = vmatpush1.bf16.msra.mxu0 0
    %1120 = vmatprep.subr.bf16.mxu0 0
    %1121 = vmatpush1.bf16.msra.mxu0 0
    %1122 = vmatprep.subr.bf16.mxu0 0
    %1123 = vmatpush1.bf16.msra.mxu0 0
    %1124 = vmatprep.subr.bf16.mxu0 0
    %1125 = vmatpush1.bf16.msra.mxu0 0
    %1126 = vmatprep.subr.bf16.mxu0 0
    %1127 = vmatpush1.bf16.msra.mxu0 0
    %1128 = vmatprep.subr.bf16.mxu0 0
    %1129 = vmatpush1.bf16.msra.mxu0 0
    %1130 = vmatprep.subr.bf16.mxu0 0
    %1131 = vmatpush1.bf16.msra.mxu0 0
    %1132 = vmatprep.subr.bf16.mxu0 0
    %1133 = vmatpush1.bf16.msra.mxu0 0
    %1134 = vmatprep.mubr.bf16.mxu0 0
    %1135 = vmatmul.mubr.bf16.gmra.mrb[0].mxu0 %v964
    %v1136 = vpop.f32.mrb[0].mxu0
    %v1137 = vadd.f32 0.0, %v1136
    %v1138 = vpop.f32.mrb[0].mxu0
    %v1139 = vpop.f32.mrb[0].mxu0
    %v1140 = vadd.f32 0.0, %v1139
    %v1141 = vpop.f32.mrb[0].mxu0
    %1142 = vdwg.mxu0
    %v1143 = vadd.f32 %v1100, %v1137
    %v1144 = vadd.f32 %v1101, %v1140
    %v1145 = vmul.f32 %v1143, %v352
    %v1146 = vmul.f32 %v1144, %v352
    %v1147 = vtanh.pop %v1145
    %v1148 = vtanh.pop %v1146
    %v1149 = vmul.f32 %v1147, 0.5
    %v1150 = vmul.f32 %v1148, 0.5
    %v1151 = vadd.f32 %v1149, 0.5
    %v1152 = vadd.f32 %v1150, 0.5
    %v1153 = vmul.f32 %v1151, %v945
    %v1154 = vmul.f32 %v1152, %v946
    %1157 = vrot.lane.b32.xlu0 %v1147, 32
    %v1158 = vpop.permute.xlu0 %1157
    %1159 = vrot.lane.b32.xlu0 %v1148, 32
    %v1160 = vpop.permute.xlu0 %1159
    %v1163 = vmul.f32 %v1151, %v1158
    %v1164 = vmul.f32 %v1152, %v1160
    %1167 = vrot.lane.b32.xlu0 %v1163, 32
    %v1168 = vpop.permute.xlu0 %1167
    %1169 = vrot.lane.b32.xlu0 %v1164, 32
    %v1170 = vpop.permute.xlu0 %1169
    %v1173 = vadd.f32 %v1153, %v1168
    %v1174 = vadd.f32 %v1154, %v1170
    %v1175 = vtanh.pop %v1173
    %v1176 = vtanh.pop %v1174
    %1179 = vrot.lane.b32.xlu0 %v1175, 32
    %v1180 = vpop.permute.xlu0 %1179
    %1181 = vrot.lane.b32.xlu0 %v1176, 32
    %v1182 = vpop.permute.xlu0 %1181
    %v1185 = vmul.f32 %v1151, %v1180
    %v1186 = vmul.f32 %v1152, %v1182
    %v1187 = vpack.c.bf16 %v1186, %v1185
    %1189 = vrot.lane.b32.xlu0 %v1187, 64
    %v1190 = vpop.permute.xlu0 %1189
    %v1192 = vsel %vm377, %v1190, 0
    %1194 = vmatprep.subr.bf16.mxu0 0
    %1195 = vmatpush1.bf16.msra.mxu0 %v486
    %1196 = vmatprep.subr.bf16.mxu0 0
    %1197 = vmatpush1.bf16.msra.mxu0 %v487
    %1198 = vmatprep.subr.bf16.mxu0 0
    %1199 = vmatpush1.bf16.msra.mxu0 0
    %1200 = vmatprep.subr.bf16.mxu0 0
    %1201 = vmatpush1.bf16.msra.mxu0 0
    %1202 = vmatprep.subr.bf16.mxu0 0
    %1203 = vmatpush1.bf16.msra.mxu0 0
    %1204 = vmatprep.subr.bf16.mxu0 0
    %1205 = vmatpush1.bf16.msra.mxu0 0
    %1206 = vmatprep.subr.bf16.mxu0 0
    %1207 = vmatpush1.bf16.msra.mxu0 0
    %1208 = vmatprep.subr.bf16.mxu0 0
    %1209 = vmatpush1.bf16.msra.mxu0 0
    %1210 = vmatprep.subr.bf16.mxu0 0
    %1211 = vmatpush1.bf16.msra.mxu0 0
    %1212 = vmatprep.subr.bf16.mxu0 0
    %1213 = vmatpush1.bf16.msra.mxu0 0
    %1214 = vmatprep.subr.bf16.mxu0 0
    %1215 = vmatpush1.bf16.msra.mxu0 0
    %1216 = vmatprep.subr.bf16.mxu0 0
    %1217 = vmatpush1.bf16.msra.mxu0 0
    %1218 = vmatprep.subr.bf16.mxu0 0
    %1219 = vmatpush1.bf16.msra.mxu0 0
    %1220 = vmatprep.subr.bf16.mxu0 0
    %1221 = vmatpush1.bf16.msra.mxu0 0
    %1222 = vmatprep.subr.bf16.mxu0 0
    %1223 = vmatpush1.bf16.msra.mxu0 0
    %1224 = vmatprep.subr.bf16.mxu0 0
    %1225 = vmatpush1.bf16.msra.mxu0 0
    %1226 = vmatprep.mubr.bf16.mxu0 0
    %1227 = vmatmul.mubr.bf16.gmra.mrb[0].mxu0 %v1192
    %v1228 = vpop.f32.mrb[0].mxu0
    %v1229 = vadd.f32 0.0, %v1228
    %v1230 = vpop.f32.mrb[0].mxu0
    %v1231 = vpop.f32.mrb[0].mxu0
    %v1232 = vadd.f32 0.0, %v1231
    %v1233 = vpop.f32.mrb[0].mxu0
    %1234 = vdwg.mxu0
    %1236 = vrot.lane.b32.xlu0 %v1098, 64
    %v1237 = vpop.permute.xlu0 %1236
    %v1239 = vsel %vm377, %v1237, 0
    %1241 = vmatprep.subr.bf16.mxu0 0
    %1242 = vmatpush1.bf16.msra.mxu0 %v542
    %1243 = vmatprep.subr.bf16.mxu0 0
    %1244 = vmatpush1.bf16.msra.mxu0 %v543
    %1245 = vmatprep.subr.bf16.mxu0 0
    %1246 = vmatpush1.bf16.msra.mxu0 0
    %1247 = vmatprep.subr.bf16.mxu0 0
    %1248 = vmatpush1.bf16.msra.mxu0 0
    %1249 = vmatprep.subr.bf16.mxu0 0
    %1250 = vmatpush1.bf16.msra.mxu0 0
    %1251 = vmatprep.subr.bf16.mxu0 0
    %1252 = vmatpush1.bf16.msra.mxu0 0
    %1253 = vmatprep.subr.bf16.mxu0 0
    %1254 = vmatpush1.bf16.msra.mxu0 0
    %1255 = vmatprep.subr.bf16.mxu0 0
    %1256 = vmatpush1.bf16.msra.mxu0 0
    %1257 = vmatprep.subr.bf16.mxu0 0
    %1258 = vmatpush1.bf16.msra.mxu0 0
    %1259 = vmatprep.subr.bf16.mxu0 0
    %1260 = vmatpush1.bf16.msra.mxu0 0
    %1261 = vmatprep.subr.bf16.mxu0 0
    %1262 = vmatpush1.bf16.msra.mxu0 0
    %1263 = vmatprep.subr.bf16.mxu0 0
    %1264 = vmatpush1.bf16.msra.mxu0 0
    %1265 = vmatprep.subr.bf16.mxu0 0
    %1266 = vmatpush1.bf16.msra.mxu0 0
    %1267 = vmatprep.subr.bf16.mxu0 0
    %1268 = vmatpush1.bf16.msra.mxu0 0
    %1269 = vmatprep.subr.bf16.mxu0 0
    %1270 = vmatpush1.bf16.msra.mxu0 0
    %1271 = vmatprep.subr.bf16.mxu0 0
    %1272 = vmatpush1.bf16.msra.mxu0 0
    %1273 = vmatprep.mubr.bf16.mxu0 0
    %1274 = vmatmul.mubr.bf16.gmra.mrb[0].mxu0 %v1239
    %v1275 = vpop.f32.mrb[0].mxu0
    %v1276 = vadd.f32 %v1229, %v1275
    %v1277 = vpop.f32.mrb[0].mxu0
    %v1278 = vpop.f32.mrb[0].mxu0
    %v1279 = vadd.f32 %v1232, %v1278
    %v1280 = vpop.f32.mrb[0].mxu0
    %1281 = vdwg.mxu0
    %v1282 = vadd.f32 %v1276, %v345
    %v1283 = vadd.f32 %v1279, %v345
    %v1284 = vmul.f32 %v1282, %v352
    %v1285 = vmul.f32 %v1283, %v352
    %v1286 = vtanh.pop %v1284
    %v1287 = vtanh.pop %v1285
    %v1288 = vmul.f32 %v1286, 0.5
    %v1289 = vmul.f32 %v1287, 0.5
    %v1290 = vadd.f32 %v1288, 0.5
    %v1291 = vadd.f32 %v1289, 0.5
    %v1292 = vmul.f32 %v1290, %v1084
    %v1293 = vmul.f32 %v1291, %v1085
    %1296 = vrot.lane.b32.xlu0 %v1286, 32
    %v1297 = vpop.permute.xlu0 %1296
    %1298 = vrot.lane.b32.xlu0 %v1287, 32
    %v1299 = vpop.permute.xlu0 %1298
    %v1302 = vmul.f32 %v1290, %v1297
    %v1303 = vmul.f32 %v1291, %v1299
    %1306 = vrot.lane.b32.xlu0 %v1302, 32
    %v1307 = vpop.permute.xlu0 %1306
    %1308 = vrot.lane.b32.xlu0 %v1303, 32
    %v1309 = vpop.permute.xlu0 %1308
    %v1312 = vadd.f32 %v1292, %v1307
    %v1313 = vadd.f32 %v1293, %v1309
    %v1314 = vtanh.pop %v1312
    %v1315 = vtanh.pop %v1313
    %1318 = vrot.lane.b32.xlu0 %v1314, 32
    %v1319 = vpop.permute.xlu0 %1318
    %1320 = vrot.lane.b32.xlu0 %v1315, 32
    %v1321 = vpop.permute.xlu0 %1320
    %v1324 = vmul.f32 %v1290, %v1319
    %v1325 = vmul.f32 %v1291, %v1321
    %v1326 = vpack.c.bf16 %v1325, %v1324
    %s1327 = scalar_lea.vmem [#allocation6], 64
    %v1328 = vld [vmem:[%s1327] sm:$0xff]
    %v1329 = vld [vmem:[%s1327 + $0x8] sm:$0xff]
    %1330 = vmatprep.subr.bf16.mxu0 0
    %1331 = vmatpush1.bf16.msra.mxu0 %v373
    %1332 = vmatprep.subr.bf16.mxu0 0
    %1333 = vmatpush1.bf16.msra.mxu0 %v374
    %1334 = vmatprep.subr.bf16.mxu0 0
    %1335 = vmatpush1.bf16.msra.mxu0 0
    %1336 = vmatprep.subr.bf16.mxu0 0
    %1337 = vmatpush1.bf16.msra.mxu0 0
    %1338 = vmatprep.subr.bf16.mxu0 0
    %1339 = vmatpush1.bf16.msra.mxu0 0
    %1340 = vmatprep.subr.bf16.mxu0 0
    %1341 = vmatpush1.bf16.msra.mxu0 0
    %1342 = vmatprep.subr.bf16.mxu0 0
    %1343 = vmatpush1.bf16.msra.mxu0 0
    %1344 = vmatprep.subr.bf16.mxu0 0
    %1345 = vmatpush1.bf16.msra.mxu0 0
    %1346 = vmatprep.subr.bf16.mxu0 0
    %1347 = vmatpush1.bf16.msra.mxu0 0
    %1348 = vmatprep.subr.bf16.mxu0 0
    %1349 = vmatpush1.bf16.msra.mxu0 0
    %1350 = vmatprep.subr.bf16.mxu0 0
    %1351 = vmatpush1.bf16.msra.mxu0 0
    %1352 = vmatprep.subr.bf16.mxu0 0
    %1353 = vmatpush1.bf16.msra.mxu0 0
    %1354 = vmatprep.subr.bf16.mxu0 0
    %1355 = vmatpush1.bf16.msra.mxu0 0
    %1356 = vmatprep.subr.bf16.mxu0 0
    %1357 = vmatpush1.bf16.msra.mxu0 0
    %1358 = vmatprep.subr.bf16.mxu0 0
    %1359 = vmatpush1.bf16.msra.mxu0 0
    %1360 = vmatprep.subr.bf16.mxu0 0
    %1361 = vmatpush1.bf16.msra.mxu0 0
    %1362 = vmatprep.mubr.bf16.mxu0 0
    %1363 = vmatmul.mubr.bf16.gmra.mrb[0].mxu0 %v1192
    %v1364 = vpop.f32.mrb[0].mxu0
    %v1365 = vadd.f32 0.0, %v1364
    %v1366 = vpop.f32.mrb[0].mxu0
    %v1367 = vpop.f32.mrb[0].mxu0
    %v1368 = vadd.f32 0.0, %v1367
    %v1369 = vpop.f32.mrb[0].mxu0
    %1370 = vdwg.mxu0
    %v1371 = vadd.f32 %v1328, %v1365
    %v1372 = vadd.f32 %v1329, %v1368
    %v1373 = vmul.f32 %v1371, %v352
    %v1374 = vmul.f32 %v1372, %v352
    %v1375 = vtanh.pop %v1373
    %v1376 = vtanh.pop %v1374
    %v1377 = vmul.f32 %v1375, 0.5
    %v1378 = vmul.f32 %v1376, 0.5
    %v1379 = vadd.f32 %v1377, 0.5
    %v1380 = vadd.f32 %v1378, 0.5
    %v1381 = vmul.f32 %v1379, %v1173
    %v1382 = vmul.f32 %v1380, %v1174
    %1385 = vrot.lane.b32.xlu0 %v1375, 32
    %v1386 = vpop.permute.xlu0 %1385
    %1387 = vrot.lane.b32.xlu0 %v1376, 32
    %v1388 = vpop.permute.xlu0 %1387
    %v1391 = vmul.f32 %v1379, %v1386
    %v1392 = vmul.f32 %v1380, %v1388
    %1395 = vrot.lane.b32.xlu0 %v1391, 32
    %v1396 = vpop.permute.xlu0 %1395
    %1397 = vrot.lane.b32.xlu0 %v1392, 32
    %v1398 = vpop.permute.xlu0 %1397
    %v1401 = vadd.f32 %v1381, %v1396
    %v1402 = vadd.f32 %v1382, %v1398
    %v1403 = vtanh.pop %v1401
    %v1404 = vtanh.pop %v1402
    %1407 = vrot.lane.b32.xlu0 %v1403, 32
    %v1408 = vpop.permute.xlu0 %1407
    %1409 = vrot.lane.b32.xlu0 %v1404, 32
    %v1410 = vpop.permute.xlu0 %1409
    %v1413 = vmul.f32 %v1379, %v1408
    %v1414 = vmul.f32 %v1380, %v1410
    %v1415 = vpack.c.bf16 %v1414, %v1413
    %1417 = vrot.lane.b32.xlu0 %v1415, 64
    %v1418 = vpop.permute.xlu0 %1417
    %v1420 = vsel %vm377, %v1418, 0
    %1422 = vmatprep.subr.bf16.mxu0 0
    %1423 = vmatpush1.bf16.msra.mxu0 %v486
    %1424 = vmatprep.subr.bf16.mxu0 0
    %1425 = vmatpush1.bf16.msra.mxu0 %v487
    %1426 = vmatprep.subr.bf16.mxu0 0
    %1427 = vmatpush1.bf16.msra.mxu0 0
    %1428 = vmatprep.subr.bf16.mxu0 0
    %1429 = vmatpush1.bf16.msra.mxu0 0
    %1430 = vmatprep.subr.bf16.mxu0 0
    %1431 = vmatpush1.bf16.msra.mxu0 0
    %1432 = vmatprep.subr.bf16.mxu0 0
    %1433 = vmatpush1.bf16.msra.mxu0 0
    %1434 = vmatprep.subr.bf16.mxu0 0
    %1435 = vmatpush1.bf16.msra.mxu0 0
    %1436 = vmatprep.subr.bf16.mxu0 0
    %1437 = vmatpush1.bf16.msra.mxu0 0
    %1438 = vmatprep.subr.bf16.mxu0 0
    %1439 = vmatpush1.bf16.msra.mxu0 0
    %1440 = vmatprep.subr.bf16.mxu0 0
    %1441 = vmatpush1.bf16.msra.mxu0 0
    %1442 = vmatprep.subr.bf16.mxu0 0
    %1443 = vmatpush1.bf16.msra.mxu0 0
    %1444 = vmatprep.subr.bf16.mxu0 0
    %1445 = vmatpush1.bf16.msra.mxu0 0
    %1446 = vmatprep.subr.bf16.mxu0 0
    %1447 = vmatpush1.bf16.msra.mxu0 0
    %1448 = vmatprep.subr.bf16.mxu0 0
    %1449 = vmatpush1.bf16.msra.mxu0 0
    %1450 = vmatprep.subr.bf16.mxu0 0
    %1451 = vmatpush1.bf16.msra.mxu0 0
    %1452 = vmatprep.subr.bf16.mxu0 0
    %1453 = vmatpush1.bf16.msra.mxu0 0
    %1454 = vmatprep.mubr.bf16.mxu0 0
    %1455 = vmatmul.mubr.bf16.gmra.mrb[0].mxu0 %v1420
    %v1456 = vpop.f32.mrb[0].mxu0
    %v1457 = vadd.f32 0.0, %v1456
    %v1458 = vpop.f32.mrb[0].mxu0
    %v1459 = vpop.f32.mrb[0].mxu0
    %v1460 = vadd.f32 0.0, %v1459
    %v1461 = vpop.f32.mrb[0].mxu0
    %1462 = vdwg.mxu0
    %1464 = vrot.lane.b32.xlu0 %v1326, 64
    %v1465 = vpop.permute.xlu0 %1464
    %v1467 = vsel %vm377, %v1465, 0
    %1469 = vmatprep.subr.bf16.mxu0 0
    %1470 = vmatpush1.bf16.msra.mxu0 %v542
    %1471 = vmatprep.subr.bf16.mxu0 0
    %1472 = vmatpush1.bf16.msra.mxu0 %v543
    %1473 = vmatprep.subr.bf16.mxu0 0
    %1474 = vmatpush1.bf16.msra.mxu0 0
    %1475 = vmatprep.subr.bf16.mxu0 0
    %1476 = vmatpush1.bf16.msra.mxu0 0
    %1477 = vmatprep.subr.bf16.mxu0 0
    %1478 = vmatpush1.bf16.msra.mxu0 0
    %1479 = vmatprep.subr.bf16.mxu0 0
    %1480 = vmatpush1.bf16.msra.mxu0 0
    %1481 = vmatprep.subr.bf16.mxu0 0
    %1482 = vmatpush1.bf16.msra.mxu0 0
    %1483 = vmatprep.subr.bf16.mxu0 0
    %1484 = vmatpush1.bf16.msra.mxu0 0
    %1485 = vmatprep.subr.bf16.mxu0 0
    %1486 = vmatpush1.bf16.msra.mxu0 0
    %1487 = vmatprep.subr.bf16.mxu0 0
    %1488 = vmatpush1.bf16.msra.mxu0 0
    %1489 = vmatprep.subr.bf16.mxu0 0
    %1490 = vmatpush1.bf16.msra.mxu0 0
    %1491 = vmatprep.subr.bf16.mxu0 0
    %1492 = vmatpush1.bf16.msra.mxu0 0
    %1493 = vmatprep.subr.bf16.mxu0 0
    %1494 = vmatpush1.bf16.msra.mxu0 0
    %1495 = vmatprep.subr.bf16.mxu0 0
    %1496 = vmatpush1.bf16.msra.mxu0 0
    %1497 = vmatprep.subr.bf16.mxu0 0
    %1498 = vmatpush1.bf16.msra.mxu0 0
    %1499 = vmatprep.subr.bf16.mxu0 0
    %1500 = vmatpush1.bf16.msra.mxu0 0
    %1501 = vmatprep.mubr.bf16.mxu0 0
    %1502 = vmatmul.mubr.bf16.gmra.mrb[0].mxu0 %v1467
    %v1503 = vpop.f32.mrb[0].mxu0
    %v1504 = vadd.f32 %v1457, %v1503
    %v1505 = vpop.f32.mrb[0].mxu0
    %v1506 = vpop.f32.mrb[0].mxu0
    %v1507 = vadd.f32 %v1460, %v1506
    %v1508 = vpop.f32.mrb[0].mxu0
    %1509 = vdwg.mxu0
    %v1510 = vadd.f32 %v1504, %v345
    %v1511 = vadd.f32 %v1507, %v345
    %v1512 = vmul.f32 %v1510, %v352
    %v1513 = vmul.f32 %v1511, %v352
    %v1514 = vtanh.pop %v1512
    %v1515 = vtanh.pop %v1513
    %v1516 = vmul.f32 %v1514, 0.5
    %v1517 = vmul.f32 %v1515, 0.5
    %v1518 = vadd.f32 %v1516, 0.5
    %v1519 = vadd.f32 %v1517, 0.5
    %v1520 = vmul.f32 %v1518, %v1312
    %v1521 = vmul.f32 %v1519, %v1313
    %1524 = vrot.lane.b32.xlu0 %v1514, 32
    %v1525 = vpop.permute.xlu0 %1524
    %1526 = vrot.lane.b32.xlu0 %v1515, 32
    %v1527 = vpop.permute.xlu0 %1526
    %v1530 = vmul.f32 %v1518, %v1525
    %v1531 = vmul.f32 %v1519, %v1527
    %1534 = vrot.lane.b32.xlu0 %v1530, 32
    %v1535 = vpop.permute.xlu0 %1534
    %1536 = vrot.lane.b32.xlu0 %v1531, 32
    %v1537 = vpop.permute.xlu0 %1536
    %v1540 = vadd.f32 %v1520, %v1535
    %v1541 = vadd.f32 %v1521, %v1537
    %v1542 = vtanh.pop %v1540
    %v1543 = vtanh.pop %v1541
    %1546 = vrot.lane.b32.xlu0 %v1542, 32
    %v1547 = vpop.permute.xlu0 %1546
    %1548 = vrot.lane.b32.xlu0 %v1543, 32
    %v1549 = vpop.permute.xlu0 %1548
    %v1552 = vmul.f32 %v1518, %v1547
    %v1553 = vmul.f32 %v1519, %v1549
    %v1554 = vpack.c.bf16 %v1553, %v1552
    %s1555 = scalar_lea.vmem [#allocation6], 80
    %v1556 = vld [vmem:[%s1555] sm:$0xff]
    %v1557 = vld [vmem:[%s1555 + $0x8] sm:$0xff]
    %1558 = vmatprep.subr.bf16.mxu0 0
    %1559 = vmatpush1.bf16.msra.mxu0 %v373
    %1560 = vmatprep.subr.bf16.mxu0 0
    %1561 = vmatpush1.bf16.msra.mxu0 %v374
    %1562 = vmatprep.subr.bf16.mxu0 0
    %1563 = vmatpush1.bf16.msra.mxu0 0
    %1564 = vmatprep.subr.bf16.mxu0 0
    %1565 = vmatpush1.bf16.msra.mxu0 0
    %1566 = vmatprep.subr.bf16.mxu0 0
    %1567 = vmatpush1.bf16.msra.mxu0 0
    %1568 = vmatprep.subr.bf16.mxu0 0
    %1569 = vmatpush1.bf16.msra.mxu0 0
    %1570 = vmatprep.subr.bf16.mxu0 0
    %1571 = vmatpush1.bf16.msra.mxu0 0
    %1572 = vmatprep.subr.bf16.mxu0 0
    %1573 = vmatpush1.bf16.msra.mxu0 0
    %1574 = vmatprep.subr.bf16.mxu0 0
    %1575 = vmatpush1.bf16.msra.mxu0 0
    %1576 = vmatprep.subr.bf16.mxu0 0
    %1577 = vmatpush1.bf16.msra.mxu0 0
    %1578 = vmatprep.subr.bf16.mxu0 0
    %1579 = vmatpush1.bf16.msra.mxu0 0
    %1580 = vmatprep.subr.bf16.mxu0 0
    %1581 = vmatpush1.bf16.msra.mxu0 0
    %1582 = vmatprep.subr.bf16.mxu0 0
    %1583 = vmatpush1.bf16.msra.mxu0 0
    %1584 = vmatprep.subr.bf16.mxu0 0
    %1585 = vmatpush1.bf16.msra.mxu0 0
    %1586 = vmatprep.subr.bf16.mxu0 0
    %1587 = vmatpush1.bf16.msra.mxu0 0
    %1588 = vmatprep.subr.bf16.mxu0 0
    %1589 = vmatpush1.bf16.msra.mxu0 0
    %1590 = vmatprep.mubr.bf16.mxu0 0
    %1591 = vmatmul.mubr.bf16.gmra.mrb[0].mxu0 %v1420
    %v1592 = vpop.f32.mrb[0].mxu0
    %v1593 = vadd.f32 0.0, %v1592
    %v1594 = vpop.f32.mrb[0].mxu0
    %v1595 = vpop.f32.mrb[0].mxu0
    %v1596 = vadd.f32 0.0, %v1595
    %v1597 = vpop.f32.mrb[0].mxu0
    %1598 = vdwg.mxu0
    %v1599 = vadd.f32 %v1556, %v1593
    %v1600 = vadd.f32 %v1557, %v1596
    %v1601 = vmul.f32 %v1599, %v352
    %v1602 = vmul.f32 %v1600, %v352
    %v1603 = vtanh.pop %v1601
    %v1604 = vtanh.pop %v1602
    %v1605 = vmul.f32 %v1603, 0.5
    %v1606 = vmul.f32 %v1604, 0.5
    %v1607 = vadd.f32 %v1605, 0.5
    %v1608 = vadd.f32 %v1606, 0.5
    %v1609 = vmul.f32 %v1607, %v1401
    %v1610 = vmul.f32 %v1608, %v1402
    %1613 = vrot.lane.b32.xlu0 %v1603, 32
    %v1614 = vpop.permute.xlu0 %1613
    %1615 = vrot.lane.b32.xlu0 %v1604, 32
    %v1616 = vpop.permute.xlu0 %1615
    %v1619 = vmul.f32 %v1607, %v1614
    %v1620 = vmul.f32 %v1608, %v1616
    %1623 = vrot.lane.b32.xlu0 %v1619, 32
    %v1624 = vpop.permute.xlu0 %1623
    %1625 = vrot.lane.b32.xlu0 %v1620, 32
    %v1626 = vpop.permute.xlu0 %1625
    %v1629 = vadd.f32 %v1609, %v1624
    %v1630 = vadd.f32 %v1610, %v1626
    %v1631 = vtanh.pop %v1629
    %v1632 = vtanh.pop %v1630
    %1635 = vrot.lane.b32.xlu0 %v1631, 32
    %v1636 = vpop.permute.xlu0 %1635
    %1637 = vrot.lane.b32.xlu0 %v1632, 32
    %v1638 = vpop.permute.xlu0 %1637
    %v1641 = vmul.f32 %v1607, %v1636
    %v1642 = vmul.f32 %v1608, %v1638
    %v1643 = vpack.c.bf16 %v1642, %v1641
    %1645 = vrot.lane.b32.xlu0 %v1643, 64
    %v1646 = vpop.permute.xlu0 %1645
    %v1648 = vsel %vm377, %v1646, 0
    %1650 = vmatprep.subr.bf16.mxu0 0
    %1651 = vmatpush1.bf16.msra.mxu0 %v486
    %1652 = vmatprep.subr.bf16.mxu0 0
    %1653 = vmatpush1.bf16.msra.mxu0 %v487
    %1654 = vmatprep.subr.bf16.mxu0 0
    %1655 = vmatpush1.bf16.msra.mxu0 0
    %1656 = vmatprep.subr.bf16.mxu0 0
    %1657 = vmatpush1.bf16.msra.mxu0 0
    %1658 = vmatprep.subr.bf16.mxu0 0
    %1659 = vmatpush1.bf16.msra.mxu0 0
    %1660 = vmatprep.subr.bf16.mxu0 0
    %1661 = vmatpush1.bf16.msra.mxu0 0
    %1662 = vmatprep.subr.bf16.mxu0 0
    %1663 = vmatpush1.bf16.msra.mxu0 0
    %1664 = vmatprep.subr.bf16.mxu0 0
    %1665 = vmatpush1.bf16.msra.mxu0 0
    %1666 = vmatprep.subr.bf16.mxu0 0
    %1667 = vmatpush1.bf16.msra.mxu0 0
    %1668 = vmatprep.subr.bf16.mxu0 0
    %1669 = vmatpush1.bf16.msra.mxu0 0
    %1670 = vmatprep.subr.bf16.mxu0 0
    %1671 = vmatpush1.bf16.msra.mxu0 0
    %1672 = vmatprep.subr.bf16.mxu0 0
    %1673 = vmatpush1.bf16.msra.mxu0 0
    %1674 = vmatprep.subr.bf16.mxu0 0
    %1675 = vmatpush1.bf16.msra.mxu0 0
    %1676 = vmatprep.subr.bf16.mxu0 0
    %1677 = vmatpush1.bf16.msra.mxu0 0
    %1678 = vmatprep.subr.bf16.mxu0 0
    %1679 = vmatpush1.bf16.msra.mxu0 0
    %1680 = vmatprep.subr.bf16.mxu0 0
    %1681 = vmatpush1.bf16.msra.mxu0 0
    %1682 = vmatprep.mubr.bf16.mxu0 0
    %1683 = vmatmul.mubr.bf16.gmra.mrb[0].mxu0 %v1648
    %v1684 = vpop.f32.mrb[0].mxu0
    %v1685 = vadd.f32 0.0, %v1684
    %v1686 = vpop.f32.mrb[0].mxu0
    %v1687 = vpop.f32.mrb[0].mxu0
    %v1688 = vadd.f32 0.0, %v1687
    %v1689 = vpop.f32.mrb[0].mxu0
    %1690 = vdwg.mxu0
    %1692 = vrot.lane.b32.xlu0 %v1554, 64
    %v1693 = vpop.permute.xlu0 %1692
    %v1695 = vsel %vm377, %v1693, 0
    %1697 = vmatprep.subr.bf16.mxu0 0
    %1698 = vmatpush1.bf16.msra.mxu0 %v542
    %1699 = vmatprep.subr.bf16.mxu0 0
    %1700 = vmatpush1.bf16.msra.mxu0 %v543
    %1701 = vmatprep.subr.bf16.mxu0 0
    %1702 = vmatpush1.bf16.msra.mxu0 0
    %1703 = vmatprep.subr.bf16.mxu0 0
    %1704 = vmatpush1.bf16.msra.mxu0 0
    %1705 = vmatprep.subr.bf16.mxu0 0
    %1706 = vmatpush1.bf16.msra.mxu0 0
    %1707 = vmatprep.subr.bf16.mxu0 0
    %1708 = vmatpush1.bf16.msra.mxu0 0
    %1709 = vmatprep.subr.bf16.mxu0 0
    %1710 = vmatpush1.bf16.msra.mxu0 0
    %1711 = vmatprep.subr.bf16.mxu0 0
    %1712 = vmatpush1.bf16.msra.mxu0 0
    %1713 = vmatprep.subr.bf16.mxu0 0
    %1714 = vmatpush1.bf16.msra.mxu0 0
    %1715 = vmatprep.subr.bf16.mxu0 0
    %1716 = vmatpush1.bf16.msra.mxu0 0
    %1717 = vmatprep.subr.bf16.mxu0 0
    %1718 = vmatpush1.bf16.msra.mxu0 0
    %1719 = vmatprep.subr.bf16.mxu0 0
    %1720 = vmatpush1.bf16.msra.mxu0 0
    %1721 = vmatprep.subr.bf16.mxu0 0
    %1722 = vmatpush1.bf16.msra.mxu0 0
    %1723 = vmatprep.subr.bf16.mxu0 0
    %1724 = vmatpush1.bf16.msra.mxu0 0
    %1725 = vmatprep.subr.bf16.mxu0 0
    %1726 = vmatpush1.bf16.msra.mxu0 0
    %1727 = vmatprep.subr.bf16.mxu0 0
    %1728 = vmatpush1.bf16.msra.mxu0 0
    %1729 = vmatprep.mubr.bf16.mxu0 0
    %1730 = vmatmul.mubr.bf16.gmra.mrb[0].mxu0 %v1695
    %v1731 = vpop.f32.mrb[0].mxu0
    %v1732 = vadd.f32 %v1685, %v1731
    %v1733 = vpop.f32.mrb[0].mxu0
    %v1734 = vpop.f32.mrb[0].mxu0
    %v1735 = vadd.f32 %v1688, %v1734
    %v1736 = vpop.f32.mrb[0].mxu0
    %1737 = vdwg.mxu0
    %v1738 = vadd.f32 %v1732, %v345
    %v1739 = vadd.f32 %v1735, %v345
    %v1740 = vmul.f32 %v1738, %v352
    %v1741 = vmul.f32 %v1739, %v352
    %v1742 = vtanh.pop %v1740
    %v1743 = vtanh.pop %v1741
    %v1744 = vmul.f32 %v1742, 0.5
    %v1745 = vmul.f32 %v1743, 0.5
    %v1746 = vadd.f32 %v1744, 0.5
    %v1747 = vadd.f32 %v1745, 0.5
    %v1748 = vmul.f32 %v1746, %v1540
    %v1749 = vmul.f32 %v1747, %v1541
    %1752 = vrot.lane.b32.xlu0 %v1742, 32
    %v1753 = vpop.permute.xlu0 %1752
    %1754 = vrot.lane.b32.xlu0 %v1743, 32
    %v1755 = vpop.permute.xlu0 %1754
    %v1758 = vmul.f32 %v1746, %v1753
    %v1759 = vmul.f32 %v1747, %v1755
    %1762 = vrot.lane.b32.xlu0 %v1758, 32
    %v1763 = vpop.permute.xlu0 %1762
    %1764 = vrot.lane.b32.xlu0 %v1759, 32
    %v1765 = vpop.permute.xlu0 %1764
    %v1768 = vadd.f32 %v1748, %v1763
    %v1769 = vadd.f32 %v1749, %v1765
    %v1770 = vtanh.pop %v1768
    %v1771 = vtanh.pop %v1769
    %1774 = vrot.lane.b32.xlu0 %v1770, 32
    %v1775 = vpop.permute.xlu0 %1774
    %1776 = vrot.lane.b32.xlu0 %v1771, 32
    %v1777 = vpop.permute.xlu0 %1776
    %v1780 = vmul.f32 %v1746, %v1775
    %v1781 = vmul.f32 %v1747, %v1777
    %v1782 = vpack.c.bf16 %v1781, %v1780
    %s1783 = scalar_lea.vmem [#allocation6], 96
    %v1784 = vld [vmem:[%s1783] sm:$0xff]
    %v1785 = vld [vmem:[%s1783 + $0x8] sm:$0xff]
    %1786 = vmatprep.subr.bf16.mxu0 0
    %1787 = vmatpush1.bf16.msra.mxu0 %v373
    %1788 = vmatprep.subr.bf16.mxu0 0
    %1789 = vmatpush1.bf16.msra.mxu0 %v374
    %1790 = vmatprep.subr.bf16.mxu0 0
    %1791 = vmatpush1.bf16.msra.mxu0 0
    %1792 = vmatprep.subr.bf16.mxu0 0
    %1793 = vmatpush1.bf16.msra.mxu0 0
    %1794 = vmatprep.subr.bf16.mxu0 0
    %1795 = vmatpush1.bf16.msra.mxu0 0
    %1796 = vmatprep.subr.bf16.mxu0 0
    %1797 = vmatpush1.bf16.msra.mxu0 0
    %1798 = vmatprep.subr.bf16.mxu0 0
    %1799 = vmatpush1.bf16.msra.mxu0 0
    %1800 = vmatprep.subr.bf16.mxu0 0
    %1801 = vmatpush1.bf16.msra.mxu0 0
    %1802 = vmatprep.subr.bf16.mxu0 0
    %1803 = vmatpush1.bf16.msra.mxu0 0
    %1804 = vmatprep.subr.bf16.mxu0 0
    %1805 = vmatpush1.bf16.msra.mxu0 0
    %1806 = vmatprep.subr.bf16.mxu0 0
    %1807 = vmatpush1.bf16.msra.mxu0 0
    %1808 = vmatprep.subr.bf16.mxu0 0
    %1809 = vmatpush1.bf16.msra.mxu0 0
    %1810 = vmatprep.subr.bf16.mxu0 0
    %1811 = vmatpush1.bf16.msra.mxu0 0
    %1812 = vmatprep.subr.bf16.mxu0 0
    %1813 = vmatpush1.bf16.msra.mxu0 0
    %1814 = vmatprep.subr.bf16.mxu0 0
    %1815 = vmatpush1.bf16.msra.mxu0 0
    %1816 = vmatprep.subr.bf16.mxu0 0
    %1817 = vmatpush1.bf16.msra.mxu0 0
    %1818 = vmatprep.mubr.bf16.mxu0 0
    %1819 = vmatmul.mubr.bf16.gmra.mrb[0].mxu0 %v1648
    %v1820 = vpop.f32.mrb[0].mxu0
    %v1821 = vadd.f32 0.0, %v1820
    %v1822 = vpop.f32.mrb[0].mxu0
    %v1823 = vpop.f32.mrb[0].mxu0
    %v1824 = vadd.f32 0.0, %v1823
    %v1825 = vpop.f32.mrb[0].mxu0
    %1826 = vdwg.mxu0
    %v1827 = vadd.f32 %v1784, %v1821
    %v1828 = vadd.f32 %v1785, %v1824
    %v1829 = vmul.f32 %v1827, %v352
    %v1830 = vmul.f32 %v1828, %v352
    %v1831 = vtanh.pop %v1829
    %v1832 = vtanh.pop %v1830
    %v1833 = vmul.f32 %v1831, 0.5
    %v1834 = vmul.f32 %v1832, 0.5
    %v1835 = vadd.f32 %v1833, 0.5
    %v1836 = vadd.f32 %v1834, 0.5
    %v1837 = vmul.f32 %v1835, %v1629
    %v1838 = vmul.f32 %v1836, %v1630
    %1841 = vrot.lane.b32.xlu0 %v1831, 32
    %v1842 = vpop.permute.xlu0 %1841
    %1843 = vrot.lane.b32.xlu0 %v1832, 32
    %v1844 = vpop.permute.xlu0 %1843
    %v1847 = vmul.f32 %v1835, %v1842
    %v1848 = vmul.f32 %v1836, %v1844
    %1851 = vrot.lane.b32.xlu0 %v1847, 32
    %v1852 = vpop.permute.xlu0 %1851
    %1853 = vrot.lane.b32.xlu0 %v1848, 32
    %v1854 = vpop.permute.xlu0 %1853
    %v1857 = vadd.f32 %v1837, %v1852
    %v1858 = vadd.f32 %v1838, %v1854
    %v1859 = vtanh.pop %v1857
    %v1860 = vtanh.pop %v1858
    %1863 = vrot.lane.b32.xlu0 %v1859, 32
    %v1864 = vpop.permute.xlu0 %1863
    %1865 = vrot.lane.b32.xlu0 %v1860, 32
    %v1866 = vpop.permute.xlu0 %1865
    %v1869 = vmul.f32 %v1835, %v1864
    %v1870 = vmul.f32 %v1836, %v1866
    %v1871 = vpack.c.bf16 %v1870, %v1869
    %1873 = vrot.lane.b32.xlu0 %v1871, 64
    %v1874 = vpop.permute.xlu0 %1873
    %v1876 = vsel %vm377, %v1874, 0
    %1878 = vmatprep.subr.bf16.mxu0 0
    %1879 = vmatpush1.bf16.msra.mxu0 %v486
    %1880 = vmatprep.subr.bf16.mxu0 0
    %1881 = vmatpush1.bf16.msra.mxu0 %v487
    %1882 = vmatprep.subr.bf16.mxu0 0
    %1883 = vmatpush1.bf16.msra.mxu0 0
    %1884 = vmatprep.subr.bf16.mxu0 0
    %1885 = vmatpush1.bf16.msra.mxu0 0
    %1886 = vmatprep.subr.bf16.mxu0 0
    %1887 = vmatpush1.bf16.msra.mxu0 0
    %1888 = vmatprep.subr.bf16.mxu0 0
    %1889 = vmatpush1.bf16.msra.mxu0 0
    %1890 = vmatprep.subr.bf16.mxu0 0
    %1891 = vmatpush1.bf16.msra.mxu0 0
    %1892 = vmatprep.subr.bf16.mxu0 0
    %1893 = vmatpush1.bf16.msra.mxu0 0
    %1894 = vmatprep.subr.bf16.mxu0 0
    %1895 = vmatpush1.bf16.msra.mxu0 0
    %1896 = vmatprep.subr.bf16.mxu0 0
    %1897 = vmatpush1.bf16.msra.mxu0 0
    %1898 = vmatprep.subr.bf16.mxu0 0
    %1899 = vmatpush1.bf16.msra.mxu0 0
    %1900 = vmatprep.subr.bf16.mxu0 0
    %1901 = vmatpush1.bf16.msra.mxu0 0
    %1902 = vmatprep.subr.bf16.mxu0 0
    %1903 = vmatpush1.bf16.msra.mxu0 0
    %1904 = vmatprep.subr.bf16.mxu0 0
    %1905 = vmatpush1.bf16.msra.mxu0 0
    %1906 = vmatprep.subr.bf16.mxu0 0
    %1907 = vmatpush1.bf16.msra.mxu0 0
    %1908 = vmatprep.subr.bf16.mxu0 0
    %1909 = vmatpush1.bf16.msra.mxu0 0
    %1910 = vmatprep.mubr.bf16.mxu0 0
    %1911 = vmatmul.mubr.bf16.gmra.mrb[0].mxu0 %v1876
    %v1912 = vpop.f32.mrb[0].mxu0
    %v1913 = vadd.f32 0.0, %v1912
    %v1914 = vpop.f32.mrb[0].mxu0
    %v1915 = vpop.f32.mrb[0].mxu0
    %v1916 = vadd.f32 0.0, %v1915
    %v1917 = vpop.f32.mrb[0].mxu0
    %1918 = vdwg.mxu0
    %1920 = vrot.lane.b32.xlu0 %v1782, 64
    %v1921 = vpop.permute.xlu0 %1920
    %v1923 = vsel %vm377, %v1921, 0
    %1925 = vmatprep.subr.bf16.mxu0 0
    %1926 = vmatpush1.bf16.msra.mxu0 %v542
    %1927 = vmatprep.subr.bf16.mxu0 0
    %1928 = vmatpush1.bf16.msra.mxu0 %v543
    %1929 = vmatprep.subr.bf16.mxu0 0
    %1930 = vmatpush1.bf16.msra.mxu0 0
    %1931 = vmatprep.subr.bf16.mxu0 0
    %1932 = vmatpush1.bf16.msra.mxu0 0
    %1933 = vmatprep.subr.bf16.mxu0 0
    %1934 = vmatpush1.bf16.msra.mxu0 0
    %1935 = vmatprep.subr.bf16.mxu0 0
    %1936 = vmatpush1.bf16.msra.mxu0 0
    %1937 = vmatprep.subr.bf16.mxu0 0
    %1938 = vmatpush1.bf16.msra.mxu0 0
    %1939 = vmatprep.subr.bf16.mxu0 0
    %1940 = vmatpush1.bf16.msra.mxu0 0
    %1941 = vmatprep.subr.bf16.mxu0 0
    %1942 = vmatpush1.bf16.msra.mxu0 0
    %1943 = vmatprep.subr.bf16.mxu0 0
    %1944 = vmatpush1.bf16.msra.mxu0 0
    %1945 = vmatprep.subr.bf16.mxu0 0
    %1946 = vmatpush1.bf16.msra.mxu0 0
    %1947 = vmatprep.subr.bf16.mxu0 0
    %1948 = vmatpush1.bf16.msra.mxu0 0
    %1949 = vmatprep.subr.bf16.mxu0 0
    %1950 = vmatpush1.bf16.msra.mxu0 0
    %1951 = vmatprep.subr.bf16.mxu0 0
    %1952 = vmatpush1.bf16.msra.mxu0 0
    %1953 = vmatprep.subr.bf16.mxu0 0
    %1954 = vmatpush1.bf16.msra.mxu0 0
    %1955 = vmatprep.subr.bf16.mxu0 0
    %1956 = vmatpush1.bf16.msra.mxu0 0
    %1957 = vmatprep.mubr.bf16.mxu0 0
    %1958 = vmatmul.mubr.bf16.gmra.mrb[0].mxu0 %v1923
    %v1959 = vpop.f32.mrb[0].mxu0
    %v1960 = vadd.f32 %v1913, %v1959
    %v1961 = vpop.f32.mrb[0].mxu0
    %v1962 = vpop.f32.mrb[0].mxu0
    %v1963 = vadd.f32 %v1916, %v1962
    %v1964 = vpop.f32.mrb[0].mxu0
    %1965 = vdwg.mxu0
    %v1966 = vadd.f32 %v1960, %v345
    %v1967 = vadd.f32 %v1963, %v345
    %v1968 = vmul.f32 %v1966, %v352
    %v1969 = vmul.f32 %v1967, %v352
    %v1970 = vtanh.pop %v1968
    %v1971 = vtanh.pop %v1969
    %v1972 = vmul.f32 %v1970, 0.5
    %v1973 = vmul.f32 %v1971, 0.5
    %v1974 = vadd.f32 %v1972, 0.5
    %v1975 = vadd.f32 %v1973, 0.5
    %v1976 = vmul.f32 %v1974, %v1768
    %v1977 = vmul.f32 %v1975, %v1769
    %1980 = vrot.lane.b32.xlu0 %v1970, 32
    %v1981 = vpop.permute.xlu0 %1980
    %1982 = vrot.lane.b32.xlu0 %v1971, 32
    %v1983 = vpop.permute.xlu0 %1982
    %v1986 = vmul.f32 %v1974, %v1981
    %v1987 = vmul.f32 %v1975, %v1983
    %1990 = vrot.lane.b32.xlu0 %v1986, 32
    %v1991 = vpop.permute.xlu0 %1990
    %1992 = vrot.lane.b32.xlu0 %v1987, 32
    %v1993 = vpop.permute.xlu0 %1992
    %v1996 = vadd.f32 %v1976, %v1991
    %v1997 = vadd.f32 %v1977, %v1993
    %v1998 = vtanh.pop %v1996
    %v1999 = vtanh.pop %v1997
    %2002 = vrot.lane.b32.xlu0 %v1998, 32
    %v2003 = vpop.permute.xlu0 %2002
    %2004 = vrot.lane.b32.xlu0 %v1999, 32
    %v2005 = vpop.permute.xlu0 %2004
    %v2008 = vmul.f32 %v1974, %v2003
    %v2009 = vmul.f32 %v1975, %v2005
    %v2010 = vpack.c.bf16 %v2009, %v2008
    %s2011 = scalar_lea.vmem [#allocation6], 112
    %v2012 = vld [vmem:[%s2011] sm:$0xff]
    %v2013 = vld [vmem:[%s2011 + $0x8] sm:$0xff]
    %2014 = vmatprep.subr.bf16.mxu0 0
    %2015 = vmatpush1.bf16.msra.mxu0 %v373
    %2016 = vmatprep.subr.bf16.mxu0 0
    %2017 = vmatpush1.bf16.msra.mxu0 %v374
    %2018 = vmatprep.subr.bf16.mxu0 0
    %2019 = vmatpush1.bf16.msra.mxu0 0
    %2020 = vmatprep.subr.bf16.mxu0 0
    %2021 = vmatpush1.bf16.msra.mxu0 0
    %2022 = vmatprep.subr.bf16.mxu0 0
    %2023 = vmatpush1.bf16.msra.mxu0 0
    %2024 = vmatprep.subr.bf16.mxu0 0
    %2025 = vmatpush1.bf16.msra.mxu0 0
    %2026 = vmatprep.subr.bf16.mxu0 0
    %2027 = vmatpush1.bf16.msra.mxu0 0
    %2028 = vmatprep.subr.bf16.mxu0 0
    %2029 = vmatpush1.bf16.msra.mxu0 0
    %2030 = vmatprep.subr.bf16.mxu0 0
    %2031 = vmatpush1.bf16.msra.mxu0 0
    %2032 = vmatprep.subr.bf16.mxu0 0
    %2033 = vmatpush1.bf16.msra.mxu0 0
    %2034 = vmatprep.subr.bf16.mxu0 0
    %2035 = vmatpush1.bf16.msra.mxu0 0
    %2036 = vmatprep.subr.bf16.mxu0 0
    %2037 = vmatpush1.bf16.msra.mxu0 0
    %2038 = vmatprep.subr.bf16.mxu0 0
    %2039 = vmatpush1.bf16.msra.mxu0 0
    %2040 = vmatprep.subr.bf16.mxu0 0
    %2041 = vmatpush1.bf16.msra.mxu0 0
    %2042 = vmatprep.subr.bf16.mxu0 0
    %2043 = vmatpush1.bf16.msra.mxu0 0
    %2044 = vmatprep.subr.bf16.mxu0 0
    %2045 = vmatpush1.bf16.msra.mxu0 0
    %2046 = vmatprep.mubr.bf16.mxu0 0
    %2047 = vmatmul.mubr.bf16.gmra.mrb[0].mxu0 %v1876
    %v2048 = vpop.f32.mrb[0].mxu0
    %v2049 = vadd.f32 0.0, %v2048
    %v2050 = vpop.f32.mrb[0].mxu0
    %v2051 = vpop.f32.mrb[0].mxu0
    %v2052 = vadd.f32 0.0, %v2051
    %v2053 = vpop.f32.mrb[0].mxu0
    %2054 = vdwg.mxu0
    %v2055 = vadd.f32 %v2012, %v2049
    %v2056 = vadd.f32 %v2013, %v2052
    %v2057 = vmul.f32 %v2055, %v352
    %v2058 = vmul.f32 %v2056, %v352
    %v2059 = vtanh.pop %v2057
    %v2060 = vtanh.pop %v2058
    %v2061 = vmul.f32 %v2059, 0.5
    %v2062 = vmul.f32 %v2060, 0.5
    %v2063 = vadd.f32 %v2061, 0.5
    %v2064 = vadd.f32 %v2062, 0.5
    %v2065 = vmul.f32 %v2063, %v1857
    %v2066 = vmul.f32 %v2064, %v1858
    %2069 = vrot.lane.b32.xlu0 %v2059, 32
    %v2070 = vpop.permute.xlu0 %2069
    %2071 = vrot.lane.b32.xlu0 %v2060, 32
    %v2072 = vpop.permute.xlu0 %2071
    %v2075 = vmul.f32 %v2063, %v2070
    %v2076 = vmul.f32 %v2064, %v2072
    %2079 = vrot.lane.b32.xlu0 %v2075, 32
    %v2080 = vpop.permute.xlu0 %2079
    %2081 = vrot.lane.b32.xlu0 %v2076, 32
    %v2082 = vpop.permute.xlu0 %2081
    %v2085 = vadd.f32 %v2065, %v2080
    %v2086 = vadd.f32 %v2066, %v2082
    %v2087 = vtanh.pop %v2085
    %v2088 = vtanh.pop %v2086
    %2091 = vrot.lane.b32.xlu0 %v2087, 32
    %v2092 = vpop.permute.xlu0 %2091
    %2093 = vrot.lane.b32.xlu0 %v2088, 32
    %v2094 = vpop.permute.xlu0 %2093
    %v2097 = vmul.f32 %v2063, %v2092
    %v2098 = vmul.f32 %v2064, %v2094
    %v2099 = vpack.c.bf16 %v2098, %v2097
    %2101 = vrot.lane.b32.xlu0 %v2099, 64
    %v2102 = vpop.permute.xlu0 %2101
    %v2104 = vsel %vm377, %v2102, 0
    %2106 = vmatprep.subr.bf16.mxu0 0
    %2107 = vmatpush1.bf16.msra.mxu0 %v486
    %2108 = vmatprep.subr.bf16.mxu0 0
    %2109 = vmatpush1.bf16.msra.mxu0 %v487
    %2110 = vmatprep.subr.bf16.mxu0 0
    %2111 = vmatpush1.bf16.msra.mxu0 0
    %2112 = vmatprep.subr.bf16.mxu0 0
    %2113 = vmatpush1.bf16.msra.mxu0 0
    %2114 = vmatprep.subr.bf16.mxu0 0
    %2115 = vmatpush1.bf16.msra.mxu0 0
    %2116 = vmatprep.subr.bf16.mxu0 0
    %2117 = vmatpush1.bf16.msra.mxu0 0
    %2118 = vmatprep.subr.bf16.mxu0 0
    %2119 = vmatpush1.bf16.msra.mxu0 0
    %2120 = vmatprep.subr.bf16.mxu0 0
    %2121 = vmatpush1.bf16.msra.mxu0 0
    %2122 = vmatprep.subr.bf16.mxu0 0
    %2123 = vmatpush1.bf16.msra.mxu0 0
    %2124 = vmatprep.subr.bf16.mxu0 0
    %2125 = vmatpush1.bf16.msra.mxu0 0
    %2126 = vmatprep.subr.bf16.mxu0 0
    %2127 = vmatpush1.bf16.msra.mxu0 0
    %2128 = vmatprep.subr.bf16.mxu0 0
    %2129 = vmatpush1.bf16.msra.mxu0 0
    %2130 = vmatprep.subr.bf16.mxu0 0
    %2131 = vmatpush1.bf16.msra.mxu0 0
    %2132 = vmatprep.subr.bf16.mxu0 0
    %2133 = vmatpush1.bf16.msra.mxu0 0
    %2134 = vmatprep.subr.bf16.mxu0 0
    %2135 = vmatpush1.bf16.msra.mxu0 0
    %2136 = vmatprep.subr.bf16.mxu0 0
    %2137 = vmatpush1.bf16.msra.mxu0 0
    %2138 = vmatprep.mubr.bf16.mxu0 0
    %2139 = vmatmul.mubr.bf16.gmra.mrb[0].mxu0 %v2104
    %v2140 = vpop.f32.mrb[0].mxu0
    %v2141 = vadd.f32 0.0, %v2140
    %v2142 = vpop.f32.mrb[0].mxu0
    %v2143 = vpop.f32.mrb[0].mxu0
    %v2144 = vadd.f32 0.0, %v2143
    %v2145 = vpop.f32.mrb[0].mxu0
    %2146 = vdwg.mxu0
    %2148 = vrot.lane.b32.xlu0 %v2010, 64
    %v2149 = vpop.permute.xlu0 %2148
    %v2151 = vsel %vm377, %v2149, 0
    %2153 = vmatprep.subr.bf16.mxu0 0
    %2154 = vmatpush1.bf16.msra.mxu0 %v542
    %2155 = vmatprep.subr.bf16.mxu0 0
    %2156 = vmatpush1.bf16.msra.mxu0 %v543
    %2157 = vmatprep.subr.bf16.mxu0 0
    %2158 = vmatpush1.bf16.msra.mxu0 0
    %2159 = vmatprep.subr.bf16.mxu0 0
    %2160 = vmatpush1.bf16.msra.mxu0 0
    %2161 = vmatprep.subr.bf16.mxu0 0
    %2162 = vmatpush1.bf16.msra.mxu0 0
    %2163 = vmatprep.subr.bf16.mxu0 0
    %2164 = vmatpush1.bf16.msra.mxu0 0
    %2165 = vmatprep.subr.bf16.mxu0 0
    %2166 = vmatpush1.bf16.msra.mxu0 0
    %2167 = vmatprep.subr.bf16.mxu0 0
    %2168 = vmatpush1.bf16.msra.mxu0 0
    %2169 = vmatprep.subr.bf16.mxu0 0
    %2170 = vmatpush1.bf16.msra.mxu0 0
    %2171 = vmatprep.subr.bf16.mxu0 0
    %2172 = vmatpush1.bf16.msra.mxu0 0
    %2173 = vmatprep.subr.bf16.mxu0 0
    %2174 = vmatpush1.bf16.msra.mxu0 0
    %2175 = vmatprep.subr.bf16.mxu0 0
    %2176 = vmatpush1.bf16.msra.mxu0 0
    %2177 = vmatprep.subr.bf16.mxu0 0
    %2178 = vmatpush1.bf16.msra.mxu0 0
    %2179 = vmatprep.subr.bf16.mxu0 0
    %2180 = vmatpush1.bf16.msra.mxu0 0
    %2181 = vmatprep.subr.bf16.mxu0 0
    %2182 = vmatpush1.bf16.msra.mxu0 0
    %2183 = vmatprep.subr.bf16.mxu0 0
    %2184 = vmatpush1.bf16.msra.mxu0 0
    %2185 = vmatprep.mubr.bf16.mxu0 0
    %2186 = vmatmul.mubr.bf16.gmra.mrb[0].mxu0 %v2151
    %v2187 = vpop.f32.mrb[0].mxu0
    %v2188 = vadd.f32 %v2141, %v2187
    %v2189 = vpop.f32.mrb[0].mxu0
    %v2190 = vpop.f32.mrb[0].mxu0
    %v2191 = vadd.f32 %v2144, %v2190
    %v2192 = vpop.f32.mrb[0].mxu0
    %2193 = vdwg.mxu0
    %v2194 = vadd.f32 %v2188, %v345
    %v2195 = vadd.f32 %v2191, %v345
    %v2196 = vmul.f32 %v2194, %v352
    %v2197 = vmul.f32 %v2195, %v352
    %v2198 = vtanh.pop %v2196
    %v2199 = vtanh.pop %v2197
    %v2200 = vmul.f32 %v2198, 0.5
    %v2201 = vmul.f32 %v2199, 0.5
    %v2202 = vadd.f32 %v2200, 0.5
    %v2203 = vadd.f32 %v2201, 0.5
    %v2204 = vmul.f32 %v2202, %v1996
    %v2205 = vmul.f32 %v2203, %v1997
    %2208 = vrot.lane.b32.xlu0 %v2198, 32
    %v2209 = vpop.permute.xlu0 %2208
    %2210 = vrot.lane.b32.xlu0 %v2199, 32
    %v2211 = vpop.permute.xlu0 %2210
    %v2214 = vmul.f32 %v2202, %v2209
    %v2215 = vmul.f32 %v2203, %v2211
    %2218 = vrot.lane.b32.xlu0 %v2214, 32
    %v2219 = vpop.permute.xlu0 %2218
    %2220 = vrot.lane.b32.xlu0 %v2215, 32
    %v2221 = vpop.permute.xlu0 %2220
    %v2224 = vadd.f32 %v2204, %v2219
    %v2225 = vadd.f32 %v2205, %v2221
    %v2226 = vtanh.pop %v2224
    %v2227 = vtanh.pop %v2225
    %2230 = vrot.lane.b32.xlu0 %v2226, 32
    %v2231 = vpop.permute.xlu0 %2230
    %2232 = vrot.lane.b32.xlu0 %v2227, 32
    %v2233 = vpop.permute.xlu0 %2232
    %v2236 = vmul.f32 %v2202, %v2231
    %v2237 = vmul.f32 %v2203, %v2233
    %2240 = vrot.lane.b32.xlu0 %v2097, 64
    %v2241 = vpop.permute.xlu0 %2240
    %2242 = vrot.lane.b32.xlu0 %v2098, 64
    %v2243 = vpop.permute.xlu0 %2242
    %2246 = vst.msk [vmem:[#allocation2] sm:$0xff] %vm377, %v2241
    %2247 = vst.msk [vmem:[#allocation2 + $0x8] sm:$0xff] %vm377, %v2243
    %2250 = vrot.lane.b32.xlu0 %v2085, 96
    %v2251 = vpop.permute.xlu0 %2250
    %2252 = vrot.lane.b32.xlu0 %v2086, 96
    %v2253 = vpop.permute.xlu0 %2252
    %2256 = vst.msk [vmem:[#allocation3] sm:$0xff] %vm377, %v2251
    %2257 = vst.msk [vmem:[#allocation3 + $0x8] sm:$0xff] %vm377, %v2253
    %2260 = vrot.lane.b32.xlu0 %v2236, 64
    %v2261 = vpop.permute.xlu0 %2260
    %2262 = vrot.lane.b32.xlu0 %v2237, 64
    %v2263 = vpop.permute.xlu0 %2262
    %2266 = vst.msk [vmem:[#allocation4] sm:$0xff] %vm377, %v2261
    %2267 = vst.msk [vmem:[#allocation4 + $0x8] sm:$0xff] %vm377, %v2263
    %2270 = vrot.lane.b32.xlu0 %v2224, 96
    %v2271 = vpop.permute.xlu0 %2270
    %2272 = vrot.lane.b32.xlu0 %v2225, 96
    %v2273 = vpop.permute.xlu0 %2272
    %2276 = vst.msk [vmem:[#allocation5] sm:$0xff] %vm377, %v2271
    %2277 = vst.msk [vmem:[#allocation5 + $0x8] sm:$0xff] %vm377, %v2273
    // Predicated region
    $region58: #{tpu_custom_call.1} parent=1 // pred_check
      %p2278 = pneg %p90
    $region59: #{tpu_custom_call.1} parent=1 // pred_check_branch
      %2280 = sbr.rel (%p2278) target = $region61
    $region60: #{tpu_custom_call.1} parent=1 // pred_region
      %v2281 = vld [vmem:[%s7] sm:$0x1]
      %v2283 = vlaneseq
      %v2284 = vshrl.u32 %v2283, 7
      %v2285 = vsub.s32 0, %v2284
      %v2286 = vrot.slane %v2281, %v2285
      %2287 = vrot.lane.b32.xlu0 %v2286, 64
      %v2288 = vpop.permute.xlu0 %2287
      %v2290 = vmul.f32 %v2236, %v2288
      %v2291 = vmul.f32 %v2237, %v2288
      %2294 = vrot.lane.b32.xlu0 %v2290, 64
      %v2295 = vpop.permute.xlu0 %2294
      %2296 = vrot.lane.b32.xlu0 %v2291, 64
      %v2297 = vpop.permute.xlu0 %2296
      %v2300 = vsel %vm377, %v2295, 0.0
      %2301 = vadd.xlane.f32.xlu0 %v2300
      %v2302 = vpop.xlane.xlu0 %2301
      %v2303 = vsel %vm377, %v2297, 0.0
      %2304 = vadd.xlane.f32.xlu0 %v2303
      %v2305 = vpop.xlane.xlu0 %2304
      %v2306 = vld [vmem:[#allocation7] sm:$0x1]
      %v2308 = vlaneseq
      %v2309 = vshrl.u32 %v2308, 7
      %v2310 = vsub.s32 0, %v2309
      %v2311 = vrot.slane %v2306, %v2310
      %v2313 = vadd.f32 %v2302, %v2311
      %v2314 = vadd.f32 %v2305, %v2311
      %v2315 = vxor.u32 %v2313, 2147483648
      %v2316 = vxor.u32 %v2314, 2147483648
      %v2317 = vmul.f32 %v2315, 1.442695
      %v2318 = vpow.pop %v2317
      %v2319 = vmul.f32 %v2316, 1.442695
      %v2320 = vpow.pop %v2319
      %v2321 = vadd.f32 %v2318, 1.0
      %v2322 = vadd.f32 %v2320, 1.0
      %v2323 = vrcp.pop %v2321
      %v2324 = vmul.f32 1.0, %v2323
      %v2325 = vrcp.pop %v2322
      %v2326 = vmul.f32 1.0, %v2325
      %vm2327 = vcmask 7168
      %2328 = vst.msk [vmem:[%s9] sm:$0xff] %vm2327, %v2324
      %2329 = vst.msk [vmem:[%s9 + $0x8] sm:$0xff] %vm2327, %v2326
    $region61: #{tpu_custom_call.1} parent=1 // pred_fallthru
      _
    // Predicated region
    $region62: #{tpu_custom_call.1} parent=1 // pred_check
      _
    $region63: #{tpu_custom_call.1} parent=1 // pred_check_branch
      %2331 = sbr.rel (0) target = $region65
    $region64: #{tpu_custom_call.1} parent=1 // pred_region
      _
    $region65: #{tpu_custom_call.1} parent=1 // pred_fallthru
      _
    // Predicated region
    $region66: #{tpu_custom_call.1} parent=1 // pred_check
      _
    $region67: #{tpu_custom_call.1} parent=1 // pred_check_branch
      %2333 = sbr.rel (0) target = $region69
    $region68: #{tpu_custom_call.1} parent=1 // pred_region
      _
    $region69: #{tpu_custom_call.1} parent=1 // pred_fallthru
      _
    %2334 = vsyncpa [#allocation9], 1
    %2335 = vsyncpa [#allocation11], 1
    %2336 = vsyncpa [#allocation14], 1

</llo_original>
